<compile_context>
chip_gen: v7x
topology: tpu7x:2x2x1
jax: 0.10.0
libtpu: 0.0.40
codegen_flags: <defaults>
</compile_context>

<pallas_src>
import functools
import math

import jax
import jax.numpy as jnp
from jax.experimental import pallas as pl
from jax.experimental.pallas import tpu as pltpu


# ---------------------------------------------------------------------------
# Tiling helper
# ---------------------------------------------------------------------------

def _pick_tile(dim, preferred, aligns=(8,)):
    """Largest tile <= preferred that divides `dim` and is a multiple of one of
    `aligns` (tried in order: 256 first on lane dims for the v6e/v7x MXU,
    128 fallback for v5e); falls back to the full dim (always legal)."""
    if dim <= preferred:
        return dim
    for align in aligns:
        t = (preferred // align) * align
        while t >= align:
            if dim % t == 0:
                return t
            t -= align
    return dim


# ---------------------------------------------------------------------------
# Tiled linear kernels
# ---------------------------------------------------------------------------

def _linear_kernel(x_ref, w_ref, b_ref, o_ref, acc_ref, *, relu):
    """y = x @ w + b (optional ReLU); bf16 MXU operands, f32 accumulation,
    bf16 (or caller-chosen) output written only on the last K step."""
    @pl.when(pl.program_id(2) == 0)
    def _():
        acc_ref[...] = jnp.zeros_like(acc_ref)

    acc_ref[...] += jnp.dot(x_ref[...], w_ref[...],
                            preferred_element_type=jnp.float32)

    @pl.when(pl.program_id(2) == pl.num_programs(2) - 1)
    def _():
        y = acc_ref[...] + b_ref[...]
        if relu:
            y = jnp.maximum(y, 0.0)
        o_ref[...] = y.astype(o_ref.dtype)


def pallas_linear(x, w, b, relu=False, out_dtype=jnp.bfloat16,
                  tm=512, tn=512, tk=512):
    """(M,K) @ (K,N) + b with an (M,N,K) grid and a f32 VMEM accumulator."""
    M, K = x.shape
    N = w.shape[1]
    tm = _pick_tile(M, tm, (8,))
    tn = _pick_tile(N, tn, (256, 128))
    tk = _pick_tile(K, tk, (256, 128))
    grid = (M // tm, N // tn, K // tk)
    return pl.pallas_call(
        functools.partial(_linear_kernel, relu=relu),
        out_shape=jax.ShapeDtypeStruct((M, N), out_dtype),
        grid=grid,
        in_specs=[
            pl.BlockSpec((tm, tk), lambda i, j, k: (i, k)),
            pl.BlockSpec((tk, tn), lambda i, j, k: (k, j)),
            pl.BlockSpec((1, tn), lambda i, j, k: (0, j)),
        ],
        out_specs=pl.BlockSpec((tm, tn), lambda i, j, k: (i, j)),
        scratch_shapes=[pltpu.VMEM((tm, tn), jnp.float32)],
        compiler_params=pltpu.CompilerParams(
            dimension_semantics=("parallel", "parallel", "arbitrary")),
    )(x.astype(jnp.bfloat16), w.astype(jnp.bfloat16),
      b.reshape(1, N).astype(jnp.float32))


def _linear_add_ln_kernel(x_ref, w_ref, b_ref, r_ref, g_ref, bb_ref, o_ref,
                          acc_ref):
    """y = x @ w + b, then out = LayerNorm(y + residual) as the epilogue of the
    last K step.  LN statistics in f32 over full rows (N untiled)."""
    @pl.when(pl.program_id(1) == 0)
    def _():
        acc_ref[...] = jnp.zeros_like(acc_ref)

    acc_ref[...] += jnp.dot(x_ref[...], w_ref[...],
                            preferred_element_type=jnp.float32)

    @pl.when(pl.program_id(1) == pl.num_programs(1) - 1)
    def _():
        y = acc_ref[...] + b_ref[...] + r_ref[...].astype(jnp.float32)
        mu = jnp.mean(y, axis=-1, keepdims=True)
        d = y - mu
        var = jnp.mean(d * d, axis=-1, keepdims=True)
        inv = jax.lax.rsqrt(var + jnp.float32(1e-12))
        o_ref[...] = (g_ref[...] * (d * inv) + bb_ref[...]).astype(o_ref.dtype)


def pallas_linear_add_ln(x, w, b, residual, gamma, beta, tm=256, tk=512):
    """out = LayerNorm(residual + x @ w + b), bf16 output.  N (= d_model)
    stays untiled so the LN row reduction sees full rows; tm is capped at 256
    to stay inside v5e's 16 MiB default scoped VMEM / v7x's 64 MiB VMEM."""
    M, K = x.shape
    N = w.shape[1]
    tm = _pick_tile(M, tm, (8,))
    tk = _pick_tile(K, tk, (256, 128))
    grid = (M // tm, K // tk)
    return pl.pallas_call(
        _linear_add_ln_kernel,
        out_shape=jax.ShapeDtypeStruct((M, N), jnp.bfloat16),
        grid=grid,
        in_specs=[
            pl.BlockSpec((tm, tk), lambda i, k: (i, k)),
            pl.BlockSpec((tk, N), lambda i, k: (k, 0)),
            pl.BlockSpec((1, N), lambda i, k: (0, 0)),
            pl.BlockSpec((tm, N), lambda i, k: (i, 0)),
            pl.BlockSpec((1, N), lambda i, k: (0, 0)),
            pl.BlockSpec((1, N), lambda i, k: (0, 0)),
        ],
        out_specs=pl.BlockSpec((tm, N), lambda i, k: (i, 0)),
        scratch_shapes=[pltpu.VMEM((tm, N), jnp.float32)],
        compiler_params=pltpu.CompilerParams(
            dimension_semantics=("parallel", "arbitrary")),
    )(x.astype(jnp.bfloat16), w.astype(jnp.bfloat16),
      b.reshape(1, N).astype(jnp.float32),
      residual, gamma.reshape(1, N), beta.reshape(1, N))


# ---------------------------------------------------------------------------
# Flash-style multi-head attention (online softmax over KV tiles)
# ---------------------------------------------------------------------------

def _flash_mha_kernel(qpad_ref, kpad_ref, q_ref, k_ref, v_ref, o_ref,
                      m_sc, l_sc, acc_sc, *, h, scale, causal):
    """One (batch, q-tile, kv-tile) grid step.  q/k/v blocks are lane-dense
    (t, D) bf16 slices of the packed projection output; heads are static lane
    slices of width D//h handled one at a time (bounded vreg liveness).
    Mask semantics match masked_fill(mask == 0, -10000)."""
    kb = pl.program_id(2)

    @pl.when(kb == 0)
    def _():
        m_sc[...] = jnp.full_like(m_sc, -1e30)   # finite "minus infinity"
        l_sc[...] = jnp.zeros_like(l_sc)
        acc_sc[...] = jnp.zeros_like(acc_sc)

    q = q_ref[0]                      # (tq, D) bf16
    k = k_ref[0]                      # (tk, D) bf16
    v = v_ref[0]                      # (tk, D) bf16
    tq, D = q.shape
    tk = k.shape[0]
    dk = D // h

    # mask for this (q-tile, kv-tile): pad & (optionally) causal, per batch
    keep = (kpad_ref[0] > 0) & (qpad_ref[0] > 0)          # (1,tk)&(tq,1)->(tq,tk)
    if causal:
        q_pos = pl.program_id(1) * tq + jax.lax.broadcasted_iota(
            jnp.int32, (tq, tk), 0)
        k_pos = kb * tk + jax.lax.broadcasted_iota(jnp.int32, (tq, tk), 1)
        keep = keep & (k_pos <= q_pos)
    neg = jnp.float32(-10000.0)

    for g in range(h):                 # per-head online-softmax update
        lo, hi = g * dk, (g + 1) * dk
        qh = q[:, lo:hi] * jnp.bfloat16(scale)        # fold 1/sqrt(dk) into q
        s = jnp.einsum("qd,kd->qk", qh, k[:, lo:hi],
                       preferred_element_type=jnp.float32)
        s = jnp.where(keep, s, neg)
        m_old = m_sc[g]                                # (tq, 1)
        m_new = jnp.maximum(m_old, jnp.max(s, axis=-1, keepdims=True))
        alpha = jnp.exp(m_old - m_new)
        p = jnp.exp(s - m_new)
        l_sc[g] = alpha * l_sc[g] + jnp.sum(p, axis=-1, keepdims=True)
        acc_sc[:, lo:hi] = alpha * acc_sc[:, lo:hi] + jnp.dot(
            p.astype(jnp.bfloat16), v[:, lo:hi],
            preferred_element_type=jnp.float32)
        m_sc[g] = m_new

    @pl.when(kb == pl.num_programs(2) - 1)
    def _():
        # normalize each head in place, then one lane-dense (tq, D) store.
        # NOTE: approximate EUP reciprocal (~1e-3 rel. err) — fine for inference.
        for g in range(h):
            lo, hi = g * dk, (g + 1) * dk
            acc_sc[:, lo:hi] = acc_sc[:, lo:hi] * pl.reciprocal(l_sc[g],
                                                                approx=True)
        o_ref[0] = acc_sc[...].astype(o_ref.dtype)


def pallas_attention(q_src, kv_src, q_pad, k_pad, h, d_model, *,
                     q_blk, k_blk, v_blk, causal, tq=256, tk=512):
    """Flash-style MHA over packed projection outputs.

    q_src : (B, Lq, nq*D)  — Q lives at lane block `q_blk` (width D)
    kv_src: (B, Lk, nk*D)  — K at block `k_blk`, V at block `v_blk`
    q_pad : (B, Lq, 1) bf16, k_pad: (B, 1, Lk) bf16 (1 = keep, 0 = pad)
    Returns (B, Lq, D) bf16 head-merged context.
    """
    B, Lq, _ = q_src.shape
    _, Lk, _ = kv_src.shape
    tq = _pick_tile(Lq, tq, (8,))
    tk = _pick_tile(Lk, tk, (256, 128))
    grid = (B, Lq // tq, Lk // tk)
    # TODO(synk): causal fully-masked KV tiles are still visited (kept for exact
    #             reference semantics on fully-padded query rows).
    kern = functools.partial(_flash_mha_kernel, h=h, causal=causal,
                             scale=1.0 / math.sqrt(d_model // h))
    return pl.pallas_call(
        kern,
        out_shape=jax.ShapeDtypeStruct((B, Lq, d_model), jnp.bfloat16),
        grid=grid,
        in_specs=[
            pl.BlockSpec((1, tq, 1), lambda b, qi, kb: (b, qi, 0)),
            pl.BlockSpec((1, 1, tk), lambda b, qi, kb: (b, 0, kb)),
            pl.BlockSpec((1, tq, d_model), lambda b, qi, kb: (b, qi, q_blk)),
            pl.BlockSpec((1, tk, d_model), lambda b, qi, kb: (b, kb, k_blk)),
            pl.BlockSpec((1, tk, d_model), lambda b, qi, kb: (b, kb, v_blk)),
        ],
        out_specs=pl.BlockSpec((1, tq, d_model), lambda b, qi, kb: (b, qi, 0)),
        scratch_shapes=[pltpu.VMEM((h, tq, 1), jnp.float32),
                        pltpu.VMEM((h, tq, 1), jnp.float32),
                        pltpu.VMEM((tq, d_model), jnp.float32)],
        compiler_params=pltpu.CompilerParams(
            dimension_semantics=("parallel", "parallel", "arbitrary")),
    )(q_pad, k_pad, q_src, kv_src, kv_src)


# ---------------------------------------------------------------------------
# Model glue (parameter init, embedding, forward)
# ---------------------------------------------------------------------------

def sinusoidal_positional_encoding(max_len, d_model):
    pos = jnp.arange(max_len, dtype=jnp.float32)[:, None]
    i2 = jnp.arange(0, d_model, 2, dtype=jnp.float32)[None, :]
    angle = pos / jnp.power(10000.0, i2 / d_model)
    pe = jnp.zeros((max_len, d_model), dtype=jnp.float32)
    pe = pe.at[:, 0::2].set(jnp.sin(angle))
    pe = pe.at[:, 1::2].set(jnp.cos(angle))
    return pe


def init_decoder_params(key, dec_voc_size, max_len, d_model, d_hidden, h, n_layers):
    def dense(k, fan_in, fan_out):
        kw, kb = jax.random.split(k)
        w = jax.random.normal(kw, (fan_in, fan_out), jnp.float32) / math.sqrt(fan_in)
        b = 0.01 * jax.random.normal(kb, (fan_out,), jnp.float32)
        return w.astype(jnp.bfloat16), b          # weights stored bf16 (MXU inputs)

    def fused_dense(k, fan_in, fan_out, n):       # pack n projections along N
        ws, bs = zip(*[dense(kk, fan_in, fan_out) for kk in jax.random.split(k, n)])
        return jnp.concatenate(ws, axis=1), jnp.concatenate(bs, axis=0)

    keys = jax.random.split(key, 2 + n_layers)
    ones = jnp.ones((d_model,), jnp.float32)
    zeros = jnp.zeros((d_model,), jnp.float32)
    params = {
        "tok_emb": jax.random.normal(keys[0], (dec_voc_size, d_model), jnp.float32) * 0.02,
        "pos_enc": sinusoidal_positional_encoding(max_len, d_model),
        "layers": [],
        "out": dense(keys[1], d_model, dec_voc_size),
    }
    for l in range(n_layers):
        lk = jax.random.split(keys[2 + l], 7)
        params["layers"].append({
            "wqkv": fused_dense(lk[0], d_model, d_model, 3),   # Q|K|V fused
            "wo":   dense(lk[1], d_model, d_model),
            "cq":   dense(lk[2], d_model, d_model),
            "ckv":  fused_dense(lk[3], d_model, d_model, 2),   # cross K|V fused
            "co":   dense(lk[4], d_model, d_model),
            "ff1":  dense(lk[5], d_model, d_hidden),
            "ff2":  dense(lk[6], d_hidden, d_model),
            "ln1": (ones, zeros), "ln2": (ones, zeros), "ln3": (ones, zeros),
        })
    return params


def decoder_forward(params, tgt, enc_src, tgt_pad, src_pad, h):
    """tgt_pad (B,Lt) / src_pad (B,Ls) are 1/0 pad vectors; equivalent masks:
         tgt_mask = causal & tgt_pad[q] & tgt_pad[k]   (B,1,Lt,Lt)
         src_mask = src_pad[k]                         (B,1,1,Ls)
    which is the standard mask construction consumed by this Decoder."""
    B, Lt = tgt.shape
    _, Ls, D = enc_src.shape
    # lane-offset slicing of the packed QKV / KV outputs requires 128-aligned D
    assert D % 128 == 0, "d_model must be a multiple of 128 for packed QKV slicing"

    # --- TransformerEmbedding: gather + positional encoding (dropout = id) ---
    # TODO(synk): embedding gather left to XLA (no clean Pallas gather here).
    x = jnp.take(params["tok_emb"], tgt, axis=0) + params["pos_enc"][:Lt][None, :, :]
    x2d = x.reshape(B * Lt, D).astype(jnp.bfloat16)
    enc2d = enc_src.reshape(B * Ls, D).astype(jnp.bfloat16)

    # compact pad masks (bf16), shaped for in-kernel broadcast
    tq_pad = tgt_pad.reshape(B, Lt, 1).astype(jnp.bfloat16)
    tk_pad = tgt_pad.reshape(B, 1, Lt).astype(jnp.bfloat16)
    sk_pad = src_pad.reshape(B, 1, Ls).astype(jnp.bfloat16)
    ones_q = jnp.ones((B, Lt, 1), jnp.bfloat16)

    for lp in params["layers"]:
        # masked self-attention on the packed (B,Lt,3D) projection;
        # wo projection fused with residual + LN1
        qkv = pallas_linear(x2d, *lp["wqkv"]).reshape(B, Lt, 3 * D)
        ctx = pallas_attention(qkv, qkv, tq_pad, tk_pad, h, D,
                               q_blk=0, k_blk=1, v_blk=2, causal=True)
        x2d = pallas_linear_add_ln(ctx.reshape(B * Lt, D), *lp["wo"], x2d, *lp["ln1"])

        # cross-attention on the packed (B,Ls,2D) K|V projection;
        # co projection fused with residual + LN2
        q = pallas_linear(x2d, *lp["cq"]).reshape(B, Lt, D)
        kv = pallas_linear(enc2d, *lp["ckv"]).reshape(B, Ls, 2 * D)
        ctx = pallas_attention(q, kv, ones_q, sk_pad, h, D,
                               q_blk=0, k_blk=0, v_blk=1, causal=False)
        x2d = pallas_linear_add_ln(ctx.reshape(B * Lt, D), *lp["co"], x2d, *lp["ln2"])

        # position-wise FFN; ff2 projection fused with residual + LN3
        hdn = pallas_linear(x2d, *lp["ff1"], relu=True)
        x2d = pallas_linear_add_ln(hdn, *lp["ff2"], x2d, *lp["ln3"])

    # final vocab projection kept in f32 (module output precision)
    logits = pallas_linear(x2d, *params["out"], out_dtype=jnp.float32)
    return logits.reshape(B, Lt, -1)


# ---------------------------------------------------------------------------
# Demo
# ---------------------------------------------------------------------------

if __name__ == "__main__":
    dec_voc_size, max_len = 32, 16
    d_model, d_hidden, h, n_layers = 128, 256, 4, 2
    B, Lt, Ls = 2, 8, 8

    key = jax.random.PRNGKey(0)
    kp, kt, ke = jax.random.split(key, 3)

    params = init_decoder_params(kp, dec_voc_size, max_len, d_model, d_hidden, h, n_layers)

    tgt = jax.random.randint(kt, (B, Lt), 0, dec_voc_size, dtype=jnp.int32)
    enc_src = jax.random.normal(ke, (B, Ls, d_model), jnp.float32)

    # pad vectors: 1.0 = real token, 0.0 = padding
    tgt_pad = jnp.ones((B, Lt), jnp.float32).at[1, Lt - 2:].set(0.0)  # pad last 2 of b=1
    src_pad = jnp.ones((B, Ls), jnp.float32).at[0, Ls - 1:].set(0.0)  # pad last 1 of b=0

    fwd = jax.jit(functools.partial(decoder_forward, h=h))
    out = fwd(params, tgt, enc_src, tgt_pad, src_pad)
    out = jax.block_until_ready(out)

    assert out.shape == (B, Lt, dec_voc_size), out.shape
    assert bool(jnp.all(jnp.isfinite(out)))
    print("KERNEL_OK")
</pallas_src>

<mosaic_0001>
module attributes {stable_mosaic.version = 11 : i64} {
  func.func @_linear_kernel(%arg0: i32, %arg1: i32, %arg2: i32, %arg3: memref<16x128xbf16, #tpu.memory_space<vmem>>, %arg4: memref<128x384xbf16, #tpu.memory_space<vmem>>, %arg5: memref<1x384xf32, #tpu.memory_space<vmem>>, %arg6: memref<16x384xbf16, #tpu.memory_space<vmem>>, %arg7: memref<16x384xf32, #tpu.memory_space<vmem>>) attributes {dimension_semantics = [#tpu.dimension_semantics<parallel>, #tpu.dimension_semantics<parallel>, #tpu.dimension_semantics<arbitrary>], iteration_bounds = array<i64: 1, 1, 1>, scalar_prefetch = 0 : i64, scratch_operands = 1 : i64, tpu.core_type = #tpu.core_type<tc>, window_params = [{transform_indices = @transform_0, window_bounds = array<i64: 16, 128>}, {transform_indices = @transform_1, window_bounds = array<i64: 128, 384>}, {transform_indices = @transform_2, window_bounds = array<i64: 1, 384>}, {transform_indices = @transform_3, window_bounds = array<i64: 16, 384>}]} {
    %c0_i32 = arith.constant 0 : i32
    %0 = arith.cmpi eq, %arg2, %c0_i32 : i32
    %1 = arith.extui %0 : i1 to i32
    %c0_i32_0 = arith.constant 0 : i32
    %2 = arith.cmpi ne, %1, %c0_i32_0 : i32
    scf.if %2 {
      %cst_10 = arith.constant 0.000000e+00 : f32
      %12 = vector.broadcast %cst_10 : f32 to vector<16x384xf32>
      %c0_11 = arith.constant 0 : index
      %c0_12 = arith.constant 0 : index
      %13 = vector.load %arg7[%c0_11, %c0_12] : memref<16x384xf32, #tpu.memory_space<vmem>>, vector<16x384xf32>
      tpu.vector_store %arg7[%c0_11, %c0_12], %12 {strides = array<i32>} : memref<16x384xf32, #tpu.memory_space<vmem>>, vector<16x384xf32>,
    } else {
    }
    %c0 = arith.constant 0 : index
    %c0_1 = arith.constant 0 : index
    %3 = vector.load %arg7[%c0, %c0_1] : memref<16x384xf32, #tpu.memory_space<vmem>>, vector<16x384xf32>
    %c0_2 = arith.constant 0 : index
    %c0_3 = arith.constant 0 : index
    %4 = vector.load %arg3[%c0_2, %c0_3] : memref<16x128xbf16, #tpu.memory_space<vmem>>, vector<16x128xbf16>
    %c0_4 = arith.constant 0 : index
    %c0_5 = arith.constant 0 : index
    %5 = vector.load %arg4[%c0_4, %c0_5] : memref<128x384xbf16, #tpu.memory_space<vmem>>, vector<128x384xbf16>
    %cst = arith.constant dense<0.000000e+00> : vector<16x384xf32>
    %6 = tpu.matmul %4, %5, %cst {dimension_numbers = #tpu.dot_dimension_numbers<[1], [0], [0], [1], [0, 0, 1, 1], [], []>} : vector<16x128xbf16>, vector<128x384xbf16>, vector<16x384xf32> -> vector<16x384xf32>
    %7 = arith.addf %3, %6 : vector<16x384xf32>
    %c0_6 = arith.constant 0 : index
    %c0_7 = arith.constant 0 : index
    %8 = vector.load %arg7[%c0_6, %c0_7] : memref<16x384xf32, #tpu.memory_space<vmem>>, vector<16x384xf32>
    tpu.vector_store %arg7[%c0_6, %c0_7], %7 {strides = array<i32>} : memref<16x384xf32, #tpu.memory_space<vmem>>, vector<16x384xf32>,
    %c0_i32_8 = arith.constant 0 : i32
    %9 = arith.cmpi eq, %arg2, %c0_i32_8 : i32
    %10 = arith.extui %9 : i1 to i32
    %c0_i32_9 = arith.constant 0 : i32
    %11 = arith.cmpi ne, %10, %c0_i32_9 : i32
    scf.if %11 {
      %c0_10 = arith.constant 0 : index
      %c0_11 = arith.constant 0 : index
      %12 = vector.load %arg7[%c0_10, %c0_11] : memref<16x384xf32, #tpu.memory_space<vmem>>, vector<16x384xf32>
      %c0_12 = arith.constant 0 : index
      %c0_13 = arith.constant 0 : index
      %13 = vector.load %arg5[%c0_12, %c0_13] : memref<1x384xf32, #tpu.memory_space<vmem>>, vector<1x384xf32>
      %14 = vector.broadcast %13 : vector<1x384xf32> to vector<16x384xf32>
      %15 = arith.addf %12, %14 : vector<16x384xf32>
      %16 = arith.truncf %15 : vector<16x384xf32> to vector<16x384xbf16>
      %c0_14 = arith.constant 0 : index
      %c0_15 = arith.constant 0 : index
      %17 = vector.load %arg6[%c0_14, %c0_15] : memref<16x384xbf16, #tpu.memory_space<vmem>>, vector<16x384xbf16>
      tpu.vector_store %arg6[%c0_14, %c0_15], %16 {strides = array<i32>} : memref<16x384xbf16, #tpu.memory_space<vmem>>, vector<16x384xbf16>,
    } else {
    }
    return
  }
  func.func @transform_0(%arg0: i32, %arg1: i32, %arg2: i32) -> (i32, i32) {
    %c0_i32 = arith.constant 0 : i32
    return %arg0, %arg2 : i32, i32
  }
  func.func @transform_1(%arg0: i32, %arg1: i32, %arg2: i32) -> (i32, i32) {
    %c0_i32 = arith.constant 0 : i32
    return %arg2, %arg1 : i32, i32
  }
  func.func @transform_2(%arg0: i32, %arg1: i32, %arg2: i32) -> (i32, i32) {
    %c0_i32 = arith.constant 0 : i32
    %c0_i32_0 = arith.constant 0 : i32
    return %c0_i32, %arg1 : i32, i32
  }
  func.func @transform_3(%arg0: i32, %arg1: i32, %arg2: i32) -> (i32, i32) {
    %c0_i32 = arith.constant 0 : i32
    return %arg0, %arg1 : i32, i32
  }
}

module attributes {stable_mosaic.version = 11 : i64} {
  func.func @_flash_mha_kernel(%arg0: i32, %arg1: i32, %arg2: i32, %arg3: memref<1x8x1xbf16, #tpu.memory_space<vmem>>, %arg4: memref<1x1x8xbf16, #tpu.memory_space<vmem>>, %arg5: memref<1x8x128xbf16, #tpu.memory_space<vmem>>, %arg6: memref<1x8x128xbf16, #tpu.memory_space<vmem>>, %arg7: memref<1x8x128xbf16, #tpu.memory_space<vmem>>, %arg8: memref<1x8x128xbf16, #tpu.memory_space<vmem>>, %arg9: memref<4x8x1xf32, #tpu.memory_space<vmem>>, %arg10: memref<4x8x1xf32, #tpu.memory_space<vmem>>, %arg11: memref<8x128xf32, #tpu.memory_space<vmem>>) attributes {dimension_semantics = [#tpu.dimension_semantics<parallel>, #tpu.dimension_semantics<parallel>, #tpu.dimension_semantics<arbitrary>], iteration_bounds = array<i64: 2, 1, 1>, scalar_prefetch = 0 : i64, scratch_operands = 3 : i64, tpu.core_type = #tpu.core_type<tc>, window_params = [{transform_indices = @transform_0, window_bounds = array<i64: 1, 8, 1>}, {transform_indices = @transform_1, window_bounds = array<i64: 1, 1, 8>}, {transform_indices = @transform_2, window_bounds = array<i64: 1, 8, 128>}, {transform_indices = @transform_3, window_bounds = array<i64: 1, 8, 128>}, {transform_indices = @transform_4, window_bounds = array<i64: 1, 8, 128>}, {transform_indices = @transform_5, window_bounds = array<i64: 1, 8, 128>}]} {
    %c0_i32 = arith.constant 0 : i32
    %0 = arith.cmpi eq, %arg2, %c0_i32 : i32
    %1 = arith.extui %0 : i1 to i32
    %c0_i32_0 = arith.constant 0 : i32
    %2 = arith.cmpi ne, %1, %c0_i32_0 : i32
    scf.if %2 {
      %cst_101 = arith.constant -1.000000e+30 : f32
      %181 = vector.broadcast %cst_101 : f32 to vector<4x8x1xf32>
      %c0_102 = arith.constant 0 : index
      %c0_103 = arith.constant 0 : index
      %c0_104 = arith.constant 0 : index
      %182 = vector.load %arg9[%c0_102, %c0_103, %c0_104] : memref<4x8x1xf32, #tpu.memory_space<vmem>>, vector<4x8x1xf32>
      tpu.vector_store %arg9[%c0_102, %c0_103, %c0_104], %181 {strides = array<i32>} : memref<4x8x1xf32, #tpu.memory_space<vmem>>, vector<4x8x1xf32>,
      %cst_105 = arith.constant 0.000000e+00 : f32
      %183 = vector.broadcast %cst_105 : f32 to vector<4x8x1xf32>
      %c0_106 = arith.constant 0 : index
      %c0_107 = arith.constant 0 : index
      %c0_108 = arith.constant 0 : index
      %184 = vector.load %arg10[%c0_106, %c0_107, %c0_108] : memref<4x8x1xf32, #tpu.memory_space<vmem>>, vector<4x8x1xf32>
      tpu.vector_store %arg10[%c0_106, %c0_107, %c0_108], %183 {strides = array<i32>} : memref<4x8x1xf32, #tpu.memory_space<vmem>>, vector<4x8x1xf32>,
      %cst_109 = arith.constant 0.000000e+00 : f32
      %185 = vector.broadcast %cst_109 : f32 to vector<8x128xf32>
      %c0_110 = arith.constant 0 : index
      %c0_111 = arith.constant 0 : index
      %186 = vector.load %arg11[%c0_110, %c0_111] : memref<8x128xf32, #tpu.memory_space<vmem>>, vector<8x128xf32>
      tpu.vector_store %arg11[%c0_110, %c0_111], %185 {strides = array<i32>} : memref<8x128xf32, #tpu.memory_space<vmem>>, vector<8x128xf32>,
    } else {
    }
    %c0 = arith.constant 0 : index
    %c0_1 = arith.constant 0 : index
    %c0_2 = arith.constant 0 : index
    %3 = vector.load %arg5[%c0, %c0_1, %c0_2] : memref<1x8x128xbf16, #tpu.memory_space<vmem>>, vector<1x8x128xbf16>
    %4 = vector.shape_cast %3 : vector<1x8x128xbf16> to vector<8x128xbf16>
    %c0_3 = arith.constant 0 : index
    %c0_4 = arith.constant 0 : index
    %c0_5 = arith.constant 0 : index
    %5 = vector.load %arg6[%c0_3, %c0_4, %c0_5] : memref<1x8x128xbf16, #tpu.memory_space<vmem>>, vector<1x8x128xbf16>
    %6 = vector.shape_cast %5 : vector<1x8x128xbf16> to vector<8x128xbf16>
    %c0_6 = arith.constant 0 : index
    %c0_7 = arith.constant 0 : index
    %c0_8 = arith.constant 0 : index
    %7 = vector.load %arg7[%c0_6, %c0_7, %c0_8] : memref<1x8x128xbf16, #tpu.memory_space<vmem>>, vector<1x8x128xbf16>
    %8 = vector.shape_cast %7 : vector<1x8x128xbf16> to vector<8x128xbf16>
    %c0_9 = arith.constant 0 : index
    %c0_10 = arith.constant 0 : index
    %c0_11 = arith.constant 0 : index
    %9 = vector.load %arg4[%c0_9, %c0_10, %c0_11] : memref<1x1x8xbf16, #tpu.memory_space<vmem>>, vector<1x1x8xbf16>
    %10 = vector.shape_cast %9 : vector<1x1x8xbf16> to vector<1x8xbf16>
    %cst = arith.constant 0.000000e+00 : bf16
    %11 = vector.broadcast %cst : bf16 to vector<1x8xbf16>
    %12 = arith.cmpf ogt, %10, %11 : vector<1x8xbf16>
    %c0_12 = arith.constant 0 : index
    %c0_13 = arith.constant 0 : index
    %c0_14 = arith.constant 0 : index
    %13 = vector.load %arg3[%c0_12, %c0_13, %c0_14] : memref<1x8x1xbf16, #tpu.memory_space<vmem>>, vector<1x8x1xbf16>
    %14 = vector.shape_cast %13 : vector<1x8x1xbf16> to vector<8x1xbf16>
    %cst_15 = arith.constant 0.000000e+00 : bf16
    %15 = vector.broadcast %cst_15 : bf16 to vector<8x1xbf16>
    %16 = arith.cmpf ogt, %14, %15 : vector<8x1xbf16>
    %17 = vector.broadcast %12 : vector<1x8xi1> to vector<8x8xi1>
    %18 = vector.broadcast %16 : vector<8x1xi1> to vector<8x8xi1>
    %19 = arith.andi %17, %18 : vector<8x8xi1>
    %c8_i32 = arith.constant 8 : i32
    %20 = arith.muli %arg1, %c8_i32 : i32
    %21 = tpu.iota {dimensions = array<i32: 0>} : vector<8x8xi32>
    %22 = vector.broadcast %20 : i32 to vector<8x8xi32>
    %23 = arith.addi %22, %21 : vector<8x8xi32>
    %c8_i32_16 = arith.constant 8 : i32
    %24 = arith.muli %arg2, %c8_i32_16 : i32
    %25 = tpu.iota {dimensions = array<i32: 1>} : vector<8x8xi32>
    %26 = vector.broadcast %24 : i32 to vector<8x8xi32>
    %27 = arith.addi %26, %25 : vector<8x8xi32>
    %28 = arith.cmpi sle, %27, %23 : vector<8x8xi32>
    %29 = arith.andi %19, %28 : vector<8x8xi1>
    %30 = vector.extract_strided_slice %4 {offsets = [0, 0], sizes = [8, 32], strides = [1, 1]} : vector<8x128xbf16> to vector<8x32xbf16>
    %cst_17 = arith.constant 1.767580e-01 : bf16
    %31 = vector.broadcast %cst_17 : bf16 to vector<8x32xbf16>
    %32 = arith.mulf %30, %31 : vector<8x32xbf16>
    %33 = vector.extract_strided_slice %6 {offsets = [0, 0], sizes = [8, 32], strides = [1, 1]} : vector<8x128xbf16> to vector<8x32xbf16>
    "tpu.trace_start"() <{level = 10 : i32, message = "qd,kd->qk"}> : () -> ()
    %cst_18 = arith.constant dense<0.000000e+00> : vector<8x8xf32>
    %34 = tpu.matmul %32, %33, %cst_18 {dimension_numbers = #tpu.dot_dimension_numbers<[1], [1], [0], [0], [0, 0, 1, 0], [], []>} : vector<8x32xbf16>, vector<8x32xbf16>, vector<8x8xf32> -> vector<8x8xf32>
    %cst_19 = arith.constant -1.000000e+04 : f32
    "tpu.trace_stop"() : () -> ()
    %35 = vector.broadcast %cst_19 : f32 to vector<8x8xf32>
    %36 = arith.select %29, %34, %35 : vector<8x8xi1>, vector<8x8xf32>
    %c0_20 = arith.constant 0 : index
    %c0_21 = arith.constant 0 : index
    %c0_22 = arith.constant 0 : index
    %37 = vector.load %arg9[%c0_20, %c0_21, %c0_22] : memref<4x8x1xf32, #tpu.memory_space<vmem>>, vector<1x8x1xf32>
    %38 = vector.shape_cast %37 : vector<1x8x1xf32> to vector<8x1xf32>
    %cst_23 = arith.constant dense<0xFF800000> : vector<8xf32>
    %39 = vector.multi_reduction <maximumf>, %36, %cst_23 [1] : vector<8x8xf32> to vector<8xf32>
    %40 = vector.shape_cast %39 : vector<8xf32> to vector<8x1xf32>
    %41 = arith.maximumf %38, %40 : vector<8x1xf32>
    %42 = arith.subf %38, %41 : vector<8x1xf32>
    %43 = math.exp %42 : vector<8x1xf32>
    %44 = vector.broadcast %41 : vector<8x1xf32> to vector<8x8xf32>
    %45 = arith.subf %36, %44 : vector<8x8xf32>
    %46 = math.exp %45 : vector<8x8xf32>
    %c0_24 = arith.constant 0 : index
    %c0_25 = arith.constant 0 : index
    %c0_26 = arith.constant 0 : index
    %47 = vector.load %arg10[%c0_24, %c0_25, %c0_26] : memref<4x8x1xf32, #tpu.memory_space<vmem>>, vector<1x8x1xf32>
    %48 = vector.shape_cast %47 : vector<1x8x1xf32> to vector<8x1xf32>
    %49 = arith.mulf %43, %48 : vector<8x1xf32>
    %cst_27 = arith.constant dense<0.000000e+00> : vector<8xf32>
    %50 = vector.multi_reduction <add>, %46, %cst_27 [1] : vector<8x8xf32> to vector<8xf32>
    %51 = vector.shape_cast %50 : vector<8xf32> to vector<8x1xf32>
    %52 = arith.addf %49, %51 : vector<8x1xf32>
    %c0_28 = arith.constant 0 : index
    %c0_29 = arith.constant 0 : index
    %c0_30 = arith.constant 0 : index
    %53 = vector.load %arg10[%c0_28, %c0_29, %c0_30] : memref<4x8x1xf32, #tpu.memory_space<vmem>>, vector<1x8x1xf32>
    %54 = vector.shape_cast %53 : vector<1x8x1xf32> to vector<8x1xf32>
    %55 = vector.shape_cast %52 : vector<8x1xf32> to vector<1x8x1xf32>
    tpu.vector_store %arg10[%c0_28, %c0_29, %c0_30], %55 {strides = array<i32>} : memref<4x8x1xf32, #tpu.memory_space<vmem>>, vector<1x8x1xf32>,
    %c0_31 = arith.constant 0 : index
    %c0_32 = arith.constant 0 : index
    %56 = vector.load %arg11[%c0_31, %c0_32] : memref<8x128xf32, #tpu.memory_space<vmem>>, vector<8x32xf32>
    %57 = vector.broadcast %43 : vector<8x1xf32> to vector<8x32xf32>
    %58 = arith.mulf %57, %56 : vector<8x32xf32>
    %59 = arith.truncf %46 : vector<8x8xf32> to vector<8x8xbf16>
    %60 = vector.extract_strided_slice %8 {offsets = [0, 0], sizes = [8, 32], strides = [1, 1]} : vector<8x128xbf16> to vector<8x32xbf16>
    %cst_33 = arith.constant dense<0.000000e+00> : vector<8x32xf32>
    %61 = tpu.matmul %59, %60, %cst_33 {dimension_numbers = #tpu.dot_dimension_numbers<[1], [0], [0], [1], [0, 0, 1, 1], [], []>} : vector<8x8xbf16>, vector<8x32xbf16>, vector<8x32xf32> -> vector<8x32xf32>
    %62 = arith.addf %58, %61 : vector<8x32xf32>
    %c0_34 = arith.constant 0 : index
    %c0_35 = arith.constant 0 : index
    %63 = vector.load %arg11[%c0_34, %c0_35] : memref<8x128xf32, #tpu.memory_space<vmem>>, vector<8x32xf32>
    tpu.vector_store %arg11[%c0_34, %c0_35], %62 {strides = array<i32>} : memref<8x128xf32, #tpu.memory_space<vmem>>, vector<8x32xf32>,
    %c0_36 = arith.constant 0 : index
    %c0_37 = arith.constant 0 : index
    %c0_38 = arith.constant 0 : index
    %64 = vector.load %arg9[%c0_36, %c0_37, %c0_38] : memref<4x8x1xf32, #tpu.memory_space<vmem>>, vector<1x8x1xf32>
    %65 = vector.shape_cast %64 : vector<1x8x1xf32> to vector<8x1xf32>
    %66 = vector.shape_cast %41 : vector<8x1xf32> to vector<1x8x1xf32>
    tpu.vector_store %arg9[%c0_36, %c0_37, %c0_38], %66 {strides = array<i32>} : memref<4x8x1xf32, #tpu.memory_space<vmem>>, vector<1x8x1xf32>,
    %67 = vector.extract_strided_slice %4 {offsets = [0, 32], sizes = [8, 32], strides = [1, 1]} : vector<8x128xbf16> to vector<8x32xbf16>
    %cst_39 = arith.constant 1.767580e-01 : bf16
    %68 = vector.broadcast %cst_39 : bf16 to vector<8x32xbf16>
    %69 = arith.mulf %67, %68 : vector<8x32xbf16>
    %70 = vector.extract_strided_slice %6 {offsets = [0, 32], sizes = [8, 32], strides = [1, 1]} : vector<8x128xbf16> to vector<8x32xbf16>
    "tpu.trace_start"() <{level = 10 : i32, message = "qd,kd->qk"}> : () -> ()
    %cst_40 = arith.constant dense<0.000000e+00> : vector<8x8xf32>
    %71 = tpu.matmul %69, %70, %cst_40 {dimension_numbers = #tpu.dot_dimension_numbers<[1], [1], [0], [0], [0, 0, 1, 0], [], []>} : vector<8x32xbf16>, vector<8x32xbf16>, vector<8x8xf32> -> vector<8x8xf32>
    %cst_41 = arith.constant -1.000000e+04 : f32
    "tpu.trace_stop"() : () -> ()
    %72 = vector.broadcast %cst_41 : f32 to vector<8x8xf32>
    %73 = arith.select %29, %71, %72 : vector<8x8xi1>, vector<8x8xf32>
    %c1 = arith.constant 1 : index
    %c0_42 = arith.constant 0 : index
    %c0_43 = arith.constant 0 : index
    %74 = vector.load %arg9[%c1, %c0_42, %c0_43] : memref<4x8x1xf32, #tpu.memory_space<vmem>>, vector<1x8x1xf32>
    %75 = vector.shape_cast %74 : vector<1x8x1xf32> to vector<8x1xf32>
    %cst_44 = arith.constant dense<0xFF800000> : vector<8xf32>
    %76 = vector.multi_reduction <maximumf>, %73, %cst_44 [1] : vector<8x8xf32> to vector<8xf32>
    %77 = vector.shape_cast %76 : vector<8xf32> to vector<8x1xf32>
    %78 = arith.maximumf %75, %77 : vector<8x1xf32>
    %79 = arith.subf %75, %78 : vector<8x1xf32>
    %80 = math.exp %79 : vector<8x1xf32>
    %81 = vector.broadcast %78 : vector<8x1xf32> to vector<8x8xf32>
    %82 = arith.subf %73, %81 : vector<8x8xf32>
    %83 = math.exp %82 : vector<8x8xf32>
    %c1_45 = arith.constant 1 : index
    %c0_46 = arith.constant 0 : index
    %c0_47 = arith.constant 0 : index
    %84 = vector.load %arg10[%c1_45, %c0_46, %c0_47] : memref<4x8x1xf32, #tpu.memory_space<vmem>>, vector<1x8x1xf32>
    %85 = vector.shape_cast %84 : vector<1x8x1xf32> to vector<8x1xf32>
    %86 = arith.mulf %80, %85 : vector<8x1xf32>
    %cst_48 = arith.constant dense<0.000000e+00> : vector<8xf32>
    %87 = vector.multi_reduction <add>, %83, %cst_48 [1] : vector<8x8xf32> to vector<8xf32>
    %88 = vector.shape_cast %87 : vector<8xf32> to vector<8x1xf32>
    %89 = arith.addf %86, %88 : vector<8x1xf32>
    %c1_49 = arith.constant 1 : index
    %c0_50 = arith.constant 0 : index
    %c0_51 = arith.constant 0 : index
    %90 = vector.load %arg10[%c1_49, %c0_50, %c0_51] : memref<4x8x1xf32, #tpu.memory_space<vmem>>, vector<1x8x1xf32>
    %91 = vector.shape_cast %90 : vector<1x8x1xf32> to vector<8x1xf32>
    %92 = vector.shape_cast %89 : vector<8x1xf32> to vector<1x8x1xf32>
    tpu.vector_store %arg10[%c1_49, %c0_50, %c0_51], %92 {strides = array<i32>} : memref<4x8x1xf32, #tpu.memory_space<vmem>>, vector<1x8x1xf32>,
    %c0_52 = arith.constant 0 : index
    %c32 = arith.constant 32 : index
    %93 = vector.load %arg11[%c0_52, %c32] : memref<8x128xf32, #tpu.memory_space<vmem>>, vector<8x32xf32>
    %94 = vector.broadcast %80 : vector<8x1xf32> to vector<8x32xf32>
    %95 = arith.mulf %94, %93 : vector<8x32xf32>
    %96 = arith.truncf %83 : vector<8x8xf32> to vector<8x8xbf16>
    %97 = vector.extract_strided_slice %8 {offsets = [0, 32], sizes = [8, 32], strides = [1, 1]} : vector<8x128xbf16> to vector<8x32xbf16>
    %cst_53 = arith.constant dense<0.000000e+00> : vector<8x32xf32>
    %98 = tpu.matmul %96, %97, %cst_53 {dimension_numbers = #tpu.dot_dimension_numbers<[1], [0], [0], [1], [0, 0, 1, 1], [], []>} : vector<8x8xbf16>, vector<8x32xbf16>, vector<8x32xf32> -> vector<8x32xf32>
    %99 = arith.addf %95, %98 : vector<8x32xf32>
    %c0_54 = arith.constant 0 : index
    %c32_55 = arith.constant 32 : index
    %100 = vector.load %arg11[%c0_54, %c32_55] : memref<8x128xf32, #tpu.memory_space<vmem>>, vector<8x32xf32>
    tpu.vector_store %arg11[%c0_54, %c32_55], %99 {strides = array<i32>} : memref<8x128xf32, #tpu.memory_space<vmem>>, vector<8x32xf32>,
    %c1_56 = arith.constant 1 : index
    %c0_57 = arith.constant 0 : index
    %c0_58 = arith.constant 0 : index
    %101 = vector.load %arg9[%c1_56, %c0_57, %c0_58] : memref<4x8x1xf32, #tpu.memory_space<vmem>>, vector<1x8x1xf32>
    %102 = vector.shape_cast %101 : vector<1x8x1xf32> to vector<8x1xf32>
    %103 = vector.shape_cast %78 : vector<8x1xf32> to vector<1x8x1xf32>
    tpu.vector_store %arg9[%c1_56, %c0_57, %c0_58], %103 {strides = array<i32>} : memref<4x8x1xf32, #tpu.memory_space<vmem>>, vector<1x8x1xf32>,
    %104 = vector.extract_strided_slice %4 {offsets = [0, 64], sizes = [8, 32], strides = [1, 1]} : vector<8x128xbf16> to vector<8x32xbf16>
    %cst_59 = arith.constant 1.767580e-01 : bf16
    %105 = vector.broadcast %cst_59 : bf16 to vector<8x32xbf16>
    %106 = arith.mulf %104, %105 : vector<8x32xbf16>
    %107 = vector.extract_strided_slice %6 {offsets = [0, 64], sizes = [8, 32], strides = [1, 1]} : vector<8x128xbf16> to vector<8x32xbf16>
    "tpu.trace_start"() <{level = 10 : i32, message = "qd,kd->qk"}> : () -> ()
    %cst_60 = arith.constant dense<0.000000e+00> : vector<8x8xf32>
    %108 = tpu.matmul %106, %107, %cst_60 {dimension_numbers = #tpu.dot_dimension_numbers<[1], [1], [0], [0], [0, 0, 1, 0], [], []>} : vector<8x32xbf16>, vector<8x32xbf16>, vector<8x8xf32> -> vector<8x8xf32>
    %cst_61 = arith.constant -1.000000e+04 : f32
    "tpu.trace_stop"() : () -> ()
    %109 = vector.broadcast %cst_61 : f32 to vector<8x8xf32>
    %110 = arith.select %29, %108, %109 : vector<8x8xi1>, vector<8x8xf32>
    %c2 = arith.constant 2 : index
    %c0_62 = arith.constant 0 : index
    %c0_63 = arith.constant 0 : index
    %111 = vector.load %arg9[%c2, %c0_62, %c0_63] : memref<4x8x1xf32, #tpu.memory_space<vmem>>, vector<1x8x1xf32>
    %112 = vector.shape_cast %111 : vector<1x8x1xf32> to vector<8x1xf32>
    %cst_64 = arith.constant dense<0xFF800000> : vector<8xf32>
    %113 = vector.multi_reduction <maximumf>, %110, %cst_64 [1] : vector<8x8xf32> to vector<8xf32>
    %114 = vector.shape_cast %113 : vector<8xf32> to vector<8x1xf32>
    %115 = arith.maximumf %112, %114 : vector<8x1xf32>
    %116 = arith.subf %112, %115 : vector<8x1xf32>
    %117 = math.exp %116 : vector<8x1xf32>
    %118 = vector.broadcast %115 : vector<8x1xf32> to vector<8x8xf32>
    %119 = arith.subf %110, %118 : vector<8x8xf32>
    %120 = math.exp %119 : vector<8x8xf32>
    %c2_65 = arith.constant 2 : index
    %c0_66 = arith.constant 0 : index
    %c0_67 = arith.constant 0 : index
    %121 = vector.load %arg10[%c2_65, %c0_66, %c0_67] : memref<4x8x1xf32, #tpu.memory_space<vmem>>, vector<1x8x1xf32>
    %122 = vector.shape_cast %121 : vector<1x8x1xf32> to vector<8x1xf32>
    %123 = arith.mulf %117, %122 : vector<8x1xf32>
    %cst_68 = arith.constant dense<0.000000e+00> : vector<8xf32>
    %124 = vector.multi_reduction <add>, %120, %cst_68 [1] : vector<8x8xf32> to vector<8xf32>
    %125 = vector.shape_cast %124 : vector<8xf32> to vector<8x1xf32>
    %126 = arith.addf %123, %125 : vector<8x1xf32>
    %c2_69 = arith.constant 2 : index
    %c0_70 = arith.constant 0 : index
    %c0_71 = arith.constant 0 : index
    %127 = vector.load %arg10[%c2_69, %c0_70, %c0_71] : memref<4x8x1xf32, #tpu.memory_space<vmem>>, vector<1x8x1xf32>
    %128 = vector.shape_cast %127 : vector<1x8x1xf32> to vector<8x1xf32>
    %129 = vector.shape_cast %126 : vector<8x1xf32> to vector<1x8x1xf32>
    tpu.vector_store %arg10[%c2_69, %c0_70, %c0_71], %129 {strides = array<i32>} : memref<4x8x1xf32, #tpu.memory_space<vmem>>, vector<1x8x1xf32>,
    %c0_72 = arith.constant 0 : index
    %c64 = arith.constant 64 : index
    %130 = vector.load %arg11[%c0_72, %c64] : memref<8x128xf32, #tpu.memory_space<vmem>>, vector<8x32xf32>
    %131 = vector.broadcast %117 : vector<8x1xf32> to vector<8x32xf32>
    %132 = arith.mulf %131, %130 : vector<8x32xf32>
    %133 = arith.truncf %120 : vector<8x8xf32> to vector<8x8xbf16>
    %134 = vector.extract_strided_slice %8 {offsets = [0, 64], sizes = [8, 32], strides = [1, 1]} : vector<8x128xbf16> to vector<8x32xbf16>
    %cst_73 = arith.constant dense<0.000000e+00> : vector<8x32xf32>
    %135 = tpu.matmul %133, %134, %cst_73 {dimension_numbers = #tpu.dot_dimension_numbers<[1], [0], [0], [1], [0, 0, 1, 1], [], []>} : vector<8x8xbf16>, vector<8x32xbf16>, vector<8x32xf32> -> vector<8x32xf32>
    %136 = arith.addf %132, %135 : vector<8x32xf32>
    %c0_74 = arith.constant 0 : index
    %c64_75 = arith.constant 64 : index
    %137 = vector.load %arg11[%c0_74, %c64_75] : memref<8x128xf32, #tpu.memory_space<vmem>>, vector<8x32xf32>
    tpu.vector_store %arg11[%c0_74, %c64_75], %136 {strides = array<i32>} : memref<8x128xf32, #tpu.memory_space<vmem>>, vector<8x32xf32>,
    %c2_76 = arith.constant 2 : index
    %c0_77 = arith.constant 0 : index
    %c0_78 = arith.constant 0 : index
    %138 = vector.load %arg9[%c2_76, %c0_77, %c0_78] : memref<4x8x1xf32, #tpu.memory_space<vmem>>, vector<1x8x1xf32>
    %139 = vector.shape_cast %138 : vector<1x8x1xf32> to vector<8x1xf32>
    %140 = vector.shape_cast %115 : vector<8x1xf32> to vector<1x8x1xf32>
    tpu.vector_store %arg9[%c2_76, %c0_77, %c0_78], %140 {strides = array<i32>} : memref<4x8x1xf32, #tpu.memory_space<vmem>>, vector<1x8x1xf32>,
    %141 = vector.extract_strided_slice %4 {offsets = [0, 96], sizes = [8, 32], strides = [1, 1]} : vector<8x128xbf16> to vector<8x32xbf16>
    %cst_79 = arith.constant 1.767580e-01 : bf16
    %142 = vector.broadcast %cst_79 : bf16 to vector<8x32xbf16>
    %143 = arith.mulf %141, %142 : vector<8x32xbf16>
    %144 = vector.extract_strided_slice %6 {offsets = [0, 96], sizes = [8, 32], strides = [1, 1]} : vector<8x128xbf16> to vector<8x32xbf16>
    "tpu.trace_start"() <{level = 10 : i32, message = "qd,kd->qk"}> : () -> ()
    %cst_80 = arith.constant dense<0.000000e+00> : vector<8x8xf32>
    %145 = tpu.matmul %143, %144, %cst_80 {dimension_numbers = #tpu.dot_dimension_numbers<[1], [1], [0], [0], [0, 0, 1, 0], [], []>} : vector<8x32xbf16>, vector<8x32xbf16>, vector<8x8xf32> -> vector<8x8xf32>
    %cst_81 = arith.constant -1.000000e+04 : f32
    "tpu.trace_stop"() : () -> ()
    %146 = vector.broadcast %cst_81 : f32 to vector<8x8xf32>
    %147 = arith.select %29, %145, %146 : vector<8x8xi1>, vector<8x8xf32>
    %c3 = arith.constant 3 : index
    %c0_82 = arith.constant 0 : index
    %c0_83 = arith.constant 0 : index
    %148 = vector.load %arg9[%c3, %c0_82, %c0_83] : memref<4x8x1xf32, #tpu.memory_space<vmem>>, vector<1x8x1xf32>
    %149 = vector.shape_cast %148 : vector<1x8x1xf32> to vector<8x1xf32>
    %cst_84 = arith.constant dense<0xFF800000> : vector<8xf32>
    %150 = vector.multi_reduction <maximumf>, %147, %cst_84 [1] : vector<8x8xf32> to vector<8xf32>
    %151 = vector.shape_cast %150 : vector<8xf32> to vector<8x1xf32>
    %152 = arith.maximumf %149, %151 : vector<8x1xf32>
    %153 = arith.subf %149, %152 : vector<8x1xf32>
    %154 = math.exp %153 : vector<8x1xf32>
    %155 = vector.broadcast %152 : vector<8x1xf32> to vector<8x8xf32>
    %156 = arith.subf %147, %155 : vector<8x8xf32>
    %157 = math.exp %156 : vector<8x8xf32>
    %c3_85 = arith.constant 3 : index
    %c0_86 = arith.constant 0 : index
    %c0_87 = arith.constant 0 : index
    %158 = vector.load %arg10[%c3_85, %c0_86, %c0_87] : memref<4x8x1xf32, #tpu.memory_space<vmem>>, vector<1x8x1xf32>
    %159 = vector.shape_cast %158 : vector<1x8x1xf32> to vector<8x1xf32>
    %160 = arith.mulf %154, %159 : vector<8x1xf32>
    %cst_88 = arith.constant dense<0.000000e+00> : vector<8xf32>
    %161 = vector.multi_reduction <add>, %157, %cst_88 [1] : vector<8x8xf32> to vector<8xf32>
    %162 = vector.shape_cast %161 : vector<8xf32> to vector<8x1xf32>
    %163 = arith.addf %160, %162 : vector<8x1xf32>
    %c3_89 = arith.constant 3 : index
    %c0_90 = arith.constant 0 : index
    %c0_91 = arith.constant 0 : index
    %164 = vector.load %arg10[%c3_89, %c0_90, %c0_91] : memref<4x8x1xf32, #tpu.memory_space<vmem>>, vector<1x8x1xf32>
    %165 = vector.shape_cast %164 : vector<1x8x1xf32> to vector<8x1xf32>
    %166 = vector.shape_cast %163 : vector<8x1xf32> to vector<1x8x1xf32>
    tpu.vector_store %arg10[%c3_89, %c0_90, %c0_91], %166 {strides = array<i32>} : memref<4x8x1xf32, #tpu.memory_space<vmem>>, vector<1x8x1xf32>,
    %c0_92 = arith.constant 0 : index
    %c96 = arith.constant 96 : index
    %167 = vector.load %arg11[%c0_92, %c96] : memref<8x128xf32, #tpu.memory_space<vmem>>, vector<8x32xf32>
    %168 = vector.broadcast %154 : vector<8x1xf32> to vector<8x32xf32>
    %169 = arith.mulf %168, %167 : vector<8x32xf32>
    %170 = arith.truncf %157 : vector<8x8xf32> to vector<8x8xbf16>
    %171 = vector.extract_strided_slice %8 {offsets = [0, 96], sizes = [8, 32], strides = [1, 1]} : vector<8x128xbf16> to vector<8x32xbf16>
    %cst_93 = arith.constant dense<0.000000e+00> : vector<8x32xf32>
    %172 = tpu.matmul %170, %171, %cst_93 {dimension_numbers = #tpu.dot_dimension_numbers<[1], [0], [0], [1], [0, 0, 1, 1], [], []>} : vector<8x8xbf16>, vector<8x32xbf16>, vector<8x32xf32> -> vector<8x32xf32>
    %173 = arith.addf %169, %172 : vector<8x32xf32>
    %c0_94 = arith.constant 0 : index
    %c96_95 = arith.constant 96 : index
    %174 = vector.load %arg11[%c0_94, %c96_95] : memref<8x128xf32, #tpu.memory_space<vmem>>, vector<8x32xf32>
    tpu.vector_store %arg11[%c0_94, %c96_95], %173 {strides = array<i32>} : memref<8x128xf32, #tpu.memory_space<vmem>>, vector<8x32xf32>,
    %c3_96 = arith.constant 3 : index
    %c0_97 = arith.constant 0 : index
    %c0_98 = arith.constant 0 : index
    %175 = vector.load %arg9[%c3_96, %c0_97, %c0_98] : memref<4x8x1xf32, #tpu.memory_space<vmem>>, vector<1x8x1xf32>
    %176 = vector.shape_cast %175 : vector<1x8x1xf32> to vector<8x1xf32>
    %177 = vector.shape_cast %152 : vector<8x1xf32> to vector<1x8x1xf32>
    tpu.vector_store %arg9[%c3_96, %c0_97, %c0_98], %177 {strides = array<i32>} : memref<4x8x1xf32, #tpu.memory_space<vmem>>, vector<1x8x1xf32>,
    %c0_i32_99 = arith.constant 0 : i32
    %178 = arith.cmpi eq, %arg2, %c0_i32_99 : i32
    %179 = arith.extui %178 : i1 to i32
    %c0_i32_100 = arith.constant 0 : i32
    %180 = arith.cmpi ne, %179, %c0_i32_100 : i32
    scf.if %180 {
      %c0_101 = arith.constant 0 : index
      %c0_102 = arith.constant 0 : index
      %181 = vector.load %arg11[%c0_101, %c0_102] : memref<8x128xf32, #tpu.memory_space<vmem>>, vector<8x32xf32>
      %c0_103 = arith.constant 0 : index
      %c0_104 = arith.constant 0 : index
      %c0_105 = arith.constant 0 : index
      %182 = vector.load %arg10[%c0_103, %c0_104, %c0_105] : memref<4x8x1xf32, #tpu.memory_space<vmem>>, vector<1x8x1xf32>
      %183 = vector.shape_cast %182 : vector<1x8x1xf32> to vector<8x1xf32>
      %184 = tpu.reciprocal %183 {approx = true} : vector<8x1xf32> -> vector<8x1xf32>
      %185 = vector.broadcast %184 : vector<8x1xf32> to vector<8x32xf32>
      %186 = arith.mulf %181, %185 : vector<8x32xf32>
      %c0_106 = arith.constant 0 : index
      %c0_107 = arith.constant 0 : index
      %187 = vector.load %arg11[%c0_106, %c0_107] : memref<8x128xf32, #tpu.memory_space<vmem>>, vector<8x32xf32>
      tpu.vector_store %arg11[%c0_106, %c0_107], %186 {strides = array<i32>} : memref<8x128xf32, #tpu.memory_space<vmem>>, vector<8x32xf32>,
      %c0_108 = arith.constant 0 : index
      %c32_109 = arith.constant 32 : index
      %188 = vector.load %arg11[%c0_108, %c32_109] : memref<8x128xf32, #tpu.memory_space<vmem>>, vector<8x32xf32>
      %c1_110 = arith.constant 1 : index
      %c0_111 = arith.constant 0 : index
      %c0_112 = arith.constant 0 : index
      %189 = vector.load %arg10[%c1_110, %c0_111, %c0_112] : memref<4x8x1xf32, #tpu.memory_space<vmem>>, vector<1x8x1xf32>
      %190 = vector.shape_cast %189 : vector<1x8x1xf32> to vector<8x1xf32>
      %191 = tpu.reciprocal %190 {approx = true} : vector<8x1xf32> -> vector<8x1xf32>
      %192 = vector.broadcast %191 : vector<8x1xf32> to vector<8x32xf32>
      %193 = arith.mulf %188, %192 : vector<8x32xf32>
      %c0_113 = arith.constant 0 : index
      %c32_114 = arith.constant 32 : index
      %194 = vector.load %arg11[%c0_113, %c32_114] : memref<8x128xf32, #tpu.memory_space<vmem>>, vector<8x32xf32>
      tpu.vector_store %arg11[%c0_113, %c32_114], %193 {strides = array<i32>} : memref<8x128xf32, #tpu.memory_space<vmem>>, vector<8x32xf32>,
      %c0_115 = arith.constant 0 : index
      %c64_116 = arith.constant 64 : index
      %195 = vector.load %arg11[%c0_115, %c64_116] : memref<8x128xf32, #tpu.memory_space<vmem>>, vector<8x32xf32>
      %c2_117 = arith.constant 2 : index
      %c0_118 = arith.constant 0 : index
      %c0_119 = arith.constant 0 : index
      %196 = vector.load %arg10[%c2_117, %c0_118, %c0_119] : memref<4x8x1xf32, #tpu.memory_space<vmem>>, vector<1x8x1xf32>
      %197 = vector.shape_cast %196 : vector<1x8x1xf32> to vector<8x1xf32>
      %198 = tpu.reciprocal %197 {approx = true} : vector<8x1xf32> -> vector<8x1xf32>
      %199 = vector.broadcast %198 : vector<8x1xf32> to vector<8x32xf32>
      %200 = arith.mulf %195, %199 : vector<8x32xf32>
      %c0_120 = arith.constant 0 : index
      %c64_121 = arith.constant 64 : index
      %201 = vector.load %arg11[%c0_120, %c64_121] : memref<8x128xf32, #tpu.memory_space<vmem>>, vector<8x32xf32>
      tpu.vector_store %arg11[%c0_120, %c64_121], %200 {strides = array<i32>} : memref<8x128xf32, #tpu.memory_space<vmem>>, vector<8x32xf32>,
      %c0_122 = arith.constant 0 : index
      %c96_123 = arith.constant 96 : index
      %202 = vector.load %arg11[%c0_122, %c96_123] : memref<8x128xf32, #tpu.memory_space<vmem>>, vector<8x32xf32>
      %c3_124 = arith.constant 3 : index
      %c0_125 = arith.constant 0 : index
      %c0_126 = arith.constant 0 : index
      %203 = vector.load %arg10[%c3_124, %c0_125, %c0_126] : memref<4x8x1xf32, #tpu.memory_space<vmem>>, vector<1x8x1xf32>
      %204 = vector.shape_cast %203 : vector<1x8x1xf32> to vector<8x1xf32>
      %205 = tpu.reciprocal %204 {approx = true} : vector<8x1xf32> -> vector<8x1xf32>
      %206 = vector.broadcast %205 : vector<8x1xf32> to vector<8x32xf32>
      %207 = arith.mulf %202, %206 : vector<8x32xf32>
      %c0_127 = arith.constant 0 : index
      %c96_128 = arith.constant 96 : index
      %208 = vector.load %arg11[%c0_127, %c96_128] : memref<8x128xf32, #tpu.memory_space<vmem>>, vector<8x32xf32>
      tpu.vector_store %arg11[%c0_127, %c96_128], %207 {strides = array<i32>} : memref<8x128xf32, #tpu.memory_space<vmem>>, vector<8x32xf32>,
      %c0_129 = arith.constant 0 : index
      %c0_130 = arith.constant 0 : index
      %209 = vector.load %arg11[%c0_129, %c0_130] : memref<8x128xf32, #tpu.memory_space<vmem>>, vector<8x128xf32>
      %210 = arith.truncf %209 : vector<8x128xf32> to vector<8x128xbf16>
      %c0_131 = arith.constant 0 : index
      %c0_132 = arith.constant 0 : index
      %c0_133 = arith.constant 0 : index
      %211 = vector.load %arg8[%c0_131, %c0_132, %c0_133] : memref<1x8x128xbf16, #tpu.memory_space<vmem>>, vector<1x8x128xbf16>
      %212 = vector.shape_cast %211 : vector<1x8x128xbf16> to vector<8x128xbf16>
      %213 = vector.shape_cast %210 : vector<8x128xbf16> to vector<1x8x128xbf16>
      tpu.vector_store %arg8[%c0_131, %c0_132, %c0_133], %213 {strides = array<i32>} : memref<1x8x128xbf16, #tpu.memory_space<vmem>>, vector<1x8x128xbf16>,
    } else {
    }
    return
  }
  func.func @transform_0(%arg0: i32, %arg1: i32, %arg2: i32) -> (i32, i32, i32) {
    %c0_i32 = arith.constant 0 : i32
    %c0_i32_0 = arith.constant 0 : i32
    return %arg0, %arg1, %c0_i32 : i32, i32, i32
  }
  func.func @transform_1(%arg0: i32, %arg1: i32, %arg2: i32) -> (i32, i32, i32) {
    %c0_i32 = arith.constant 0 : i32
    %c0_i32_0 = arith.constant 0 : i32
    return %arg0, %c0_i32, %arg2 : i32, i32, i32
  }
  func.func @transform_2(%arg0: i32, %arg1: i32, %arg2: i32) -> (i32, i32, i32) {
    %c0_i32 = arith.constant 0 : i32
    %c0_i32_0 = arith.constant 0 : i32
    return %arg0, %arg1, %c0_i32 : i32, i32, i32
  }
  func.func @transform_3(%arg0: i32, %arg1: i32, %arg2: i32) -> (i32, i32, i32) {
    %c1_i32 = arith.constant 1 : i32
    %c0_i32 = arith.constant 0 : i32
    return %arg0, %arg2, %c1_i32 : i32, i32, i32
  }
  func.func @transform_4(%arg0: i32, %arg1: i32, %arg2: i32) -> (i32, i32, i32) {
    %c2_i32 = arith.constant 2 : i32
    %c0_i32 = arith.constant 0 : i32
    return %arg0, %arg2, %c2_i32 : i32, i32, i32
  }
  func.func @transform_5(%arg0: i32, %arg1: i32, %arg2: i32) -> (i32, i32, i32) {
    %c0_i32 = arith.constant 0 : i32
    %c0_i32_0 = arith.constant 0 : i32
    return %arg0, %arg1, %c0_i32 : i32, i32, i32
  }
}

module attributes {stable_mosaic.version = 11 : i64} {
  func.func @_linear_kernel(%arg0: i32, %arg1: i32, %arg2: i32, %arg3: memref<16x128xbf16, #tpu.memory_space<vmem>>, %arg4: memref<128x128xbf16, #tpu.memory_space<vmem>>, %arg5: memref<1x128xf32, #tpu.memory_space<vmem>>, %arg6: memref<16x128xbf16, #tpu.memory_space<vmem>>, %arg7: memref<16x128xf32, #tpu.memory_space<vmem>>) attributes {dimension_semantics = [#tpu.dimension_semantics<parallel>, #tpu.dimension_semantics<parallel>, #tpu.dimension_semantics<arbitrary>], iteration_bounds = array<i64: 1, 1, 1>, scalar_prefetch = 0 : i64, scratch_operands = 1 : i64, tpu.core_type = #tpu.core_type<tc>, window_params = [{transform_indices = @transform_0, window_bounds = array<i64: 16, 128>}, {transform_indices = @transform_1, window_bounds = array<i64: 128, 128>}, {transform_indices = @transform_2, window_bounds = array<i64: 1, 128>}, {transform_indices = @transform_3, window_bounds = array<i64: 16, 128>}]} {
    %c0_i32 = arith.constant 0 : i32
    %0 = arith.cmpi eq, %arg2, %c0_i32 : i32
    %1 = arith.extui %0 : i1 to i32
    %c0_i32_0 = arith.constant 0 : i32
    %2 = arith.cmpi ne, %1, %c0_i32_0 : i32
    scf.if %2 {
      %cst_10 = arith.constant 0.000000e+00 : f32
      %12 = vector.broadcast %cst_10 : f32 to vector<16x128xf32>
      %c0_11 = arith.constant 0 : index
      %c0_12 = arith.constant 0 : index
      %13 = vector.load %arg7[%c0_11, %c0_12] : memref<16x128xf32, #tpu.memory_space<vmem>>, vector<16x128xf32>
      tpu.vector_store %arg7[%c0_11, %c0_12], %12 {strides = array<i32>} : memref<16x128xf32, #tpu.memory_space<vmem>>, vector<16x128xf32>,
    } else {
    }
    %c0 = arith.constant 0 : index
    %c0_1 = arith.constant 0 : index
    %3 = vector.load %arg7[%c0, %c0_1] : memref<16x128xf32, #tpu.memory_space<vmem>>, vector<16x128xf32>
    %c0_2 = arith.constant 0 : index
    %c0_3 = arith.constant 0 : index
    %4 = vector.load %arg3[%c0_2, %c0_3] : memref<16x128xbf16, #tpu.memory_space<vmem>>, vector<16x128xbf16>
    %c0_4 = arith.constant 0 : index
    %c0_5 = arith.constant 0 : index
    %5 = vector.load %arg4[%c0_4, %c0_5] : memref<128x128xbf16, #tpu.memory_space<vmem>>, vector<128x128xbf16>
    %cst = arith.constant dense<0.000000e+00> : vector<16x128xf32>
    %6 = tpu.matmul %4, %5, %cst {dimension_numbers = #tpu.dot_dimension_numbers<[1], [0], [0], [1], [0, 0, 1, 1], [], []>} : vector<16x128xbf16>, vector<128x128xbf16>, vector<16x128xf32> -> vector<16x128xf32>
    %7 = arith.addf %3, %6 : vector<16x128xf32>
    %c0_6 = arith.constant 0 : index
    %c0_7 = arith.constant 0 : index
    %8 = vector.load %arg7[%c0_6, %c0_7] : memref<16x128xf32, #tpu.memory_space<vmem>>, vector<16x128xf32>
    tpu.vector_store %arg7[%c0_6, %c0_7], %7 {strides = array<i32>} : memref<16x128xf32, #tpu.memory_space<vmem>>, vector<16x128xf32>,
    %c0_i32_8 = arith.constant 0 : i32
    %9 = arith.cmpi eq, %arg2, %c0_i32_8 : i32
    %10 = arith.extui %9 : i1 to i32
    %c0_i32_9 = arith.constant 0 : i32
    %11 = arith.cmpi ne, %10, %c0_i32_9 : i32
    scf.if %11 {
      %c0_10 = arith.constant 0 : index
      %c0_11 = arith.constant 0 : index
      %12 = vector.load %arg7[%c0_10, %c0_11] : memref<16x128xf32, #tpu.memory_space<vmem>>, vector<16x128xf32>
      %c0_12 = arith.constant 0 : index
      %c0_13 = arith.constant 0 : index
      %13 = vector.load %arg5[%c0_12, %c0_13] : memref<1x128xf32, #tpu.memory_space<vmem>>, vector<1x128xf32>
      %14 = vector.broadcast %13 : vector<1x128xf32> to vector<16x128xf32>
      %15 = arith.addf %12, %14 : vector<16x128xf32>
      %16 = arith.truncf %15 : vector<16x128xf32> to vector<16x128xbf16>
      %c0_14 = arith.constant 0 : index
      %c0_15 = arith.constant 0 : index
      %17 = vector.load %arg6[%c0_14, %c0_15] : memref<16x128xbf16, #tpu.memory_space<vmem>>, vector<16x128xbf16>
      tpu.vector_store %arg6[%c0_14, %c0_15], %16 {strides = array<i32>} : memref<16x128xbf16, #tpu.memory_space<vmem>>, vector<16x128xbf16>,
    } else {
    }
    return
  }
  func.func @transform_0(%arg0: i32, %arg1: i32, %arg2: i32) -> (i32, i32) {
    %c0_i32 = arith.constant 0 : i32
    return %arg0, %arg2 : i32, i32
  }
  func.func @transform_1(%arg0: i32, %arg1: i32, %arg2: i32) -> (i32, i32) {
    %c0_i32 = arith.constant 0 : i32
    return %arg2, %arg1 : i32, i32
  }
  func.func @transform_2(%arg0: i32, %arg1: i32, %arg2: i32) -> (i32, i32) {
    %c0_i32 = arith.constant 0 : i32
    %c0_i32_0 = arith.constant 0 : i32
    return %c0_i32, %arg1 : i32, i32
  }
  func.func @transform_3(%arg0: i32, %arg1: i32, %arg2: i32) -> (i32, i32) {
    %c0_i32 = arith.constant 0 : i32
    return %arg0, %arg1 : i32, i32
  }
}

module attributes {stable_mosaic.version = 11 : i64} {
  func.func @_linear_add_ln_kernel(%arg0: i32, %arg1: i32, %arg2: memref<16x128xbf16, #tpu.memory_space<vmem>>, %arg3: memref<128x128xbf16, #tpu.memory_space<vmem>>, %arg4: memref<1x128xf32, #tpu.memory_space<vmem>>, %arg5: memref<16x128xbf16, #tpu.memory_space<vmem>>, %arg6: memref<1x128xf32, #tpu.memory_space<vmem>>, %arg7: memref<1x128xf32, #tpu.memory_space<vmem>>, %arg8: memref<16x128xbf16, #tpu.memory_space<vmem>>, %arg9: memref<16x128xf32, #tpu.memory_space<vmem>>) attributes {dimension_semantics = [#tpu.dimension_semantics<parallel>, #tpu.dimension_semantics<arbitrary>], iteration_bounds = array<i64: 1, 1>, scalar_prefetch = 0 : i64, scratch_operands = 1 : i64, tpu.core_type = #tpu.core_type<tc>, window_params = [{transform_indices = @transform_0, window_bounds = array<i64: 16, 128>}, {transform_indices = @transform_1, window_bounds = array<i64: 128, 128>}, {pipeline_mode = #tpu.pipeline_mode<synchronous>, transform_indices = @transform_2, window_bounds = array<i64: 1, 128>}, {transform_indices = @transform_3, window_bounds = array<i64: 16, 128>}, {pipeline_mode = #tpu.pipeline_mode<synchronous>, transform_indices = @transform_4, window_bounds = array<i64: 1, 128>}, {pipeline_mode = #tpu.pipeline_mode<synchronous>, transform_indices = @transform_5, window_bounds = array<i64: 1, 128>}, {transform_indices = @transform_6, window_bounds = array<i64: 16, 128>}]} {
    %c0_i32 = arith.constant 0 : i32
    %0 = arith.cmpi eq, %arg1, %c0_i32 : i32
    %1 = arith.extui %0 : i1 to i32
    %c0_i32_0 = arith.constant 0 : i32
    %2 = arith.cmpi ne, %1, %c0_i32_0 : i32
    scf.if %2 {
      %cst_10 = arith.constant 0.000000e+00 : f32
      %12 = vector.broadcast %cst_10 : f32 to vector<16x128xf32>
      %c0_11 = arith.constant 0 : index
      %c0_12 = arith.constant 0 : index
      %13 = vector.load %arg9[%c0_11, %c0_12] : memref<16x128xf32, #tpu.memory_space<vmem>>, vector<16x128xf32>
      tpu.vector_store %arg9[%c0_11, %c0_12], %12 {strides = array<i32>} : memref<16x128xf32, #tpu.memory_space<vmem>>, vector<16x128xf32>,
    } else {
    }
    %c0 = arith.constant 0 : index
    %c0_1 = arith.constant 0 : index
    %3 = vector.load %arg9[%c0, %c0_1] : memref<16x128xf32, #tpu.memory_space<vmem>>, vector<16x128xf32>
    %c0_2 = arith.constant 0 : index
    %c0_3 = arith.constant 0 : index
    %4 = vector.load %arg2[%c0_2, %c0_3] : memref<16x128xbf16, #tpu.memory_space<vmem>>, vector<16x128xbf16>
    %c0_4 = arith.constant 0 : index
    %c0_5 = arith.constant 0 : index
    %5 = vector.load %arg3[%c0_4, %c0_5] : memref<128x128xbf16, #tpu.memory_space<vmem>>, vector<128x128xbf16>
    %cst = arith.constant dense<0.000000e+00> : vector<16x128xf32>
    %6 = tpu.matmul %4, %5, %cst {dimension_numbers = #tpu.dot_dimension_numbers<[1], [0], [0], [1], [0, 0, 1, 1], [], []>} : vector<16x128xbf16>, vector<128x128xbf16>, vector<16x128xf32> -> vector<16x128xf32>
    %7 = arith.addf %3, %6 : vector<16x128xf32>
    %c0_6 = arith.constant 0 : index
    %c0_7 = arith.constant 0 : index
    %8 = vector.load %arg9[%c0_6, %c0_7] : memref<16x128xf32, #tpu.memory_space<vmem>>, vector<16x128xf32>
    tpu.vector_store %arg9[%c0_6, %c0_7], %7 {strides = array<i32>} : memref<16x128xf32, #tpu.memory_space<vmem>>, vector<16x128xf32>,
    %c0_i32_8 = arith.constant 0 : i32
    %9 = arith.cmpi eq, %arg1, %c0_i32_8 : i32
    %10 = arith.extui %9 : i1 to i32
    %c0_i32_9 = arith.constant 0 : i32
    %11 = arith.cmpi ne, %10, %c0_i32_9 : i32
    scf.if %11 {
      %c0_10 = arith.constant 0 : index
      %c0_11 = arith.constant 0 : index
      %12 = vector.load %arg9[%c0_10, %c0_11] : memref<16x128xf32, #tpu.memory_space<vmem>>, vector<16x128xf32>
      %c0_12 = arith.constant 0 : index
      %c0_13 = arith.constant 0 : index
      %13 = vector.load %arg4[%c0_12, %c0_13] : memref<1x128xf32, #tpu.memory_space<vmem>>, vector<1x128xf32>
      %14 = vector.broadcast %13 : vector<1x128xf32> to vector<16x128xf32>
      %15 = arith.addf %12, %14 : vector<16x128xf32>
      %c0_14 = arith.constant 0 : index
      %c0_15 = arith.constant 0 : index
      %16 = vector.load %arg5[%c0_14, %c0_15] : memref<16x128xbf16, #tpu.memory_space<vmem>>, vector<16x128xbf16>
      %17 = arith.extf %16 : vector<16x128xbf16> to vector<16x128xf32>
      %18 = arith.addf %15, %17 : vector<16x128xf32>
      %cst_16 = arith.constant dense<0.000000e+00> : vector<16xf32>
      %19 = vector.multi_reduction <add>, %18, %cst_16 [1] : vector<16x128xf32> to vector<16xf32>
      %20 = vector.shape_cast %19 : vector<16xf32> to vector<16x1xf32>
      %cst_17 = arith.constant 1.280000e+02 : f32
      %21 = vector.broadcast %cst_17 : f32 to vector<16x1xf32>
      %22 = arith.divf %20, %21 : vector<16x1xf32>
      %23 = vector.broadcast %22 : vector<16x1xf32> to vector<16x128xf32>
      %24 = arith.subf %18, %23 : vector<16x128xf32>
      %25 = arith.mulf %24, %24 : vector<16x128xf32>
      %cst_18 = arith.constant dense<0.000000e+00> : vector<16xf32>
      %26 = vector.multi_reduction <add>, %25, %cst_18 [1] : vector<16x128xf32> to vector<16xf32>
      %27 = vector.shape_cast %26 : vector<16xf32> to vector<16x1xf32>
      %cst_19 = arith.constant 1.280000e+02 : f32
      %28 = vector.broadcast %cst_19 : f32 to vector<16x1xf32>
      %29 = arith.divf %27, %28 : vector<16x1xf32>
      %cst_20 = arith.constant 9.99999996E-13 : f32
      %30 = vector.broadcast %cst_20 : f32 to vector<16x1xf32>
      %31 = arith.addf %29, %30 : vector<16x1xf32>
      %32 = math.rsqrt %31 : vector<16x1xf32>
      %c0_21 = arith.constant 0 : index
      %c0_22 = arith.constant 0 : index
      %33 = vector.load %arg6[%c0_21, %c0_22] : memref<1x128xf32, #tpu.memory_space<vmem>>, vector<1x128xf32>
      %34 = vector.broadcast %32 : vector<16x1xf32> to vector<16x128xf32>
      %35 = arith.mulf %24, %34 : vector<16x128xf32>
      %36 = vector.broadcast %33 : vector<1x128xf32> to vector<16x128xf32>
      %37 = arith.mulf %36, %35 : vector<16x128xf32>
      %c0_23 = arith.constant 0 : index
      %c0_24 = arith.constant 0 : index
      %38 = vector.load %arg7[%c0_23, %c0_24] : memref<1x128xf32, #tpu.memory_space<vmem>>, vector<1x128xf32>
      %39 = vector.broadcast %38 : vector<1x128xf32> to vector<16x128xf32>
      %40 = arith.addf %37, %39 : vector<16x128xf32>
      %41 = arith.truncf %40 : vector<16x128xf32> to vector<16x128xbf16>
      %c0_25 = arith.constant 0 : index
      %c0_26 = arith.constant 0 : index
      %42 = vector.load %arg8[%c0_25, %c0_26] : memref<16x128xbf16, #tpu.memory_space<vmem>>, vector<16x128xbf16>
      tpu.vector_store %arg8[%c0_25, %c0_26], %41 {strides = array<i32>} : memref<16x128xbf16, #tpu.memory_space<vmem>>, vector<16x128xbf16>,
    } else {
    }
    return
  }
  func.func @transform_0(%arg0: i32, %arg1: i32) -> (i32, i32) {
    %c0_i32 = arith.constant 0 : i32
    return %arg0, %arg1 : i32, i32
  }
  func.func @transform_1(%arg0: i32, %arg1: i32) -> (i32, i32) {
    %c0_i32 = arith.constant 0 : i32
    %c0_i32_0 = arith.constant 0 : i32
    return %arg1, %c0_i32 : i32, i32
  }
  func.func @transform_2(%arg0: i32, %arg1: i32) -> (i32, i32) {
    %c0_i32 = arith.constant 0 : i32
    %c0_i32_0 = arith.constant 0 : i32
    %c0_i32_1 = arith.constant 0 : i32
    return %c0_i32, %c0_i32_0 : i32, i32
  }
  func.func @transform_3(%arg0: i32, %arg1: i32) -> (i32, i32) {
    %c0_i32 = arith.constant 0 : i32
    %c0_i32_0 = arith.constant 0 : i32
    return %arg0, %c0_i32 : i32, i32
  }
  func.func @transform_4(%arg0: i32, %arg1: i32) -> (i32, i32) {
    %c0_i32 = arith.constant 0 : i32
    %c0_i32_0 = arith.constant 0 : i32
    %c0_i32_1 = arith.constant 0 : i32
    return %c0_i32, %c0_i32_0 : i32, i32
  }
  func.func @transform_5(%arg0: i32, %arg1: i32) -> (i32, i32) {
    %c0_i32 = arith.constant 0 : i32
    %c0_i32_0 = arith.constant 0 : i32
    %c0_i32_1 = arith.constant 0 : i32
    return %c0_i32, %c0_i32_0 : i32, i32
  }
  func.func @transform_6(%arg0: i32, %arg1: i32) -> (i32, i32) {
    %c0_i32 = arith.constant 0 : i32
    %c0_i32_0 = arith.constant 0 : i32
    return %arg0, %c0_i32 : i32, i32
  }
}

module attributes {stable_mosaic.version = 11 : i64} {
  func.func @_linear_kernel(%arg0: i32, %arg1: i32, %arg2: i32, %arg3: memref<16x128xbf16, #tpu.memory_space<vmem>>, %arg4: memref<128x256xbf16, #tpu.memory_space<vmem>>, %arg5: memref<1x256xf32, #tpu.memory_space<vmem>>, %arg6: memref<16x256xbf16, #tpu.memory_space<vmem>>, %arg7: memref<16x256xf32, #tpu.memory_space<vmem>>) attributes {dimension_semantics = [#tpu.dimension_semantics<parallel>, #tpu.dimension_semantics<parallel>, #tpu.dimension_semantics<arbitrary>], iteration_bounds = array<i64: 1, 1, 1>, scalar_prefetch = 0 : i64, scratch_operands = 1 : i64, tpu.core_type = #tpu.core_type<tc>, window_params = [{transform_indices = @transform_0, window_bounds = array<i64: 16, 128>}, {transform_indices = @transform_1, window_bounds = array<i64: 128, 256>}, {transform_indices = @transform_2, window_bounds = array<i64: 1, 256>}, {transform_indices = @transform_3, window_bounds = array<i64: 16, 256>}]} {
    %c0_i32 = arith.constant 0 : i32
    %0 = arith.cmpi eq, %arg2, %c0_i32 : i32
    %1 = arith.extui %0 : i1 to i32
    %c0_i32_0 = arith.constant 0 : i32
    %2 = arith.cmpi ne, %1, %c0_i32_0 : i32
    scf.if %2 {
      %cst_10 = arith.constant 0.000000e+00 : f32
      %12 = vector.broadcast %cst_10 : f32 to vector<16x256xf32>
      %c0_11 = arith.constant 0 : index
      %c0_12 = arith.constant 0 : index
      %13 = vector.load %arg7[%c0_11, %c0_12] : memref<16x256xf32, #tpu.memory_space<vmem>>, vector<16x256xf32>
      tpu.vector_store %arg7[%c0_11, %c0_12], %12 {strides = array<i32>} : memref<16x256xf32, #tpu.memory_space<vmem>>, vector<16x256xf32>,
    } else {
    }
    %c0 = arith.constant 0 : index
    %c0_1 = arith.constant 0 : index
    %3 = vector.load %arg7[%c0, %c0_1] : memref<16x256xf32, #tpu.memory_space<vmem>>, vector<16x256xf32>
    %c0_2 = arith.constant 0 : index
    %c0_3 = arith.constant 0 : index
    %4 = vector.load %arg3[%c0_2, %c0_3] : memref<16x128xbf16, #tpu.memory_space<vmem>>, vector<16x128xbf16>
    %c0_4 = arith.constant 0 : index
    %c0_5 = arith.constant 0 : index
    %5 = vector.load %arg4[%c0_4, %c0_5] : memref<128x256xbf16, #tpu.memory_space<vmem>>, vector<128x256xbf16>
    %cst = arith.constant dense<0.000000e+00> : vector<16x256xf32>
    %6 = tpu.matmul %4, %5, %cst {dimension_numbers = #tpu.dot_dimension_numbers<[1], [0], [0], [1], [0, 0, 1, 1], [], []>} : vector<16x128xbf16>, vector<128x256xbf16>, vector<16x256xf32> -> vector<16x256xf32>
    %7 = arith.addf %3, %6 : vector<16x256xf32>
    %c0_6 = arith.constant 0 : index
    %c0_7 = arith.constant 0 : index
    %8 = vector.load %arg7[%c0_6, %c0_7] : memref<16x256xf32, #tpu.memory_space<vmem>>, vector<16x256xf32>
    tpu.vector_store %arg7[%c0_6, %c0_7], %7 {strides = array<i32>} : memref<16x256xf32, #tpu.memory_space<vmem>>, vector<16x256xf32>,
    %c0_i32_8 = arith.constant 0 : i32
    %9 = arith.cmpi eq, %arg2, %c0_i32_8 : i32
    %10 = arith.extui %9 : i1 to i32
    %c0_i32_9 = arith.constant 0 : i32
    %11 = arith.cmpi ne, %10, %c0_i32_9 : i32
    scf.if %11 {
      %c0_10 = arith.constant 0 : index
      %c0_11 = arith.constant 0 : index
      %12 = vector.load %arg7[%c0_10, %c0_11] : memref<16x256xf32, #tpu.memory_space<vmem>>, vector<16x256xf32>
      %c0_12 = arith.constant 0 : index
      %c0_13 = arith.constant 0 : index
      %13 = vector.load %arg5[%c0_12, %c0_13] : memref<1x256xf32, #tpu.memory_space<vmem>>, vector<1x256xf32>
      %14 = vector.broadcast %13 : vector<1x256xf32> to vector<16x256xf32>
      %15 = arith.addf %12, %14 : vector<16x256xf32>
      %16 = arith.truncf %15 : vector<16x256xf32> to vector<16x256xbf16>
      %c0_14 = arith.constant 0 : index
      %c0_15 = arith.constant 0 : index
      %17 = vector.load %arg6[%c0_14, %c0_15] : memref<16x256xbf16, #tpu.memory_space<vmem>>, vector<16x256xbf16>
      tpu.vector_store %arg6[%c0_14, %c0_15], %16 {strides = array<i32>} : memref<16x256xbf16, #tpu.memory_space<vmem>>, vector<16x256xbf16>,
    } else {
    }
    return
  }
  func.func @transform_0(%arg0: i32, %arg1: i32, %arg2: i32) -> (i32, i32) {
    %c0_i32 = arith.constant 0 : i32
    return %arg0, %arg2 : i32, i32
  }
  func.func @transform_1(%arg0: i32, %arg1: i32, %arg2: i32) -> (i32, i32) {
    %c0_i32 = arith.constant 0 : i32
    return %arg2, %arg1 : i32, i32
  }
  func.func @transform_2(%arg0: i32, %arg1: i32, %arg2: i32) -> (i32, i32) {
    %c0_i32 = arith.constant 0 : i32
    %c0_i32_0 = arith.constant 0 : i32
    return %c0_i32, %arg1 : i32, i32
  }
  func.func @transform_3(%arg0: i32, %arg1: i32, %arg2: i32) -> (i32, i32) {
    %c0_i32 = arith.constant 0 : i32
    return %arg0, %arg1 : i32, i32
  }
}

module attributes {stable_mosaic.version = 11 : i64} {
  func.func @_flash_mha_kernel(%arg0: i32, %arg1: i32, %arg2: i32, %arg3: memref<1x8x1xbf16, #tpu.memory_space<vmem>>, %arg4: memref<1x1x8xbf16, #tpu.memory_space<vmem>>, %arg5: memref<1x8x128xbf16, #tpu.memory_space<vmem>>, %arg6: memref<1x8x128xbf16, #tpu.memory_space<vmem>>, %arg7: memref<1x8x128xbf16, #tpu.memory_space<vmem>>, %arg8: memref<1x8x128xbf16, #tpu.memory_space<vmem>>, %arg9: memref<4x8x1xf32, #tpu.memory_space<vmem>>, %arg10: memref<4x8x1xf32, #tpu.memory_space<vmem>>, %arg11: memref<8x128xf32, #tpu.memory_space<vmem>>) attributes {dimension_semantics = [#tpu.dimension_semantics<parallel>, #tpu.dimension_semantics<parallel>, #tpu.dimension_semantics<arbitrary>], iteration_bounds = array<i64: 2, 1, 1>, scalar_prefetch = 0 : i64, scratch_operands = 3 : i64, tpu.core_type = #tpu.core_type<tc>, window_params = [{transform_indices = @transform_0, window_bounds = array<i64: 1, 8, 1>}, {transform_indices = @transform_1, window_bounds = array<i64: 1, 1, 8>}, {transform_indices = @transform_2, window_bounds = array<i64: 1, 8, 128>}, {transform_indices = @transform_3, window_bounds = array<i64: 1, 8, 128>}, {transform_indices = @transform_4, window_bounds = array<i64: 1, 8, 128>}, {transform_indices = @transform_5, window_bounds = array<i64: 1, 8, 128>}]} {
    %c0_i32 = arith.constant 0 : i32
    %0 = arith.cmpi eq, %arg2, %c0_i32 : i32
    %1 = arith.extui %0 : i1 to i32
    %c0_i32_0 = arith.constant 0 : i32
    %2 = arith.cmpi ne, %1, %c0_i32_0 : i32
    scf.if %2 {
      %cst_100 = arith.constant -1.000000e+30 : f32
      %171 = vector.broadcast %cst_100 : f32 to vector<4x8x1xf32>
      %c0_101 = arith.constant 0 : index
      %c0_102 = arith.constant 0 : index
      %c0_103 = arith.constant 0 : index
      %172 = vector.load %arg9[%c0_101, %c0_102, %c0_103] : memref<4x8x1xf32, #tpu.memory_space<vmem>>, vector<4x8x1xf32>
      tpu.vector_store %arg9[%c0_101, %c0_102, %c0_103], %171 {strides = array<i32>} : memref<4x8x1xf32, #tpu.memory_space<vmem>>, vector<4x8x1xf32>,
      %cst_104 = arith.constant 0.000000e+00 : f32
      %173 = vector.broadcast %cst_104 : f32 to vector<4x8x1xf32>
      %c0_105 = arith.constant 0 : index
      %c0_106 = arith.constant 0 : index
      %c0_107 = arith.constant 0 : index
      %174 = vector.load %arg10[%c0_105, %c0_106, %c0_107] : memref<4x8x1xf32, #tpu.memory_space<vmem>>, vector<4x8x1xf32>
      tpu.vector_store %arg10[%c0_105, %c0_106, %c0_107], %173 {strides = array<i32>} : memref<4x8x1xf32, #tpu.memory_space<vmem>>, vector<4x8x1xf32>,
      %cst_108 = arith.constant 0.000000e+00 : f32
      %175 = vector.broadcast %cst_108 : f32 to vector<8x128xf32>
      %c0_109 = arith.constant 0 : index
      %c0_110 = arith.constant 0 : index
      %176 = vector.load %arg11[%c0_109, %c0_110] : memref<8x128xf32, #tpu.memory_space<vmem>>, vector<8x128xf32>
      tpu.vector_store %arg11[%c0_109, %c0_110], %175 {strides = array<i32>} : memref<8x128xf32, #tpu.memory_space<vmem>>, vector<8x128xf32>,
    } else {
    }
    %c0 = arith.constant 0 : index
    %c0_1 = arith.constant 0 : index
    %c0_2 = arith.constant 0 : index
    %3 = vector.load %arg5[%c0, %c0_1, %c0_2] : memref<1x8x128xbf16, #tpu.memory_space<vmem>>, vector<1x8x128xbf16>
    %4 = vector.shape_cast %3 : vector<1x8x128xbf16> to vector<8x128xbf16>
    %c0_3 = arith.constant 0 : index
    %c0_4 = arith.constant 0 : index
    %c0_5 = arith.constant 0 : index
    %5 = vector.load %arg6[%c0_3, %c0_4, %c0_5] : memref<1x8x128xbf16, #tpu.memory_space<vmem>>, vector<1x8x128xbf16>
    %6 = vector.shape_cast %5 : vector<1x8x128xbf16> to vector<8x128xbf16>
    %c0_6 = arith.constant 0 : index
    %c0_7 = arith.constant 0 : index
    %c0_8 = arith.constant 0 : index
    %7 = vector.load %arg7[%c0_6, %c0_7, %c0_8] : memref<1x8x128xbf16, #tpu.memory_space<vmem>>, vector<1x8x128xbf16>
    %8 = vector.shape_cast %7 : vector<1x8x128xbf16> to vector<8x128xbf16>
    %c0_9 = arith.constant 0 : index
    %c0_10 = arith.constant 0 : index
    %c0_11 = arith.constant 0 : index
    %9 = vector.load %arg4[%c0_9, %c0_10, %c0_11] : memref<1x1x8xbf16, #tpu.memory_space<vmem>>, vector<1x1x8xbf16>
    %10 = vector.shape_cast %9 : vector<1x1x8xbf16> to vector<1x8xbf16>
    %cst = arith.constant 0.000000e+00 : bf16
    %11 = vector.broadcast %cst : bf16 to vector<1x8xbf16>
    %12 = arith.cmpf ogt, %10, %11 : vector<1x8xbf16>
    %c0_12 = arith.constant 0 : index
    %c0_13 = arith.constant 0 : index
    %c0_14 = arith.constant 0 : index
    %13 = vector.load %arg3[%c0_12, %c0_13, %c0_14] : memref<1x8x1xbf16, #tpu.memory_space<vmem>>, vector<1x8x1xbf16>
    %14 = vector.shape_cast %13 : vector<1x8x1xbf16> to vector<8x1xbf16>
    %cst_15 = arith.constant 0.000000e+00 : bf16
    %15 = vector.broadcast %cst_15 : bf16 to vector<8x1xbf16>
    %16 = arith.cmpf ogt, %14, %15 : vector<8x1xbf16>
    %17 = vector.broadcast %12 : vector<1x8xi1> to vector<8x8xi1>
    %18 = vector.broadcast %16 : vector<8x1xi1> to vector<8x8xi1>
    %19 = arith.andi %17, %18 : vector<8x8xi1>
    %20 = vector.extract_strided_slice %4 {offsets = [0, 0], sizes = [8, 32], strides = [1, 1]} : vector<8x128xbf16> to vector<8x32xbf16>
    %cst_16 = arith.constant 1.767580e-01 : bf16
    %21 = vector.broadcast %cst_16 : bf16 to vector<8x32xbf16>
    %22 = arith.mulf %20, %21 : vector<8x32xbf16>
    %23 = vector.extract_strided_slice %6 {offsets = [0, 0], sizes = [8, 32], strides = [1, 1]} : vector<8x128xbf16> to vector<8x32xbf16>
    "tpu.trace_start"() <{level = 10 : i32, message = "qd,kd->qk"}> : () -> ()
    %cst_17 = arith.constant dense<0.000000e+00> : vector<8x8xf32>
    %24 = tpu.matmul %22, %23, %cst_17 {dimension_numbers = #tpu.dot_dimension_numbers<[1], [1], [0], [0], [0, 0, 1, 0], [], []>} : vector<8x32xbf16>, vector<8x32xbf16>, vector<8x8xf32> -> vector<8x8xf32>
    %cst_18 = arith.constant -1.000000e+04 : f32
    "tpu.trace_stop"() : () -> ()
    %25 = vector.broadcast %cst_18 : f32 to vector<8x8xf32>
    %26 = arith.select %19, %24, %25 : vector<8x8xi1>, vector<8x8xf32>
    %c0_19 = arith.constant 0 : index
    %c0_20 = arith.constant 0 : index
    %c0_21 = arith.constant 0 : index
    %27 = vector.load %arg9[%c0_19, %c0_20, %c0_21] : memref<4x8x1xf32, #tpu.memory_space<vmem>>, vector<1x8x1xf32>
    %28 = vector.shape_cast %27 : vector<1x8x1xf32> to vector<8x1xf32>
    %cst_22 = arith.constant dense<0xFF800000> : vector<8xf32>
    %29 = vector.multi_reduction <maximumf>, %26, %cst_22 [1] : vector<8x8xf32> to vector<8xf32>
    %30 = vector.shape_cast %29 : vector<8xf32> to vector<8x1xf32>
    %31 = arith.maximumf %28, %30 : vector<8x1xf32>
    %32 = arith.subf %28, %31 : vector<8x1xf32>
    %33 = math.exp %32 : vector<8x1xf32>
    %34 = vector.broadcast %31 : vector<8x1xf32> to vector<8x8xf32>
    %35 = arith.subf %26, %34 : vector<8x8xf32>
    %36 = math.exp %35 : vector<8x8xf32>
    %c0_23 = arith.constant 0 : index
    %c0_24 = arith.constant 0 : index
    %c0_25 = arith.constant 0 : index
    %37 = vector.load %arg10[%c0_23, %c0_24, %c0_25] : memref<4x8x1xf32, #tpu.memory_space<vmem>>, vector<1x8x1xf32>
    %38 = vector.shape_cast %37 : vector<1x8x1xf32> to vector<8x1xf32>
    %39 = arith.mulf %33, %38 : vector<8x1xf32>
    %cst_26 = arith.constant dense<0.000000e+00> : vector<8xf32>
    %40 = vector.multi_reduction <add>, %36, %cst_26 [1] : vector<8x8xf32> to vector<8xf32>
    %41 = vector.shape_cast %40 : vector<8xf32> to vector<8x1xf32>
    %42 = arith.addf %39, %41 : vector<8x1xf32>
    %c0_27 = arith.constant 0 : index
    %c0_28 = arith.constant 0 : index
    %c0_29 = arith.constant 0 : index
    %43 = vector.load %arg10[%c0_27, %c0_28, %c0_29] : memref<4x8x1xf32, #tpu.memory_space<vmem>>, vector<1x8x1xf32>
    %44 = vector.shape_cast %43 : vector<1x8x1xf32> to vector<8x1xf32>
    %45 = vector.shape_cast %42 : vector<8x1xf32> to vector<1x8x1xf32>
    tpu.vector_store %arg10[%c0_27, %c0_28, %c0_29], %45 {strides = array<i32>} : memref<4x8x1xf32, #tpu.memory_space<vmem>>, vector<1x8x1xf32>,
    %c0_30 = arith.constant 0 : index
    %c0_31 = arith.constant 0 : index
    %46 = vector.load %arg11[%c0_30, %c0_31] : memref<8x128xf32, #tpu.memory_space<vmem>>, vector<8x32xf32>
    %47 = vector.broadcast %33 : vector<8x1xf32> to vector<8x32xf32>
    %48 = arith.mulf %47, %46 : vector<8x32xf32>
    %49 = arith.truncf %36 : vector<8x8xf32> to vector<8x8xbf16>
    %50 = vector.extract_strided_slice %8 {offsets = [0, 0], sizes = [8, 32], strides = [1, 1]} : vector<8x128xbf16> to vector<8x32xbf16>
    %cst_32 = arith.constant dense<0.000000e+00> : vector<8x32xf32>
    %51 = tpu.matmul %49, %50, %cst_32 {dimension_numbers = #tpu.dot_dimension_numbers<[1], [0], [0], [1], [0, 0, 1, 1], [], []>} : vector<8x8xbf16>, vector<8x32xbf16>, vector<8x32xf32> -> vector<8x32xf32>
    %52 = arith.addf %48, %51 : vector<8x32xf32>
    %c0_33 = arith.constant 0 : index
    %c0_34 = arith.constant 0 : index
    %53 = vector.load %arg11[%c0_33, %c0_34] : memref<8x128xf32, #tpu.memory_space<vmem>>, vector<8x32xf32>
    tpu.vector_store %arg11[%c0_33, %c0_34], %52 {strides = array<i32>} : memref<8x128xf32, #tpu.memory_space<vmem>>, vector<8x32xf32>,
    %c0_35 = arith.constant 0 : index
    %c0_36 = arith.constant 0 : index
    %c0_37 = arith.constant 0 : index
    %54 = vector.load %arg9[%c0_35, %c0_36, %c0_37] : memref<4x8x1xf32, #tpu.memory_space<vmem>>, vector<1x8x1xf32>
    %55 = vector.shape_cast %54 : vector<1x8x1xf32> to vector<8x1xf32>
    %56 = vector.shape_cast %31 : vector<8x1xf32> to vector<1x8x1xf32>
    tpu.vector_store %arg9[%c0_35, %c0_36, %c0_37], %56 {strides = array<i32>} : memref<4x8x1xf32, #tpu.memory_space<vmem>>, vector<1x8x1xf32>,
    %57 = vector.extract_strided_slice %4 {offsets = [0, 32], sizes = [8, 32], strides = [1, 1]} : vector<8x128xbf16> to vector<8x32xbf16>
    %cst_38 = arith.constant 1.767580e-01 : bf16
    %58 = vector.broadcast %cst_38 : bf16 to vector<8x32xbf16>
    %59 = arith.mulf %57, %58 : vector<8x32xbf16>
    %60 = vector.extract_strided_slice %6 {offsets = [0, 32], sizes = [8, 32], strides = [1, 1]} : vector<8x128xbf16> to vector<8x32xbf16>
    "tpu.trace_start"() <{level = 10 : i32, message = "qd,kd->qk"}> : () -> ()
    %cst_39 = arith.constant dense<0.000000e+00> : vector<8x8xf32>
    %61 = tpu.matmul %59, %60, %cst_39 {dimension_numbers = #tpu.dot_dimension_numbers<[1], [1], [0], [0], [0, 0, 1, 0], [], []>} : vector<8x32xbf16>, vector<8x32xbf16>, vector<8x8xf32> -> vector<8x8xf32>
    %cst_40 = arith.constant -1.000000e+04 : f32
    "tpu.trace_stop"() : () -> ()
    %62 = vector.broadcast %cst_40 : f32 to vector<8x8xf32>
    %63 = arith.select %19, %61, %62 : vector<8x8xi1>, vector<8x8xf32>
    %c1 = arith.constant 1 : index
    %c0_41 = arith.constant 0 : index
    %c0_42 = arith.constant 0 : index
    %64 = vector.load %arg9[%c1, %c0_41, %c0_42] : memref<4x8x1xf32, #tpu.memory_space<vmem>>, vector<1x8x1xf32>
    %65 = vector.shape_cast %64 : vector<1x8x1xf32> to vector<8x1xf32>
    %cst_43 = arith.constant dense<0xFF800000> : vector<8xf32>
    %66 = vector.multi_reduction <maximumf>, %63, %cst_43 [1] : vector<8x8xf32> to vector<8xf32>
    %67 = vector.shape_cast %66 : vector<8xf32> to vector<8x1xf32>
    %68 = arith.maximumf %65, %67 : vector<8x1xf32>
    %69 = arith.subf %65, %68 : vector<8x1xf32>
    %70 = math.exp %69 : vector<8x1xf32>
    %71 = vector.broadcast %68 : vector<8x1xf32> to vector<8x8xf32>
    %72 = arith.subf %63, %71 : vector<8x8xf32>
    %73 = math.exp %72 : vector<8x8xf32>
    %c1_44 = arith.constant 1 : index
    %c0_45 = arith.constant 0 : index
    %c0_46 = arith.constant 0 : index
    %74 = vector.load %arg10[%c1_44, %c0_45, %c0_46] : memref<4x8x1xf32, #tpu.memory_space<vmem>>, vector<1x8x1xf32>
    %75 = vector.shape_cast %74 : vector<1x8x1xf32> to vector<8x1xf32>
    %76 = arith.mulf %70, %75 : vector<8x1xf32>
    %cst_47 = arith.constant dense<0.000000e+00> : vector<8xf32>
    %77 = vector.multi_reduction <add>, %73, %cst_47 [1] : vector<8x8xf32> to vector<8xf32>
    %78 = vector.shape_cast %77 : vector<8xf32> to vector<8x1xf32>
    %79 = arith.addf %76, %78 : vector<8x1xf32>
    %c1_48 = arith.constant 1 : index
    %c0_49 = arith.constant 0 : index
    %c0_50 = arith.constant 0 : index
    %80 = vector.load %arg10[%c1_48, %c0_49, %c0_50] : memref<4x8x1xf32, #tpu.memory_space<vmem>>, vector<1x8x1xf32>
    %81 = vector.shape_cast %80 : vector<1x8x1xf32> to vector<8x1xf32>
    %82 = vector.shape_cast %79 : vector<8x1xf32> to vector<1x8x1xf32>
    tpu.vector_store %arg10[%c1_48, %c0_49, %c0_50], %82 {strides = array<i32>} : memref<4x8x1xf32, #tpu.memory_space<vmem>>, vector<1x8x1xf32>,
    %c0_51 = arith.constant 0 : index
    %c32 = arith.constant 32 : index
    %83 = vector.load %arg11[%c0_51, %c32] : memref<8x128xf32, #tpu.memory_space<vmem>>, vector<8x32xf32>
    %84 = vector.broadcast %70 : vector<8x1xf32> to vector<8x32xf32>
    %85 = arith.mulf %84, %83 : vector<8x32xf32>
    %86 = arith.truncf %73 : vector<8x8xf32> to vector<8x8xbf16>
    %87 = vector.extract_strided_slice %8 {offsets = [0, 32], sizes = [8, 32], strides = [1, 1]} : vector<8x128xbf16> to vector<8x32xbf16>
    %cst_52 = arith.constant dense<0.000000e+00> : vector<8x32xf32>
    %88 = tpu.matmul %86, %87, %cst_52 {dimension_numbers = #tpu.dot_dimension_numbers<[1], [0], [0], [1], [0, 0, 1, 1], [], []>} : vector<8x8xbf16>, vector<8x32xbf16>, vector<8x32xf32> -> vector<8x32xf32>
    %89 = arith.addf %85, %88 : vector<8x32xf32>
    %c0_53 = arith.constant 0 : index
    %c32_54 = arith.constant 32 : index
    %90 = vector.load %arg11[%c0_53, %c32_54] : memref<8x128xf32, #tpu.memory_space<vmem>>, vector<8x32xf32>
    tpu.vector_store %arg11[%c0_53, %c32_54], %89 {strides = array<i32>} : memref<8x128xf32, #tpu.memory_space<vmem>>, vector<8x32xf32>,
    %c1_55 = arith.constant 1 : index
    %c0_56 = arith.constant 0 : index
    %c0_57 = arith.constant 0 : index
    %91 = vector.load %arg9[%c1_55, %c0_56, %c0_57] : memref<4x8x1xf32, #tpu.memory_space<vmem>>, vector<1x8x1xf32>
    %92 = vector.shape_cast %91 : vector<1x8x1xf32> to vector<8x1xf32>
    %93 = vector.shape_cast %68 : vector<8x1xf32> to vector<1x8x1xf32>
    tpu.vector_store %arg9[%c1_55, %c0_56, %c0_57], %93 {strides = array<i32>} : memref<4x8x1xf32, #tpu.memory_space<vmem>>, vector<1x8x1xf32>,
    %94 = vector.extract_strided_slice %4 {offsets = [0, 64], sizes = [8, 32], strides = [1, 1]} : vector<8x128xbf16> to vector<8x32xbf16>
    %cst_58 = arith.constant 1.767580e-01 : bf16
    %95 = vector.broadcast %cst_58 : bf16 to vector<8x32xbf16>
    %96 = arith.mulf %94, %95 : vector<8x32xbf16>
    %97 = vector.extract_strided_slice %6 {offsets = [0, 64], sizes = [8, 32], strides = [1, 1]} : vector<8x128xbf16> to vector<8x32xbf16>
    "tpu.trace_start"() <{level = 10 : i32, message = "qd,kd->qk"}> : () -> ()
    %cst_59 = arith.constant dense<0.000000e+00> : vector<8x8xf32>
    %98 = tpu.matmul %96, %97, %cst_59 {dimension_numbers = #tpu.dot_dimension_numbers<[1], [1], [0], [0], [0, 0, 1, 0], [], []>} : vector<8x32xbf16>, vector<8x32xbf16>, vector<8x8xf32> -> vector<8x8xf32>
    %cst_60 = arith.constant -1.000000e+04 : f32
    "tpu.trace_stop"() : () -> ()
    %99 = vector.broadcast %cst_60 : f32 to vector<8x8xf32>
    %100 = arith.select %19, %98, %99 : vector<8x8xi1>, vector<8x8xf32>
    %c2 = arith.constant 2 : index
    %c0_61 = arith.constant 0 : index
    %c0_62 = arith.constant 0 : index
    %101 = vector.load %arg9[%c2, %c0_61, %c0_62] : memref<4x8x1xf32, #tpu.memory_space<vmem>>, vector<1x8x1xf32>
    %102 = vector.shape_cast %101 : vector<1x8x1xf32> to vector<8x1xf32>
    %cst_63 = arith.constant dense<0xFF800000> : vector<8xf32>
    %103 = vector.multi_reduction <maximumf>, %100, %cst_63 [1] : vector<8x8xf32> to vector<8xf32>
    %104 = vector.shape_cast %103 : vector<8xf32> to vector<8x1xf32>
    %105 = arith.maximumf %102, %104 : vector<8x1xf32>
    %106 = arith.subf %102, %105 : vector<8x1xf32>
    %107 = math.exp %106 : vector<8x1xf32>
    %108 = vector.broadcast %105 : vector<8x1xf32> to vector<8x8xf32>
    %109 = arith.subf %100, %108 : vector<8x8xf32>
    %110 = math.exp %109 : vector<8x8xf32>
    %c2_64 = arith.constant 2 : index
    %c0_65 = arith.constant 0 : index
    %c0_66 = arith.constant 0 : index
    %111 = vector.load %arg10[%c2_64, %c0_65, %c0_66] : memref<4x8x1xf32, #tpu.memory_space<vmem>>, vector<1x8x1xf32>
    %112 = vector.shape_cast %111 : vector<1x8x1xf32> to vector<8x1xf32>
    %113 = arith.mulf %107, %112 : vector<8x1xf32>
    %cst_67 = arith.constant dense<0.000000e+00> : vector<8xf32>
    %114 = vector.multi_reduction <add>, %110, %cst_67 [1] : vector<8x8xf32> to vector<8xf32>
    %115 = vector.shape_cast %114 : vector<8xf32> to vector<8x1xf32>
    %116 = arith.addf %113, %115 : vector<8x1xf32>
    %c2_68 = arith.constant 2 : index
    %c0_69 = arith.constant 0 : index
    %c0_70 = arith.constant 0 : index
    %117 = vector.load %arg10[%c2_68, %c0_69, %c0_70] : memref<4x8x1xf32, #tpu.memory_space<vmem>>, vector<1x8x1xf32>
    %118 = vector.shape_cast %117 : vector<1x8x1xf32> to vector<8x1xf32>
    %119 = vector.shape_cast %116 : vector<8x1xf32> to vector<1x8x1xf32>
    tpu.vector_store %arg10[%c2_68, %c0_69, %c0_70], %119 {strides = array<i32>} : memref<4x8x1xf32, #tpu.memory_space<vmem>>, vector<1x8x1xf32>,
    %c0_71 = arith.constant 0 : index
    %c64 = arith.constant 64 : index
    %120 = vector.load %arg11[%c0_71, %c64] : memref<8x128xf32, #tpu.memory_space<vmem>>, vector<8x32xf32>
    %121 = vector.broadcast %107 : vector<8x1xf32> to vector<8x32xf32>
    %122 = arith.mulf %121, %120 : vector<8x32xf32>
    %123 = arith.truncf %110 : vector<8x8xf32> to vector<8x8xbf16>
    %124 = vector.extract_strided_slice %8 {offsets = [0, 64], sizes = [8, 32], strides = [1, 1]} : vector<8x128xbf16> to vector<8x32xbf16>
    %cst_72 = arith.constant dense<0.000000e+00> : vector<8x32xf32>
    %125 = tpu.matmul %123, %124, %cst_72 {dimension_numbers = #tpu.dot_dimension_numbers<[1], [0], [0], [1], [0, 0, 1, 1], [], []>} : vector<8x8xbf16>, vector<8x32xbf16>, vector<8x32xf32> -> vector<8x32xf32>
    %126 = arith.addf %122, %125 : vector<8x32xf32>
    %c0_73 = arith.constant 0 : index
    %c64_74 = arith.constant 64 : index
    %127 = vector.load %arg11[%c0_73, %c64_74] : memref<8x128xf32, #tpu.memory_space<vmem>>, vector<8x32xf32>
    tpu.vector_store %arg11[%c0_73, %c64_74], %126 {strides = array<i32>} : memref<8x128xf32, #tpu.memory_space<vmem>>, vector<8x32xf32>,
    %c2_75 = arith.constant 2 : index
    %c0_76 = arith.constant 0 : index
    %c0_77 = arith.constant 0 : index
    %128 = vector.load %arg9[%c2_75, %c0_76, %c0_77] : memref<4x8x1xf32, #tpu.memory_space<vmem>>, vector<1x8x1xf32>
    %129 = vector.shape_cast %128 : vector<1x8x1xf32> to vector<8x1xf32>
    %130 = vector.shape_cast %105 : vector<8x1xf32> to vector<1x8x1xf32>
    tpu.vector_store %arg9[%c2_75, %c0_76, %c0_77], %130 {strides = array<i32>} : memref<4x8x1xf32, #tpu.memory_space<vmem>>, vector<1x8x1xf32>,
    %131 = vector.extract_strided_slice %4 {offsets = [0, 96], sizes = [8, 32], strides = [1, 1]} : vector<8x128xbf16> to vector<8x32xbf16>
    %cst_78 = arith.constant 1.767580e-01 : bf16
    %132 = vector.broadcast %cst_78 : bf16 to vector<8x32xbf16>
    %133 = arith.mulf %131, %132 : vector<8x32xbf16>
    %134 = vector.extract_strided_slice %6 {offsets = [0, 96], sizes = [8, 32], strides = [1, 1]} : vector<8x128xbf16> to vector<8x32xbf16>
    "tpu.trace_start"() <{level = 10 : i32, message = "qd,kd->qk"}> : () -> ()
    %cst_79 = arith.constant dense<0.000000e+00> : vector<8x8xf32>
    %135 = tpu.matmul %133, %134, %cst_79 {dimension_numbers = #tpu.dot_dimension_numbers<[1], [1], [0], [0], [0, 0, 1, 0], [], []>} : vector<8x32xbf16>, vector<8x32xbf16>, vector<8x8xf32> -> vector<8x8xf32>
    %cst_80 = arith.constant -1.000000e+04 : f32
    "tpu.trace_stop"() : () -> ()
    %136 = vector.broadcast %cst_80 : f32 to vector<8x8xf32>
    %137 = arith.select %19, %135, %136 : vector<8x8xi1>, vector<8x8xf32>
    %c3 = arith.constant 3 : index
    %c0_81 = arith.constant 0 : index
    %c0_82 = arith.constant 0 : index
    %138 = vector.load %arg9[%c3, %c0_81, %c0_82] : memref<4x8x1xf32, #tpu.memory_space<vmem>>, vector<1x8x1xf32>
    %139 = vector.shape_cast %138 : vector<1x8x1xf32> to vector<8x1xf32>
    %cst_83 = arith.constant dense<0xFF800000> : vector<8xf32>
    %140 = vector.multi_reduction <maximumf>, %137, %cst_83 [1] : vector<8x8xf32> to vector<8xf32>
    %141 = vector.shape_cast %140 : vector<8xf32> to vector<8x1xf32>
    %142 = arith.maximumf %139, %141 : vector<8x1xf32>
    %143 = arith.subf %139, %142 : vector<8x1xf32>
    %144 = math.exp %143 : vector<8x1xf32>
    %145 = vector.broadcast %142 : vector<8x1xf32> to vector<8x8xf32>
    %146 = arith.subf %137, %145 : vector<8x8xf32>
    %147 = math.exp %146 : vector<8x8xf32>
    %c3_84 = arith.constant 3 : index
    %c0_85 = arith.constant 0 : index
    %c0_86 = arith.constant 0 : index
    %148 = vector.load %arg10[%c3_84, %c0_85, %c0_86] : memref<4x8x1xf32, #tpu.memory_space<vmem>>, vector<1x8x1xf32>
    %149 = vector.shape_cast %148 : vector<1x8x1xf32> to vector<8x1xf32>
    %150 = arith.mulf %144, %149 : vector<8x1xf32>
    %cst_87 = arith.constant dense<0.000000e+00> : vector<8xf32>
    %151 = vector.multi_reduction <add>, %147, %cst_87 [1] : vector<8x8xf32> to vector<8xf32>
    %152 = vector.shape_cast %151 : vector<8xf32> to vector<8x1xf32>
    %153 = arith.addf %150, %152 : vector<8x1xf32>
    %c3_88 = arith.constant 3 : index
    %c0_89 = arith.constant 0 : index
    %c0_90 = arith.constant 0 : index
    %154 = vector.load %arg10[%c3_88, %c0_89, %c0_90] : memref<4x8x1xf32, #tpu.memory_space<vmem>>, vector<1x8x1xf32>
    %155 = vector.shape_cast %154 : vector<1x8x1xf32> to vector<8x1xf32>
    %156 = vector.shape_cast %153 : vector<8x1xf32> to vector<1x8x1xf32>
    tpu.vector_store %arg10[%c3_88, %c0_89, %c0_90], %156 {strides = array<i32>} : memref<4x8x1xf32, #tpu.memory_space<vmem>>, vector<1x8x1xf32>,
    %c0_91 = arith.constant 0 : index
    %c96 = arith.constant 96 : index
    %157 = vector.load %arg11[%c0_91, %c96] : memref<8x128xf32, #tpu.memory_space<vmem>>, vector<8x32xf32>
    %158 = vector.broadcast %144 : vector<8x1xf32> to vector<8x32xf32>
    %159 = arith.mulf %158, %157 : vector<8x32xf32>
    %160 = arith.truncf %147 : vector<8x8xf32> to vector<8x8xbf16>
    %161 = vector.extract_strided_slice %8 {offsets = [0, 96], sizes = [8, 32], strides = [1, 1]} : vector<8x128xbf16> to vector<8x32xbf16>
    %cst_92 = arith.constant dense<0.000000e+00> : vector<8x32xf32>
    %162 = tpu.matmul %160, %161, %cst_92 {dimension_numbers = #tpu.dot_dimension_numbers<[1], [0], [0], [1], [0, 0, 1, 1], [], []>} : vector<8x8xbf16>, vector<8x32xbf16>, vector<8x32xf32> -> vector<8x32xf32>
    %163 = arith.addf %159, %162 : vector<8x32xf32>
    %c0_93 = arith.constant 0 : index
    %c96_94 = arith.constant 96 : index
    %164 = vector.load %arg11[%c0_93, %c96_94] : memref<8x128xf32, #tpu.memory_space<vmem>>, vector<8x32xf32>
    tpu.vector_store %arg11[%c0_93, %c96_94], %163 {strides = array<i32>} : memref<8x128xf32, #tpu.memory_space<vmem>>, vector<8x32xf32>,
    %c3_95 = arith.constant 3 : index
    %c0_96 = arith.constant 0 : index
    %c0_97 = arith.constant 0 : index
    %165 = vector.load %arg9[%c3_95, %c0_96, %c0_97] : memref<4x8x1xf32, #tpu.memory_space<vmem>>, vector<1x8x1xf32>
    %166 = vector.shape_cast %165 : vector<1x8x1xf32> to vector<8x1xf32>
    %167 = vector.shape_cast %142 : vector<8x1xf32> to vector<1x8x1xf32>
    tpu.vector_store %arg9[%c3_95, %c0_96, %c0_97], %167 {strides = array<i32>} : memref<4x8x1xf32, #tpu.memory_space<vmem>>, vector<1x8x1xf32>,
    %c0_i32_98 = arith.constant 0 : i32
    %168 = arith.cmpi eq, %arg2, %c0_i32_98 : i32
    %169 = arith.extui %168 : i1 to i32
    %c0_i32_99 = arith.constant 0 : i32
    %170 = arith.cmpi ne, %169, %c0_i32_99 : i32
    scf.if %170 {
      %c0_100 = arith.constant 0 : index
      %c0_101 = arith.constant 0 : index
      %171 = vector.load %arg11[%c0_100, %c0_101] : memref<8x128xf32, #tpu.memory_space<vmem>>, vector<8x32xf32>
      %c0_102 = arith.constant 0 : index
      %c0_103 = arith.constant 0 : index
      %c0_104 = arith.constant 0 : index
      %172 = vector.load %arg10[%c0_102, %c0_103, %c0_104] : memref<4x8x1xf32, #tpu.memory_space<vmem>>, vector<1x8x1xf32>
      %173 = vector.shape_cast %172 : vector<1x8x1xf32> to vector<8x1xf32>
      %174 = tpu.reciprocal %173 {approx = true} : vector<8x1xf32> -> vector<8x1xf32>
      %175 = vector.broadcast %174 : vector<8x1xf32> to vector<8x32xf32>
      %176 = arith.mulf %171, %175 : vector<8x32xf32>
      %c0_105 = arith.constant 0 : index
      %c0_106 = arith.constant 0 : index
      %177 = vector.load %arg11[%c0_105, %c0_106] : memref<8x128xf32, #tpu.memory_space<vmem>>, vector<8x32xf32>
      tpu.vector_store %arg11[%c0_105, %c0_106], %176 {strides = array<i32>} : memref<8x128xf32, #tpu.memory_space<vmem>>, vector<8x32xf32>,
      %c0_107 = arith.constant 0 : index
      %c32_108 = arith.constant 32 : index
      %178 = vector.load %arg11[%c0_107, %c32_108] : memref<8x128xf32, #tpu.memory_space<vmem>>, vector<8x32xf32>
      %c1_109 = arith.constant 1 : index
      %c0_110 = arith.constant 0 : index
      %c0_111 = arith.constant 0 : index
      %179 = vector.load %arg10[%c1_109, %c0_110, %c0_111] : memref<4x8x1xf32, #tpu.memory_space<vmem>>, vector<1x8x1xf32>
      %180 = vector.shape_cast %179 : vector<1x8x1xf32> to vector<8x1xf32>
      %181 = tpu.reciprocal %180 {approx = true} : vector<8x1xf32> -> vector<8x1xf32>
      %182 = vector.broadcast %181 : vector<8x1xf32> to vector<8x32xf32>
      %183 = arith.mulf %178, %182 : vector<8x32xf32>
      %c0_112 = arith.constant 0 : index
      %c32_113 = arith.constant 32 : index
      %184 = vector.load %arg11[%c0_112, %c32_113] : memref<8x128xf32, #tpu.memory_space<vmem>>, vector<8x32xf32>
      tpu.vector_store %arg11[%c0_112, %c32_113], %183 {strides = array<i32>} : memref<8x128xf32, #tpu.memory_space<vmem>>, vector<8x32xf32>,
      %c0_114 = arith.constant 0 : index
      %c64_115 = arith.constant 64 : index
      %185 = vector.load %arg11[%c0_114, %c64_115] : memref<8x128xf32, #tpu.memory_space<vmem>>, vector<8x32xf32>
      %c2_116 = arith.constant 2 : index
      %c0_117 = arith.constant 0 : index
      %c0_118 = arith.constant 0 : index
      %186 = vector.load %arg10[%c2_116, %c0_117, %c0_118] : memref<4x8x1xf32, #tpu.memory_space<vmem>>, vector<1x8x1xf32>
      %187 = vector.shape_cast %186 : vector<1x8x1xf32> to vector<8x1xf32>
      %188 = tpu.reciprocal %187 {approx = true} : vector<8x1xf32> -> vector<8x1xf32>
      %189 = vector.broadcast %188 : vector<8x1xf32> to vector<8x32xf32>
      %190 = arith.mulf %185, %189 : vector<8x32xf32>
      %c0_119 = arith.constant 0 : index
      %c64_120 = arith.constant 64 : index
      %191 = vector.load %arg11[%c0_119, %c64_120] : memref<8x128xf32, #tpu.memory_space<vmem>>, vector<8x32xf32>
      tpu.vector_store %arg11[%c0_119, %c64_120], %190 {strides = array<i32>} : memref<8x128xf32, #tpu.memory_space<vmem>>, vector<8x32xf32>,
      %c0_121 = arith.constant 0 : index
      %c96_122 = arith.constant 96 : index
      %192 = vector.load %arg11[%c0_121, %c96_122] : memref<8x128xf32, #tpu.memory_space<vmem>>, vector<8x32xf32>
      %c3_123 = arith.constant 3 : index
      %c0_124 = arith.constant 0 : index
      %c0_125 = arith.constant 0 : index
      %193 = vector.load %arg10[%c3_123, %c0_124, %c0_125] : memref<4x8x1xf32, #tpu.memory_space<vmem>>, vector<1x8x1xf32>
      %194 = vector.shape_cast %193 : vector<1x8x1xf32> to vector<8x1xf32>
      %195 = tpu.reciprocal %194 {approx = true} : vector<8x1xf32> -> vector<8x1xf32>
      %196 = vector.broadcast %195 : vector<8x1xf32> to vector<8x32xf32>
      %197 = arith.mulf %192, %196 : vector<8x32xf32>
      %c0_126 = arith.constant 0 : index
      %c96_127 = arith.constant 96 : index
      %198 = vector.load %arg11[%c0_126, %c96_127] : memref<8x128xf32, #tpu.memory_space<vmem>>, vector<8x32xf32>
      tpu.vector_store %arg11[%c0_126, %c96_127], %197 {strides = array<i32>} : memref<8x128xf32, #tpu.memory_space<vmem>>, vector<8x32xf32>,
      %c0_128 = arith.constant 0 : index
      %c0_129 = arith.constant 0 : index
      %199 = vector.load %arg11[%c0_128, %c0_129] : memref<8x128xf32, #tpu.memory_space<vmem>>, vector<8x128xf32>
      %200 = arith.truncf %199 : vector<8x128xf32> to vector<8x128xbf16>
      %c0_130 = arith.constant 0 : index
      %c0_131 = arith.constant 0 : index
      %c0_132 = arith.constant 0 : index
      %201 = vector.load %arg8[%c0_130, %c0_131, %c0_132] : memref<1x8x128xbf16, #tpu.memory_space<vmem>>, vector<1x8x128xbf16>
      %202 = vector.shape_cast %201 : vector<1x8x128xbf16> to vector<8x128xbf16>
      %203 = vector.shape_cast %200 : vector<8x128xbf16> to vector<1x8x128xbf16>
      tpu.vector_store %arg8[%c0_130, %c0_131, %c0_132], %203 {strides = array<i32>} : memref<1x8x128xbf16, #tpu.memory_space<vmem>>, vector<1x8x128xbf16>,
    } else {
    }
    return
  }
  func.func @transform_0(%arg0: i32, %arg1: i32, %arg2: i32) -> (i32, i32, i32) {
    %c0_i32 = arith.constant 0 : i32
    %c0_i32_0 = arith.constant 0 : i32
    return %arg0, %arg1, %c0_i32 : i32, i32, i32
  }
  func.func @transform_1(%arg0: i32, %arg1: i32, %arg2: i32) -> (i32, i32, i32) {
    %c0_i32 = arith.constant 0 : i32
    %c0_i32_0 = arith.constant 0 : i32
    return %arg0, %c0_i32, %arg2 : i32, i32, i32
  }
  func.func @transform_2(%arg0: i32, %arg1: i32, %arg2: i32) -> (i32, i32, i32) {
    %c0_i32 = arith.constant 0 : i32
    %c0_i32_0 = arith.constant 0 : i32
    return %arg0, %arg1, %c0_i32 : i32, i32, i32
  }
  func.func @transform_3(%arg0: i32, %arg1: i32, %arg2: i32) -> (i32, i32, i32) {
    %c0_i32 = arith.constant 0 : i32
    %c0_i32_0 = arith.constant 0 : i32
    return %arg0, %arg2, %c0_i32 : i32, i32, i32
  }
  func.func @transform_4(%arg0: i32, %arg1: i32, %arg2: i32) -> (i32, i32, i32) {
    %c1_i32 = arith.constant 1 : i32
    %c0_i32 = arith.constant 0 : i32
    return %arg0, %arg2, %c1_i32 : i32, i32, i32
  }
  func.func @transform_5(%arg0: i32, %arg1: i32, %arg2: i32) -> (i32, i32, i32) {
    %c0_i32 = arith.constant 0 : i32
    %c0_i32_0 = arith.constant 0 : i32
    return %arg0, %arg1, %c0_i32 : i32, i32, i32
  }
}

module attributes {stable_mosaic.version = 11 : i64} {
  func.func @_linear_kernel(%arg0: i32, %arg1: i32, %arg2: i32, %arg3: memref<16x128xbf16, #tpu.memory_space<vmem>>, %arg4: memref<128x256xbf16, #tpu.memory_space<vmem>>, %arg5: memref<1x256xf32, #tpu.memory_space<vmem>>, %arg6: memref<16x256xbf16, #tpu.memory_space<vmem>>, %arg7: memref<16x256xf32, #tpu.memory_space<vmem>>) attributes {dimension_semantics = [#tpu.dimension_semantics<parallel>, #tpu.dimension_semantics<parallel>, #tpu.dimension_semantics<arbitrary>], iteration_bounds = array<i64: 1, 1, 1>, scalar_prefetch = 0 : i64, scratch_operands = 1 : i64, tpu.core_type = #tpu.core_type<tc>, window_params = [{transform_indices = @transform_0, window_bounds = array<i64: 16, 128>}, {transform_indices = @transform_1, window_bounds = array<i64: 128, 256>}, {transform_indices = @transform_2, window_bounds = array<i64: 1, 256>}, {transform_indices = @transform_3, window_bounds = array<i64: 16, 256>}]} {
    %c0_i32 = arith.constant 0 : i32
    %0 = arith.cmpi eq, %arg2, %c0_i32 : i32
    %1 = arith.extui %0 : i1 to i32
    %c0_i32_0 = arith.constant 0 : i32
    %2 = arith.cmpi ne, %1, %c0_i32_0 : i32
    scf.if %2 {
      %cst_10 = arith.constant 0.000000e+00 : f32
      %12 = vector.broadcast %cst_10 : f32 to vector<16x256xf32>
      %c0_11 = arith.constant 0 : index
      %c0_12 = arith.constant 0 : index
      %13 = vector.load %arg7[%c0_11, %c0_12] : memref<16x256xf32, #tpu.memory_space<vmem>>, vector<16x256xf32>
      tpu.vector_store %arg7[%c0_11, %c0_12], %12 {strides = array<i32>} : memref<16x256xf32, #tpu.memory_space<vmem>>, vector<16x256xf32>,
    } else {
    }
    %c0 = arith.constant 0 : index
    %c0_1 = arith.constant 0 : index
    %3 = vector.load %arg7[%c0, %c0_1] : memref<16x256xf32, #tpu.memory_space<vmem>>, vector<16x256xf32>
    %c0_2 = arith.constant 0 : index
    %c0_3 = arith.constant 0 : index
    %4 = vector.load %arg3[%c0_2, %c0_3] : memref<16x128xbf16, #tpu.memory_space<vmem>>, vector<16x128xbf16>
    %c0_4 = arith.constant 0 : index
    %c0_5 = arith.constant 0 : index
    %5 = vector.load %arg4[%c0_4, %c0_5] : memref<128x256xbf16, #tpu.memory_space<vmem>>, vector<128x256xbf16>
    %cst = arith.constant dense<0.000000e+00> : vector<16x256xf32>
    %6 = tpu.matmul %4, %5, %cst {dimension_numbers = #tpu.dot_dimension_numbers<[1], [0], [0], [1], [0, 0, 1, 1], [], []>} : vector<16x128xbf16>, vector<128x256xbf16>, vector<16x256xf32> -> vector<16x256xf32>
    %7 = arith.addf %3, %6 : vector<16x256xf32>
    %c0_6 = arith.constant 0 : index
    %c0_7 = arith.constant 0 : index
    %8 = vector.load %arg7[%c0_6, %c0_7] : memref<16x256xf32, #tpu.memory_space<vmem>>, vector<16x256xf32>
    tpu.vector_store %arg7[%c0_6, %c0_7], %7 {strides = array<i32>} : memref<16x256xf32, #tpu.memory_space<vmem>>, vector<16x256xf32>,
    %c0_i32_8 = arith.constant 0 : i32
    %9 = arith.cmpi eq, %arg2, %c0_i32_8 : i32
    %10 = arith.extui %9 : i1 to i32
    %c0_i32_9 = arith.constant 0 : i32
    %11 = arith.cmpi ne, %10, %c0_i32_9 : i32
    scf.if %11 {
      %c0_10 = arith.constant 0 : index
      %c0_11 = arith.constant 0 : index
      %12 = vector.load %arg7[%c0_10, %c0_11] : memref<16x256xf32, #tpu.memory_space<vmem>>, vector<16x256xf32>
      %c0_12 = arith.constant 0 : index
      %c0_13 = arith.constant 0 : index
      %13 = vector.load %arg5[%c0_12, %c0_13] : memref<1x256xf32, #tpu.memory_space<vmem>>, vector<1x256xf32>
      %14 = vector.broadcast %13 : vector<1x256xf32> to vector<16x256xf32>
      %15 = arith.addf %12, %14 : vector<16x256xf32>
      %cst_14 = arith.constant 0.000000e+00 : f32
      %16 = vector.broadcast %cst_14 : f32 to vector<16x256xf32>
      %17 = arith.maximumf %15, %16 : vector<16x256xf32>
      %18 = arith.truncf %17 : vector<16x256xf32> to vector<16x256xbf16>
      %c0_15 = arith.constant 0 : index
      %c0_16 = arith.constant 0 : index
      %19 = vector.load %arg6[%c0_15, %c0_16] : memref<16x256xbf16, #tpu.memory_space<vmem>>, vector<16x256xbf16>
      tpu.vector_store %arg6[%c0_15, %c0_16], %18 {strides = array<i32>} : memref<16x256xbf16, #tpu.memory_space<vmem>>, vector<16x256xbf16>,
    } else {
    }
    return
  }
  func.func @transform_0(%arg0: i32, %arg1: i32, %arg2: i32) -> (i32, i32) {
    %c0_i32 = arith.constant 0 : i32
    return %arg0, %arg2 : i32, i32
  }
  func.func @transform_1(%arg0: i32, %arg1: i32, %arg2: i32) -> (i32, i32) {
    %c0_i32 = arith.constant 0 : i32
    return %arg2, %arg1 : i32, i32
  }
  func.func @transform_2(%arg0: i32, %arg1: i32, %arg2: i32) -> (i32, i32) {
    %c0_i32 = arith.constant 0 : i32
    %c0_i32_0 = arith.constant 0 : i32
    return %c0_i32, %arg1 : i32, i32
  }
  func.func @transform_3(%arg0: i32, %arg1: i32, %arg2: i32) -> (i32, i32) {
    %c0_i32 = arith.constant 0 : i32
    return %arg0, %arg1 : i32, i32
  }
}

module attributes {stable_mosaic.version = 11 : i64} {
  func.func @_linear_add_ln_kernel(%arg0: i32, %arg1: i32, %arg2: memref<16x256xbf16, #tpu.memory_space<vmem>>, %arg3: memref<256x128xbf16, #tpu.memory_space<vmem>>, %arg4: memref<1x128xf32, #tpu.memory_space<vmem>>, %arg5: memref<16x128xbf16, #tpu.memory_space<vmem>>, %arg6: memref<1x128xf32, #tpu.memory_space<vmem>>, %arg7: memref<1x128xf32, #tpu.memory_space<vmem>>, %arg8: memref<16x128xbf16, #tpu.memory_space<vmem>>, %arg9: memref<16x128xf32, #tpu.memory_space<vmem>>) attributes {dimension_semantics = [#tpu.dimension_semantics<parallel>, #tpu.dimension_semantics<arbitrary>], iteration_bounds = array<i64: 1, 1>, scalar_prefetch = 0 : i64, scratch_operands = 1 : i64, tpu.core_type = #tpu.core_type<tc>, window_params = [{transform_indices = @transform_0, window_bounds = array<i64: 16, 256>}, {transform_indices = @transform_1, window_bounds = array<i64: 256, 128>}, {pipeline_mode = #tpu.pipeline_mode<synchronous>, transform_indices = @transform_2, window_bounds = array<i64: 1, 128>}, {transform_indices = @transform_3, window_bounds = array<i64: 16, 128>}, {pipeline_mode = #tpu.pipeline_mode<synchronous>, transform_indices = @transform_4, window_bounds = array<i64: 1, 128>}, {pipeline_mode = #tpu.pipeline_mode<synchronous>, transform_indices = @transform_5, window_bounds = array<i64: 1, 128>}, {transform_indices = @transform_6, window_bounds = array<i64: 16, 128>}]} {
    %c0_i32 = arith.constant 0 : i32
    %0 = arith.cmpi eq, %arg1, %c0_i32 : i32
    %1 = arith.extui %0 : i1 to i32
    %c0_i32_0 = arith.constant 0 : i32
    %2 = arith.cmpi ne, %1, %c0_i32_0 : i32
    scf.if %2 {
      %cst_10 = arith.constant 0.000000e+00 : f32
      %12 = vector.broadcast %cst_10 : f32 to vector<16x128xf32>
      %c0_11 = arith.constant 0 : index
      %c0_12 = arith.constant 0 : index
      %13 = vector.load %arg9[%c0_11, %c0_12] : memref<16x128xf32, #tpu.memory_space<vmem>>, vector<16x128xf32>
      tpu.vector_store %arg9[%c0_11, %c0_12], %12 {strides = array<i32>} : memref<16x128xf32, #tpu.memory_space<vmem>>, vector<16x128xf32>,
    } else {
    }
    %c0 = arith.constant 0 : index
    %c0_1 = arith.constant 0 : index
    %3 = vector.load %arg9[%c0, %c0_1] : memref<16x128xf32, #tpu.memory_space<vmem>>, vector<16x128xf32>
    %c0_2 = arith.constant 0 : index
    %c0_3 = arith.constant 0 : index
    %4 = vector.load %arg2[%c0_2, %c0_3] : memref<16x256xbf16, #tpu.memory_space<vmem>>, vector<16x256xbf16>
    %c0_4 = arith.constant 0 : index
    %c0_5 = arith.constant 0 : index
    %5 = vector.load %arg3[%c0_4, %c0_5] : memref<256x128xbf16, #tpu.memory_space<vmem>>, vector<256x128xbf16>
    %cst = arith.constant dense<0.000000e+00> : vector<16x128xf32>
    %6 = tpu.matmul %4, %5, %cst {dimension_numbers = #tpu.dot_dimension_numbers<[1], [0], [0], [1], [0, 0, 1, 1], [], []>} : vector<16x256xbf16>, vector<256x128xbf16>, vector<16x128xf32> -> vector<16x128xf32>
    %7 = arith.addf %3, %6 : vector<16x128xf32>
    %c0_6 = arith.constant 0 : index
    %c0_7 = arith.constant 0 : index
    %8 = vector.load %arg9[%c0_6, %c0_7] : memref<16x128xf32, #tpu.memory_space<vmem>>, vector<16x128xf32>
    tpu.vector_store %arg9[%c0_6, %c0_7], %7 {strides = array<i32>} : memref<16x128xf32, #tpu.memory_space<vmem>>, vector<16x128xf32>,
    %c0_i32_8 = arith.constant 0 : i32
    %9 = arith.cmpi eq, %arg1, %c0_i32_8 : i32
    %10 = arith.extui %9 : i1 to i32
    %c0_i32_9 = arith.constant 0 : i32
    %11 = arith.cmpi ne, %10, %c0_i32_9 : i32
    scf.if %11 {
      %c0_10 = arith.constant 0 : index
      %c0_11 = arith.constant 0 : index
      %12 = vector.load %arg9[%c0_10, %c0_11] : memref<16x128xf32, #tpu.memory_space<vmem>>, vector<16x128xf32>
      %c0_12 = arith.constant 0 : index
      %c0_13 = arith.constant 0 : index
      %13 = vector.load %arg4[%c0_12, %c0_13] : memref<1x128xf32, #tpu.memory_space<vmem>>, vector<1x128xf32>
      %14 = vector.broadcast %13 : vector<1x128xf32> to vector<16x128xf32>
      %15 = arith.addf %12, %14 : vector<16x128xf32>
      %c0_14 = arith.constant 0 : index
      %c0_15 = arith.constant 0 : index
      %16 = vector.load %arg5[%c0_14, %c0_15] : memref<16x128xbf16, #tpu.memory_space<vmem>>, vector<16x128xbf16>
      %17 = arith.extf %16 : vector<16x128xbf16> to vector<16x128xf32>
      %18 = arith.addf %15, %17 : vector<16x128xf32>
      %cst_16 = arith.constant dense<0.000000e+00> : vector<16xf32>
      %19 = vector.multi_reduction <add>, %18, %cst_16 [1] : vector<16x128xf32> to vector<16xf32>
      %20 = vector.shape_cast %19 : vector<16xf32> to vector<16x1xf32>
      %cst_17 = arith.constant 1.280000e+02 : f32
      %21 = vector.broadcast %cst_17 : f32 to vector<16x1xf32>
      %22 = arith.divf %20, %21 : vector<16x1xf32>
      %23 = vector.broadcast %22 : vector<16x1xf32> to vector<16x128xf32>
      %24 = arith.subf %18, %23 : vector<16x128xf32>
      %25 = arith.mulf %24, %24 : vector<16x128xf32>
      %cst_18 = arith.constant dense<0.000000e+00> : vector<16xf32>
      %26 = vector.multi_reduction <add>, %25, %cst_18 [1] : vector<16x128xf32> to vector<16xf32>
      %27 = vector.shape_cast %26 : vector<16xf32> to vector<16x1xf32>
      %cst_19 = arith.constant 1.280000e+02 : f32
      %28 = vector.broadcast %cst_19 : f32 to vector<16x1xf32>
      %29 = arith.divf %27, %28 : vector<16x1xf32>
      %cst_20 = arith.constant 9.99999996E-13 : f32
      %30 = vector.broadcast %cst_20 : f32 to vector<16x1xf32>
      %31 = arith.addf %29, %30 : vector<16x1xf32>
      %32 = math.rsqrt %31 : vector<16x1xf32>
      %c0_21 = arith.constant 0 : index
      %c0_22 = arith.constant 0 : index
      %33 = vector.load %arg6[%c0_21, %c0_22] : memref<1x128xf32, #tpu.memory_space<vmem>>, vector<1x128xf32>
      %34 = vector.broadcast %32 : vector<16x1xf32> to vector<16x128xf32>
      %35 = arith.mulf %24, %34 : vector<16x128xf32>
      %36 = vector.broadcast %33 : vector<1x128xf32> to vector<16x128xf32>
      %37 = arith.mulf %36, %35 : vector<16x128xf32>
      %c0_23 = arith.constant 0 : index
      %c0_24 = arith.constant 0 : index
      %38 = vector.load %arg7[%c0_23, %c0_24] : memref<1x128xf32, #tpu.memory_space<vmem>>, vector<1x128xf32>
      %39 = vector.broadcast %38 : vector<1x128xf32> to vector<16x128xf32>
      %40 = arith.addf %37, %39 : vector<16x128xf32>
      %41 = arith.truncf %40 : vector<16x128xf32> to vector<16x128xbf16>
      %c0_25 = arith.constant 0 : index
      %c0_26 = arith.constant 0 : index
      %42 = vector.load %arg8[%c0_25, %c0_26] : memref<16x128xbf16, #tpu.memory_space<vmem>>, vector<16x128xbf16>
      tpu.vector_store %arg8[%c0_25, %c0_26], %41 {strides = array<i32>} : memref<16x128xbf16, #tpu.memory_space<vmem>>, vector<16x128xbf16>,
    } else {
    }
    return
  }
  func.func @transform_0(%arg0: i32, %arg1: i32) -> (i32, i32) {
    %c0_i32 = arith.constant 0 : i32
    return %arg0, %arg1 : i32, i32
  }
  func.func @transform_1(%arg0: i32, %arg1: i32) -> (i32, i32) {
    %c0_i32 = arith.constant 0 : i32
    %c0_i32_0 = arith.constant 0 : i32
    return %arg1, %c0_i32 : i32, i32
  }
  func.func @transform_2(%arg0: i32, %arg1: i32) -> (i32, i32) {
    %c0_i32 = arith.constant 0 : i32
    %c0_i32_0 = arith.constant 0 : i32
    %c0_i32_1 = arith.constant 0 : i32
    return %c0_i32, %c0_i32_0 : i32, i32
  }
  func.func @transform_3(%arg0: i32, %arg1: i32) -> (i32, i32) {
    %c0_i32 = arith.constant 0 : i32
    %c0_i32_0 = arith.constant 0 : i32
    return %arg0, %c0_i32 : i32, i32
  }
  func.func @transform_4(%arg0: i32, %arg1: i32) -> (i32, i32) {
    %c0_i32 = arith.constant 0 : i32
    %c0_i32_0 = arith.constant 0 : i32
    %c0_i32_1 = arith.constant 0 : i32
    return %c0_i32, %c0_i32_0 : i32, i32
  }
  func.func @transform_5(%arg0: i32, %arg1: i32) -> (i32, i32) {
    %c0_i32 = arith.constant 0 : i32
    %c0_i32_0 = arith.constant 0 : i32
    %c0_i32_1 = arith.constant 0 : i32
    return %c0_i32, %c0_i32_0 : i32, i32
  }
  func.func @transform_6(%arg0: i32, %arg1: i32) -> (i32, i32) {
    %c0_i32 = arith.constant 0 : i32
    %c0_i32_0 = arith.constant 0 : i32
    return %arg0, %c0_i32 : i32, i32
  }
}

module attributes {stable_mosaic.version = 11 : i64} {
  func.func @_linear_kernel(%arg0: i32, %arg1: i32, %arg2: i32, %arg3: memref<16x128xbf16, #tpu.memory_space<vmem>>, %arg4: memref<128x32xbf16, #tpu.memory_space<vmem>>, %arg5: memref<1x32xf32, #tpu.memory_space<vmem>>, %arg6: memref<16x32xf32, #tpu.memory_space<vmem>>, %arg7: memref<16x32xf32, #tpu.memory_space<vmem>>) attributes {dimension_semantics = [#tpu.dimension_semantics<parallel>, #tpu.dimension_semantics<parallel>, #tpu.dimension_semantics<arbitrary>], iteration_bounds = array<i64: 1, 1, 1>, scalar_prefetch = 0 : i64, scratch_operands = 1 : i64, tpu.core_type = #tpu.core_type<tc>, window_params = [{transform_indices = @transform_0, window_bounds = array<i64: 16, 128>}, {transform_indices = @transform_1, window_bounds = array<i64: 128, 32>}, {transform_indices = @transform_2, window_bounds = array<i64: 1, 32>}, {transform_indices = @transform_3, window_bounds = array<i64: 16, 32>}]} {
    %c0_i32 = arith.constant 0 : i32
    %0 = arith.cmpi eq, %arg2, %c0_i32 : i32
    %1 = arith.extui %0 : i1 to i32
    %c0_i32_0 = arith.constant 0 : i32
    %2 = arith.cmpi ne, %1, %c0_i32_0 : i32
    scf.if %2 {
      %cst_10 = arith.constant 0.000000e+00 : f32
      %12 = vector.broadcast %cst_10 : f32 to vector<16x32xf32>
      %c0_11 = arith.constant 0 : index
      %c0_12 = arith.constant 0 : index
      %13 = vector.load %arg7[%c0_11, %c0_12] : memref<16x32xf32, #tpu.memory_space<vmem>>, vector<16x32xf32>
      tpu.vector_store %arg7[%c0_11, %c0_12], %12 {strides = array<i32>} : memref<16x32xf32, #tpu.memory_space<vmem>>, vector<16x32xf32>,
    } else {
    }
    %c0 = arith.constant 0 : index
    %c0_1 = arith.constant 0 : index
    %3 = vector.load %arg7[%c0, %c0_1] : memref<16x32xf32, #tpu.memory_space<vmem>>, vector<16x32xf32>
    %c0_2 = arith.constant 0 : index
    %c0_3 = arith.constant 0 : index
    %4 = vector.load %arg3[%c0_2, %c0_3] : memref<16x128xbf16, #tpu.memory_space<vmem>>, vector<16x128xbf16>
    %c0_4 = arith.constant 0 : index
    %c0_5 = arith.constant 0 : index
    %5 = vector.load %arg4[%c0_4, %c0_5] : memref<128x32xbf16, #tpu.memory_space<vmem>>, vector<128x32xbf16>
    %cst = arith.constant dense<0.000000e+00> : vector<16x32xf32>
    %6 = tpu.matmul %4, %5, %cst {dimension_numbers = #tpu.dot_dimension_numbers<[1], [0], [0], [1], [0, 0, 1, 1], [], []>} : vector<16x128xbf16>, vector<128x32xbf16>, vector<16x32xf32> -> vector<16x32xf32>
    %7 = arith.addf %3, %6 : vector<16x32xf32>
    %c0_6 = arith.constant 0 : index
    %c0_7 = arith.constant 0 : index
    %8 = vector.load %arg7[%c0_6, %c0_7] : memref<16x32xf32, #tpu.memory_space<vmem>>, vector<16x32xf32>
    tpu.vector_store %arg7[%c0_6, %c0_7], %7 {strides = array<i32>} : memref<16x32xf32, #tpu.memory_space<vmem>>, vector<16x32xf32>,
    %c0_i32_8 = arith.constant 0 : i32
    %9 = arith.cmpi eq, %arg2, %c0_i32_8 : i32
    %10 = arith.extui %9 : i1 to i32
    %c0_i32_9 = arith.constant 0 : i32
    %11 = arith.cmpi ne, %10, %c0_i32_9 : i32
    scf.if %11 {
      %c0_10 = arith.constant 0 : index
      %c0_11 = arith.constant 0 : index
      %12 = vector.load %arg7[%c0_10, %c0_11] : memref<16x32xf32, #tpu.memory_space<vmem>>, vector<16x32xf32>
      %c0_12 = arith.constant 0 : index
      %c0_13 = arith.constant 0 : index
      %13 = vector.load %arg5[%c0_12, %c0_13] : memref<1x32xf32, #tpu.memory_space<vmem>>, vector<1x32xf32>
      %14 = vector.broadcast %13 : vector<1x32xf32> to vector<16x32xf32>
      %15 = arith.addf %12, %14 : vector<16x32xf32>
      %c0_14 = arith.constant 0 : index
      %c0_15 = arith.constant 0 : index
      %16 = vector.load %arg6[%c0_14, %c0_15] : memref<16x32xf32, #tpu.memory_space<vmem>>, vector<16x32xf32>
      tpu.vector_store %arg6[%c0_14, %c0_15], %15 {strides = array<i32>} : memref<16x32xf32, #tpu.memory_space<vmem>>, vector<16x32xf32>,
    } else {
    }
    return
  }
  func.func @transform_0(%arg0: i32, %arg1: i32, %arg2: i32) -> (i32, i32) {
    %c0_i32 = arith.constant 0 : i32
    return %arg0, %arg2 : i32, i32
  }
  func.func @transform_1(%arg0: i32, %arg1: i32, %arg2: i32) -> (i32, i32) {
    %c0_i32 = arith.constant 0 : i32
    return %arg2, %arg1 : i32, i32
  }
  func.func @transform_2(%arg0: i32, %arg1: i32, %arg2: i32) -> (i32, i32) {
    %c0_i32 = arith.constant 0 : i32
    %c0_i32_0 = arith.constant 0 : i32
    return %c0_i32, %arg1 : i32, i32
  }
  func.func @transform_3(%arg0: i32, %arg1: i32, %arg2: i32) -> (i32, i32) {
    %c0_i32 = arith.constant 0 : i32
    return %arg0, %arg1 : i32, i32
  }
}

</mosaic_0001>

<llo_original>
// kernel: decoder_forward.19
$region0: #{decoder_forward.19}
  #allocation0 [shape = 'u32[]', space=smem, size = 0x4, offset = 0x4, fixed_abs, tag = 'smem constant byte address 0x4 - core index']
  #allocation1 [shape = 'u32[144,128]{1,0:T(1,128)}', space=vmem, size = 0x12000, scoped, tag = 'internal scratch']
  #allocation2 [shape = 'f32[16,384]{1,0:T(8,128)}', space=vmem, size = 0x6000, scoped, tag = 'scratch operand']
  %s0 = inlined_call_operand.vmem [shape: bf16[16,128], index: 0, kind: input, shape index: {}]
  %s1 = inlined_call_operand.vmem [shape: bf16[128,384], index: 1, kind: input, shape index: {}]
  %s2 = inlined_call_operand.vmem [shape: f32[1,384], index: 2, kind: input, shape index: {}]
  %s3 = inlined_call_operand.vmem [shape: bf16[16,384], index: 3, kind: output, shape index: {}]
  %s4 = sld [smem:[#allocation0]]
  $region30: #{decoder_forward.19} parent=0
    _
  %s6 = ssub.s32 1, %s4
  %s7 = scalar_select 0, %s6, %s4
  // Predicated region
  $region2: #{decoder_forward.19} parent=0 // pred_check
    _
  $region3: #{decoder_forward.19} parent=0 // pred_check_branch
    %9 = sbr.rel (0) target = $region5
  $region4: #{decoder_forward.19} parent=0 // pred_region
    _
  $region5: #{decoder_forward.19} parent=0 // pred_fallthru
    _
  // Predicated region
  $region6: #{decoder_forward.19} parent=0 // pred_check
    _
  $region7: #{decoder_forward.19} parent=0 // pred_check_branch
    %11 = sbr.rel (0) target = $region9
  $region8: #{decoder_forward.19} parent=0 // pred_region
    _
  $region9: #{decoder_forward.19} parent=0 // pred_fallthru
    _
  // Predicated region
  $region10: #{decoder_forward.19} parent=0 // pred_check
    _
  $region11: #{decoder_forward.19} parent=0 // pred_check_branch
    %13 = sbr.rel (0) target = $region13
  $region12: #{decoder_forward.19} parent=0 // pred_region
    _
  $region13: #{decoder_forward.19} parent=0 // pred_fallthru
    _
  %p15 = scmp.eq.s32.totalorder 0, 0
  // Predicated region
  $region14: #{decoder_forward.19} parent=0 // pred_check
    %p16 = pneg %p15
  $region15: #{decoder_forward.19} parent=0 // pred_check_branch
    %18 = sbr.rel (%p16) target = $region17
  $region16: #{decoder_forward.19} parent=0 // pred_region
    %19 = vst [vmem:[#allocation2] sm:$0xff] 0.0
    %20 = vst [vmem:[#allocation2 + $0x8] sm:$0xff] 0.0
    %21 = vst [vmem:[#allocation2 + $0x10] sm:$0xff] 0.0
    %22 = vst [vmem:[#allocation2 + $0x18] sm:$0xff] 0.0
    %23 = vst [vmem:[#allocation2 + $0x20] sm:$0xff] 0.0
    %24 = vst [vmem:[#allocation2 + $0x28] sm:$0xff] 0.0
  $region17: #{decoder_forward.19} parent=0 // pred_fallthru
    _
  %v25 = vld [vmem:[#allocation2] sm:$0xff]
  %v26 = vld [vmem:[#allocation2 + $0x8] sm:$0xff]
  %v27 = vld [vmem:[#allocation2 + $0x10] sm:$0xff]
  %v28 = vld [vmem:[#allocation2 + $0x18] sm:$0xff]
  %v29 = vld [vmem:[#allocation2 + $0x20] sm:$0xff]
  %v30 = vld [vmem:[#allocation2 + $0x28] sm:$0xff]
  %v31 = vld [vmem:[%s0] sm:$0xf]
  %v32 = vld [vmem:[%s0 + $0x4] sm:$0xf]
  %v33 = vld [vmem:[%s1] sm:$0xff]
  %v34 = vld [vmem:[%s1 + $0x8] sm:$0xf]
  %v35 = vld [vmem:[%s1 + $0xc] sm:$0xff]
  %v36 = vld [vmem:[%s1 + $0x14] sm:$0xf]
  %v37 = vld [vmem:[%s1 + $0x18] sm:$0xff]
  %v38 = vld [vmem:[%s1 + $0x20] sm:$0xf]
  %v39 = vld [vmem:[%s1 + $0x24] sm:$0xff]
  %v40 = vld [vmem:[%s1 + $0x2c] sm:$0xf]
  %v41 = vld [vmem:[%s1 + $0x30] sm:$0xff]
  %v42 = vld [vmem:[%s1 + $0x38] sm:$0xf]
  %v43 = vld [vmem:[%s1 + $0x3c] sm:$0xff]
  %v44 = vld [vmem:[%s1 + $0x44] sm:$0xf]
  %v45 = vld [vmem:[%s1 + $0x48] sm:$0xff]
  %v46 = vld [vmem:[%s1 + $0x50] sm:$0xf]
  %v47 = vld [vmem:[%s1 + $0x54] sm:$0xff]
  %v48 = vld [vmem:[%s1 + $0x5c] sm:$0xf]
  %v49 = vld [vmem:[%s1 + $0x60] sm:$0xff]
  %v50 = vld [vmem:[%s1 + $0x68] sm:$0xf]
  %v51 = vld [vmem:[%s1 + $0x6c] sm:$0xff]
  %v52 = vld [vmem:[%s1 + $0x74] sm:$0xf]
  %v53 = vld [vmem:[%s1 + $0x78] sm:$0xff]
  %v54 = vld [vmem:[%s1 + $0x80] sm:$0xf]
  %v55 = vld [vmem:[%s1 + $0x84] sm:$0xff]
  %v56 = vld [vmem:[%s1 + $0x8c] sm:$0xf]
  %v57 = vld [vmem:[%s1 + $0x90] sm:$0xff]
  %v58 = vld [vmem:[%s1 + $0x98] sm:$0xf]
  %v59 = vld [vmem:[%s1 + $0x9c] sm:$0xff]
  %v60 = vld [vmem:[%s1 + $0xa4] sm:$0xf]
  %v61 = vld [vmem:[%s1 + $0xa8] sm:$0xff]
  %v62 = vld [vmem:[%s1 + $0xb0] sm:$0xf]
  %v63 = vld [vmem:[%s1 + $0xb4] sm:$0xff]
  %v64 = vld [vmem:[%s1 + $0xbc] sm:$0xf]
  %v67 = vunpack.c.l.b16 %v31
  %v68 = vunpack.c.l.b16 %v32
  %v69 = vpack.c.b16 %v68, %v67
  %v103 = vunpack.c.l.b16 %v33
  %v104 = vunpack.c.h.b16 %v33
  %v105 = vunpack.c.l.b16 %v34
  %v106 = vunpack.c.l.b16 %v35
  %v107 = vunpack.c.h.b16 %v35
  %v108 = vunpack.c.l.b16 %v36
  %v109 = vunpack.c.l.b16 %v37
  %v110 = vunpack.c.h.b16 %v37
  %v111 = vunpack.c.l.b16 %v38
  %v112 = vunpack.c.l.b16 %v39
  %v113 = vunpack.c.h.b16 %v39
  %v114 = vunpack.c.l.b16 %v40
  %v115 = vunpack.c.l.b16 %v41
  %v116 = vunpack.c.h.b16 %v41
  %v117 = vunpack.c.l.b16 %v42
  %v118 = vunpack.c.l.b16 %v43
  %v119 = vunpack.c.h.b16 %v43
  %v120 = vunpack.c.l.b16 %v44
  %v121 = vunpack.c.l.b16 %v45
  %v122 = vunpack.c.h.b16 %v45
  %v123 = vunpack.c.l.b16 %v46
  %v124 = vunpack.c.l.b16 %v47
  %v125 = vunpack.c.h.b16 %v47
  %v126 = vunpack.c.l.b16 %v48
  %v127 = vunpack.c.l.b16 %v49
  %v128 = vunpack.c.h.b16 %v49
  %v129 = vunpack.c.l.b16 %v50
  %v130 = vunpack.c.l.b16 %v51
  %v131 = vunpack.c.h.b16 %v51
  %v132 = vunpack.c.l.b16 %v52
  %v133 = vunpack.c.l.b16 %v53
  %v134 = vunpack.c.h.b16 %v53
  %v135 = vunpack.c.l.b16 %v54
  %v136 = vunpack.c.l.b16 %v55
  %v137 = vunpack.c.h.b16 %v55
  %v138 = vunpack.c.l.b16 %v56
  %v139 = vunpack.c.l.b16 %v57
  %v140 = vunpack.c.h.b16 %v57
  %v141 = vunpack.c.l.b16 %v58
  %v142 = vunpack.c.l.b16 %v59
  %v143 = vunpack.c.h.b16 %v59
  %v144 = vunpack.c.l.b16 %v60
  %v145 = vunpack.c.l.b16 %v61
  %v146 = vunpack.c.h.b16 %v61
  %v147 = vunpack.c.l.b16 %v62
  %v148 = vunpack.c.l.b16 %v63
  %v149 = vunpack.c.h.b16 %v63
  %v150 = vunpack.c.l.b16 %v64
  %v151 = vpack.c.b16 %v106, %v103
  %v152 = vpack.c.b16 %v107, %v104
  %v153 = vpack.c.b16 %v108, %v105
  %v154 = vpack.c.b16 %v112, %v109
  %v155 = vpack.c.b16 %v113, %v110
  %v156 = vpack.c.b16 %v114, %v111
  %v157 = vpack.c.b16 %v118, %v115
  %v158 = vpack.c.b16 %v119, %v116
  %v159 = vpack.c.b16 %v120, %v117
  %v160 = vpack.c.b16 %v124, %v121
  %v161 = vpack.c.b16 %v125, %v122
  %v162 = vpack.c.b16 %v126, %v123
  %v163 = vpack.c.b16 %v130, %v127
  %v164 = vpack.c.b16 %v131, %v128
  %v165 = vpack.c.b16 %v132, %v129
  %v166 = vpack.c.b16 %v136, %v133
  %v167 = vpack.c.b16 %v137, %v134
  %v168 = vpack.c.b16 %v138, %v135
  %v169 = vpack.c.b16 %v142, %v139
  %v170 = vpack.c.b16 %v143, %v140
  %v171 = vpack.c.b16 %v144, %v141
  %v172 = vpack.c.b16 %v148, %v145
  %v173 = vpack.c.b16 %v149, %v146
  %v174 = vpack.c.b16 %v150, %v147
  %199 = vmatprep.subr.bf16.mxu0 %v152
  %200 = vmatpush1.bf16.msra.mxu0 %v151
  %201 = vmatprep.subr.bf16.mxu0 %v155
  %202 = vmatpush1.bf16.msra.mxu0 %v154
  %203 = vmatprep.subr.bf16.mxu0 %v158
  %204 = vmatpush1.bf16.msra.mxu0 %v157
  %205 = vmatprep.subr.bf16.mxu0 %v161
  %206 = vmatpush1.bf16.msra.mxu0 %v160
  %207 = vmatprep.subr.bf16.mxu0 %v164
  %208 = vmatpush1.bf16.msra.mxu0 %v163
  %209 = vmatprep.subr.bf16.mxu0 %v167
  %210 = vmatpush1.bf16.msra.mxu0 %v166
  %211 = vmatprep.subr.bf16.mxu0 %v170
  %212 = vmatpush1.bf16.msra.mxu0 %v169
  %213 = vmatprep.subr.bf16.mxu0 %v173
  %214 = vmatpush1.bf16.msra.mxu0 %v172
  %215 = vmatprep.subr.bf16.mxu0 0
  %216 = vmatpush1.bf16.msra.mxu0 0
  %217 = vmatprep.subr.bf16.mxu0 0
  %218 = vmatpush1.bf16.msra.mxu0 0
  %219 = vmatprep.subr.bf16.mxu0 0
  %220 = vmatpush1.bf16.msra.mxu0 0
  %221 = vmatprep.subr.bf16.mxu0 0
  %222 = vmatpush1.bf16.msra.mxu0 0
  %223 = vmatprep.subr.bf16.mxu0 0
  %224 = vmatpush1.bf16.msra.mxu0 0
  %225 = vmatprep.subr.bf16.mxu0 0
  %226 = vmatpush1.bf16.msra.mxu0 0
  %227 = vmatprep.subr.bf16.mxu0 0
  %228 = vmatpush1.bf16.msra.mxu0 0
  %229 = vmatprep.subr.bf16.mxu0 0
  %230 = vmatpush1.bf16.msra.mxu0 0
  %231 = vmatprep.mubr.bf16.mxu0 0
  %232 = vmatmul.mubr.bf16.gmra.mrb[0].mxu0 %v69
  %v233 = vpop.f32.mrb[0].mxu0
  %v234 = vadd.f32 0.0, %v233
  %v235 = vpop.f32.mrb[0].mxu0
  %v236 = vadd.f32 0.0, %v235
  %v237 = vpop.f32.mrb[0].mxu0
  %v238 = vadd.f32 0.0, %v237
  %v239 = vpop.f32.mrb[0].mxu0
  %v240 = vadd.f32 0.0, %v239
  %241 = vdwg.mxu0
  %242 = vmatprep.subr.bf16.mxu0 0
  %243 = vmatpush1.bf16.msra.mxu0 %v153
  %244 = vmatprep.subr.bf16.mxu0 0
  %245 = vmatpush1.bf16.msra.mxu0 %v156
  %246 = vmatprep.subr.bf16.mxu0 0
  %247 = vmatpush1.bf16.msra.mxu0 %v159
  %248 = vmatprep.subr.bf16.mxu0 0
  %249 = vmatpush1.bf16.msra.mxu0 %v162
  %250 = vmatprep.subr.bf16.mxu0 0
  %251 = vmatpush1.bf16.msra.mxu0 %v165
  %252 = vmatprep.subr.bf16.mxu0 0
  %253 = vmatpush1.bf16.msra.mxu0 %v168
  %254 = vmatprep.subr.bf16.mxu0 0
  %255 = vmatpush1.bf16.msra.mxu0 %v171
  %256 = vmatprep.subr.bf16.mxu0 0
  %257 = vmatpush1.bf16.msra.mxu0 %v174
  %258 = vmatprep.subr.bf16.mxu0 0
  %259 = vmatpush1.bf16.msra.mxu0 0
  %260 = vmatprep.subr.bf16.mxu0 0
  %261 = vmatpush1.bf16.msra.mxu0 0
  %262 = vmatprep.subr.bf16.mxu0 0
  %263 = vmatpush1.bf16.msra.mxu0 0
  %264 = vmatprep.subr.bf16.mxu0 0
  %265 = vmatpush1.bf16.msra.mxu0 0
  %266 = vmatprep.subr.bf16.mxu0 0
  %267 = vmatpush1.bf16.msra.mxu0 0
  %268 = vmatprep.subr.bf16.mxu0 0
  %269 = vmatpush1.bf16.msra.mxu0 0
  %270 = vmatprep.subr.bf16.mxu0 0
  %271 = vmatpush1.bf16.msra.mxu0 0
  %272 = vmatprep.subr.bf16.mxu0 0
  %273 = vmatpush1.bf16.msra.mxu0 0
  %274 = vmatprep.mubr.bf16.mxu0 0
  %275 = vmatmul.mubr.bf16.gmra.mrb[0].mxu0 %v69
  %v276 = vpop.f32.mrb[0].mxu0
  %v277 = vadd.f32 0.0, %v276
  %v278 = vpop.f32.mrb[0].mxu0
  %v279 = vpop.f32.mrb[0].mxu0
  %v280 = vadd.f32 0.0, %v279
  %v281 = vpop.f32.mrb[0].mxu0
  %282 = vdwg.mxu0
  %v283 = vadd.f32 %v25, %v234
  %v284 = vadd.f32 %v26, %v236
  %v285 = vadd.f32 %v27, %v277
  %v286 = vadd.f32 %v28, %v238
  %v287 = vadd.f32 %v29, %v240
  %v288 = vadd.f32 %v30, %v280
  %289 = vst [vmem:[#allocation2] sm:$0xff] %v283
  %290 = vst [vmem:[#allocation2 + $0x8] sm:$0xff] %v284
  %291 = vst [vmem:[#allocation2 + $0x10] sm:$0xff] %v285
  %292 = vst [vmem:[#allocation2 + $0x18] sm:$0xff] %v286
  %293 = vst [vmem:[#allocation2 + $0x20] sm:$0xff] %v287
  %294 = vst [vmem:[#allocation2 + $0x28] sm:$0xff] %v288
  // Predicated region
  $region18: #{decoder_forward.19} parent=0 // pred_check
    %p295 = pneg %p15
  $region19: #{decoder_forward.19} parent=0 // pred_check_branch
    %297 = sbr.rel (%p295) target = $region21
  $region20: #{decoder_forward.19} parent=0 // pred_region
    %v298 = vld [vmem:[#allocation2] sm:$0xff]
    %v299 = vld [vmem:[#allocation2 + $0x8] sm:$0xff]
    %v300 = vld [vmem:[#allocation2 + $0x10] sm:$0xff]
    %v301 = vld [vmem:[#allocation2 + $0x18] sm:$0xff]
    %v302 = vld [vmem:[#allocation2 + $0x20] sm:$0xff]
    %v303 = vld [vmem:[#allocation2 + $0x28] sm:$0xff]
    %v304 = vld [vmem:[%s2] sm:$0x7]
    %v306 = vlaneseq
    %v307 = vshrl.u32 %v306, 7
    %v308 = vsub.s32 0, %v307
    %v309 = vrot.slane %v304, %v308
    %v310 = vlaneseq
    %v311 = vshrl.u32 %v310, 7
    %v312 = vsub.s32 1, %v311
    %v313 = vrot.slane %v304, %v312
    %v314 = vlaneseq
    %v315 = vshrl.u32 %v314, 7
    %v316 = vsub.s32 2, %v315
    %v317 = vrot.slane %v304, %v316
    %v321 = vadd.f32 %v298, %v309
    %v322 = vadd.f32 %v299, %v313
    %v323 = vadd.f32 %v300, %v317
    %v324 = vadd.f32 %v301, %v309
    %v325 = vadd.f32 %v302, %v313
    %v326 = vadd.f32 %v303, %v317
    %v327 = vpack.c.bf16 %v324, %v321
    %v328 = vpack.c.bf16 %v325, %v322
    %v329 = vpack.c.bf16 %v326, %v323
    %v333 = vunpack.c.l.b16 %v327
    %v334 = vunpack.c.l.b16 %v328
    %v335 = vunpack.c.l.b16 %v329
    %v336 = vunpack.c.h.b16 %v327
    %v337 = vunpack.c.h.b16 %v328
    %v338 = vunpack.c.h.b16 %v329
    %v339 = vpack.c.b16 %v334, %v333
    %v340 = vpack.c.b16 %v335, %v335
    %v341 = vpack.c.b16 %v337, %v336
    %v342 = vpack.c.b16 %v338, %v338
    %347 = vst [vmem:[%s3] sm:$0xff] %v339
    %348 = vst [vmem:[%s3 + $0x8] sm:$0xf] %v340
    %349 = vst [vmem:[%s3 + $0xc] sm:$0xff] %v341
    %350 = vst [vmem:[%s3 + $0x14] sm:$0xf] %v342
  $region21: #{decoder_forward.19} parent=0 // pred_fallthru
    _
  // Predicated region
  $region22: #{decoder_forward.19} parent=0 // pred_check
    _
  $region23: #{decoder_forward.19} parent=0 // pred_check_branch
    %352 = sbr.rel (0) target = $region25
  $region24: #{decoder_forward.19} parent=0 // pred_region
    _
  $region25: #{decoder_forward.19} parent=0 // pred_fallthru
    _
  // Predicated region
  $region26: #{decoder_forward.19} parent=0 // pred_check
    _
  $region27: #{decoder_forward.19} parent=0 // pred_check_branch
    %354 = sbr.rel (0) target = $region29
  $region28: #{decoder_forward.19} parent=0 // pred_region
    _
  $region29: #{decoder_forward.19} parent=0 // pred_fallthru
    _

// kernel: decoder_forward.22
$region0: #{decoder_forward.22}
  #allocation0 [shape = 'u32[]', space=smem, size = 0x4, offset = 0x4, fixed_abs, tag = 'smem constant byte address 0x4 - core index']
  #allocation1 [shape = 'u32[144,128]{1,0:T(1,128)}', space=vmem, size = 0x12000, scoped, tag = 'internal scratch']
  #allocation2 [shape = 'f32[16,128]{1,0:T(8,128)}', space=vmem, size = 0x2000, scoped, tag = 'scratch operand']
  %s0 = inlined_call_operand.vmem [shape: bf16[16,128], index: 0, kind: input, shape index: {}]
  %s1 = inlined_call_operand.vmem [shape: bf16[128,128], index: 1, kind: input, shape index: {}]
  %s2 = inlined_call_operand.vmem [shape: f32[1,128], index: 2, kind: input, shape index: {}]
  %s3 = inlined_call_operand.vmem [shape: bf16[16,128], index: 3, kind: output, shape index: {}]
  %s4 = sld [smem:[#allocation0]]
  $region30: #{decoder_forward.22} parent=0
    _
  %s6 = ssub.s32 1, %s4
  %s7 = scalar_select 0, %s6, %s4
  // Predicated region
  $region2: #{decoder_forward.22} parent=0 // pred_check
    _
  $region3: #{decoder_forward.22} parent=0 // pred_check_branch
    %9 = sbr.rel (0) target = $region5
  $region4: #{decoder_forward.22} parent=0 // pred_region
    _
  $region5: #{decoder_forward.22} parent=0 // pred_fallthru
    _
  // Predicated region
  $region6: #{decoder_forward.22} parent=0 // pred_check
    _
  $region7: #{decoder_forward.22} parent=0 // pred_check_branch
    %11 = sbr.rel (0) target = $region9
  $region8: #{decoder_forward.22} parent=0 // pred_region
    _
  $region9: #{decoder_forward.22} parent=0 // pred_fallthru
    _
  // Predicated region
  $region10: #{decoder_forward.22} parent=0 // pred_check
    _
  $region11: #{decoder_forward.22} parent=0 // pred_check_branch
    %13 = sbr.rel (0) target = $region13
  $region12: #{decoder_forward.22} parent=0 // pred_region
    _
  $region13: #{decoder_forward.22} parent=0 // pred_fallthru
    _
  %p15 = scmp.eq.s32.totalorder 0, 0
  // Predicated region
  $region14: #{decoder_forward.22} parent=0 // pred_check
    %p16 = pneg %p15
  $region15: #{decoder_forward.22} parent=0 // pred_check_branch
    %18 = sbr.rel (%p16) target = $region17
  $region16: #{decoder_forward.22} parent=0 // pred_region
    %19 = vst [vmem:[#allocation2] sm:$0xff] 0.0
    %20 = vst [vmem:[#allocation2 + $0x8] sm:$0xff] 0.0
  $region17: #{decoder_forward.22} parent=0 // pred_fallthru
    _
  %v21 = vld [vmem:[#allocation2] sm:$0xff]
  %v22 = vld [vmem:[#allocation2 + $0x8] sm:$0xff]
  %v23 = vld [vmem:[%s0] sm:$0xf]
  %v24 = vld [vmem:[%s0 + $0x4] sm:$0xf]
  %v25 = vld [vmem:[%s1] sm:$0xf]
  %v26 = vld [vmem:[%s1 + $0x4] sm:$0xf]
  %v27 = vld [vmem:[%s1 + $0x8] sm:$0xf]
  %v28 = vld [vmem:[%s1 + $0xc] sm:$0xf]
  %v29 = vld [vmem:[%s1 + $0x10] sm:$0xf]
  %v30 = vld [vmem:[%s1 + $0x14] sm:$0xf]
  %v31 = vld [vmem:[%s1 + $0x18] sm:$0xf]
  %v32 = vld [vmem:[%s1 + $0x1c] sm:$0xf]
  %v33 = vld [vmem:[%s1 + $0x20] sm:$0xf]
  %v34 = vld [vmem:[%s1 + $0x24] sm:$0xf]
  %v35 = vld [vmem:[%s1 + $0x28] sm:$0xf]
  %v36 = vld [vmem:[%s1 + $0x2c] sm:$0xf]
  %v37 = vld [vmem:[%s1 + $0x30] sm:$0xf]
  %v38 = vld [vmem:[%s1 + $0x34] sm:$0xf]
  %v39 = vld [vmem:[%s1 + $0x38] sm:$0xf]
  %v40 = vld [vmem:[%s1 + $0x3c] sm:$0xf]
  %v43 = vunpack.c.l.b16 %v23
  %v44 = vunpack.c.l.b16 %v24
  %v45 = vpack.c.b16 %v44, %v43
  %v63 = vunpack.c.l.b16 %v25
  %v64 = vunpack.c.l.b16 %v26
  %v65 = vunpack.c.l.b16 %v27
  %v66 = vunpack.c.l.b16 %v28
  %v67 = vunpack.c.l.b16 %v29
  %v68 = vunpack.c.l.b16 %v30
  %v69 = vunpack.c.l.b16 %v31
  %v70 = vunpack.c.l.b16 %v32
  %v71 = vunpack.c.l.b16 %v33
  %v72 = vunpack.c.l.b16 %v34
  %v73 = vunpack.c.l.b16 %v35
  %v74 = vunpack.c.l.b16 %v36
  %v75 = vunpack.c.l.b16 %v37
  %v76 = vunpack.c.l.b16 %v38
  %v77 = vunpack.c.l.b16 %v39
  %v78 = vunpack.c.l.b16 %v40
  %v79 = vpack.c.b16 %v64, %v63
  %v80 = vpack.c.b16 %v66, %v65
  %v81 = vpack.c.b16 %v68, %v67
  %v82 = vpack.c.b16 %v70, %v69
  %v83 = vpack.c.b16 %v72, %v71
  %v84 = vpack.c.b16 %v74, %v73
  %v85 = vpack.c.b16 %v76, %v75
  %v86 = vpack.c.b16 %v78, %v77
  %95 = vmatprep.subr.bf16.mxu0 0
  %96 = vmatpush1.bf16.msra.mxu0 %v79
  %97 = vmatprep.subr.bf16.mxu0 0
  %98 = vmatpush1.bf16.msra.mxu0 %v80
  %99 = vmatprep.subr.bf16.mxu0 0
  %100 = vmatpush1.bf16.msra.mxu0 %v81
  %101 = vmatprep.subr.bf16.mxu0 0
  %102 = vmatpush1.bf16.msra.mxu0 %v82
  %103 = vmatprep.subr.bf16.mxu0 0
  %104 = vmatpush1.bf16.msra.mxu0 %v83
  %105 = vmatprep.subr.bf16.mxu0 0
  %106 = vmatpush1.bf16.msra.mxu0 %v84
  %107 = vmatprep.subr.bf16.mxu0 0
  %108 = vmatpush1.bf16.msra.mxu0 %v85
  %109 = vmatprep.subr.bf16.mxu0 0
  %110 = vmatpush1.bf16.msra.mxu0 %v86
  %111 = vmatprep.subr.bf16.mxu0 0
  %112 = vmatpush1.bf16.msra.mxu0 0
  %113 = vmatprep.subr.bf16.mxu0 0
  %114 = vmatpush1.bf16.msra.mxu0 0
  %115 = vmatprep.subr.bf16.mxu0 0
  %116 = vmatpush1.bf16.msra.mxu0 0
  %117 = vmatprep.subr.bf16.mxu0 0
  %118 = vmatpush1.bf16.msra.mxu0 0
  %119 = vmatprep.subr.bf16.mxu0 0
  %120 = vmatpush1.bf16.msra.mxu0 0
  %121 = vmatprep.subr.bf16.mxu0 0
  %122 = vmatpush1.bf16.msra.mxu0 0
  %123 = vmatprep.subr.bf16.mxu0 0
  %124 = vmatpush1.bf16.msra.mxu0 0
  %125 = vmatprep.subr.bf16.mxu0 0
  %126 = vmatpush1.bf16.msra.mxu0 0
  %127 = vmatprep.mubr.bf16.mxu0 0
  %128 = vmatmul.mubr.bf16.gmra.mrb[0].mxu0 %v45
  %v129 = vpop.f32.mrb[0].mxu0
  %v130 = vadd.f32 0.0, %v129
  %v131 = vpop.f32.mrb[0].mxu0
  %v132 = vpop.f32.mrb[0].mxu0
  %v133 = vadd.f32 0.0, %v132
  %v134 = vpop.f32.mrb[0].mxu0
  %135 = vdwg.mxu0
  %v136 = vadd.f32 %v21, %v130
  %v137 = vadd.f32 %v22, %v133
  %138 = vst [vmem:[#allocation2] sm:$0xff] %v136
  %139 = vst [vmem:[#allocation2 + $0x8] sm:$0xff] %v137
  // Predicated region
  $region18: #{decoder_forward.22} parent=0 // pred_check
    %p140 = pneg %p15
  $region19: #{decoder_forward.22} parent=0 // pred_check_branch
    %142 = sbr.rel (%p140) target = $region21
  $region20: #{decoder_forward.22} parent=0 // pred_region
    %v143 = vld [vmem:[#allocation2] sm:$0xff]
    %v144 = vld [vmem:[#allocation2 + $0x8] sm:$0xff]
    %v145 = vld [vmem:[%s2] sm:$0x1]
    %v147 = vlaneseq
    %v148 = vshrl.u32 %v147, 7
    %v149 = vsub.s32 0, %v148
    %v150 = vrot.slane %v145, %v149
    %v152 = vadd.f32 %v143, %v150
    %v153 = vadd.f32 %v144, %v150
    %v154 = vpack.c.bf16 %v153, %v152
    %v156 = vunpack.c.l.b16 %v154
    %v157 = vunpack.c.h.b16 %v154
    %v158 = vpack.c.b16 %v156, %v156
    %v159 = vpack.c.b16 %v157, %v157
    %162 = vst [vmem:[%s3] sm:$0xf] %v158
    %163 = vst [vmem:[%s3 + $0x4] sm:$0xf] %v159
  $region21: #{decoder_forward.22} parent=0 // pred_fallthru
    _
  // Predicated region
  $region22: #{decoder_forward.22} parent=0 // pred_check
    _
  $region23: #{decoder_forward.22} parent=0 // pred_check_branch
    %165 = sbr.rel (0) target = $region25
  $region24: #{decoder_forward.22} parent=0 // pred_region
    _
  $region25: #{decoder_forward.22} parent=0 // pred_fallthru
    _
  // Predicated region
  $region26: #{decoder_forward.22} parent=0 // pred_check
    _
  $region27: #{decoder_forward.22} parent=0 // pred_check_branch
    %167 = sbr.rel (0) target = $region29
  $region28: #{decoder_forward.22} parent=0 // pred_region
    _
  $region29: #{decoder_forward.22} parent=0 // pred_fallthru
    _

// kernel: decoder_forward.21
$region0: #{decoder_forward.21}
  #allocation0 [shape = 'u32[]', space=smem, size = 0x4, offset = 0x4, fixed_abs, tag = 'smem constant byte address 0x4 - core index']
  #allocation1 [shape = 'u32[144,128]{1,0:T(1,128)}', space=vmem, size = 0x12000, scoped, tag = 'internal scratch']
  #allocation2 [shape = 'f32[16,128]{1,0:T(8,128)}', space=vmem, size = 0x2000, scoped, tag = 'scratch operand']
  %s0 = inlined_call_operand.vmem [shape: bf16[16,128], index: 0, kind: input, shape index: {}]
  %s1 = inlined_call_operand.vmem [shape: bf16[128,128], index: 1, kind: input, shape index: {}]
  %s2 = inlined_call_operand.vmem [shape: f32[1,128], index: 2, kind: input, shape index: {}]
  %s3 = inlined_call_operand.vmem [shape: bf16[16,128], index: 3, kind: input, shape index: {}]
  %s4 = inlined_call_operand.vmem [shape: f32[1,128], index: 4, kind: input, shape index: {}]
  %s5 = inlined_call_operand.vmem [shape: f32[1,128], index: 5, kind: input, shape index: {}]
  %s6 = inlined_call_operand.vmem [shape: bf16[16,128], index: 6, kind: output, shape index: {}]
  %s7 = sld [smem:[#allocation0]]
  $region42: #{decoder_forward.21} parent=0
    _
  %s9 = ssub.s32 1, %s7
  %s10 = scalar_select 0, %s9, %s7
  // Predicated region
  $region2: #{decoder_forward.21} parent=0 // pred_check
    _
  $region3: #{decoder_forward.21} parent=0 // pred_check_branch
    %12 = sbr.rel (0) target = $region5
  $region4: #{decoder_forward.21} parent=0 // pred_region
    _
  $region5: #{decoder_forward.21} parent=0 // pred_fallthru
    _
  // Predicated region
  $region6: #{decoder_forward.21} parent=0 // pred_check
    _
  $region7: #{decoder_forward.21} parent=0 // pred_check_branch
    %14 = sbr.rel (0) target = $region9
  $region8: #{decoder_forward.21} parent=0 // pred_region
    _
  $region9: #{decoder_forward.21} parent=0 // pred_fallthru
    _
  // Predicated region
  $region10: #{decoder_forward.21} parent=0 // pred_check
    _
  $region11: #{decoder_forward.21} parent=0 // pred_check_branch
    %16 = sbr.rel (0) target = $region13
  $region12: #{decoder_forward.21} parent=0 // pred_region
    _
  $region13: #{decoder_forward.21} parent=0 // pred_fallthru
    _
  // Predicated region
  $region14: #{decoder_forward.21} parent=0 // pred_check
    _
  $region15: #{decoder_forward.21} parent=0 // pred_check_branch
    %18 = sbr.rel (0) target = $region17
  $region16: #{decoder_forward.21} parent=0 // pred_region
    _
  $region17: #{decoder_forward.21} parent=0 // pred_fallthru
    _
  // Predicated region
  $region18: #{decoder_forward.21} parent=0 // pred_check
    _
  $region19: #{decoder_forward.21} parent=0 // pred_check_branch
    %20 = sbr.rel (0) target = $region21
  $region20: #{decoder_forward.21} parent=0 // pred_region
    _
  $region21: #{decoder_forward.21} parent=0 // pred_fallthru
    _
  // Predicated region
  $region22: #{decoder_forward.21} parent=0 // pred_check
    _
  $region23: #{decoder_forward.21} parent=0 // pred_check_branch
    %22 = sbr.rel (0) target = $region25
  $region24: #{decoder_forward.21} parent=0 // pred_region
    _
  $region25: #{decoder_forward.21} parent=0 // pred_fallthru
    _
  %p24 = scmp.eq.s32.totalorder 0, 0
  // Predicated region
  $region26: #{decoder_forward.21} parent=0 // pred_check
    %p25 = pneg %p24
  $region27: #{decoder_forward.21} parent=0 // pred_check_branch
    %27 = sbr.rel (%p25) target = $region29
  $region28: #{decoder_forward.21} parent=0 // pred_region
    %28 = vst [vmem:[#allocation2] sm:$0xff] 0.0
    %29 = vst [vmem:[#allocation2 + $0x8] sm:$0xff] 0.0
  $region29: #{decoder_forward.21} parent=0 // pred_fallthru
    _
  %v30 = vld [vmem:[#allocation2] sm:$0xff]
  %v31 = vld [vmem:[#allocation2 + $0x8] sm:$0xff]
  %v32 = vld [vmem:[%s0] sm:$0xf]
  %v33 = vld [vmem:[%s0 + $0x4] sm:$0xf]
  %v34 = vld [vmem:[%s1] sm:$0xf]
  %v35 = vld [vmem:[%s1 + $0x4] sm:$0xf]
  %v36 = vld [vmem:[%s1 + $0x8] sm:$0xf]
  %v37 = vld [vmem:[%s1 + $0xc] sm:$0xf]
  %v38 = vld [vmem:[%s1 + $0x10] sm:$0xf]
  %v39 = vld [vmem:[%s1 + $0x14] sm:$0xf]
  %v40 = vld [vmem:[%s1 + $0x18] sm:$0xf]
  %v41 = vld [vmem:[%s1 + $0x1c] sm:$0xf]
  %v42 = vld [vmem:[%s1 + $0x20] sm:$0xf]
  %v43 = vld [vmem:[%s1 + $0x24] sm:$0xf]
  %v44 = vld [vmem:[%s1 + $0x28] sm:$0xf]
  %v45 = vld [vmem:[%s1 + $0x2c] sm:$0xf]
  %v46 = vld [vmem:[%s1 + $0x30] sm:$0xf]
  %v47 = vld [vmem:[%s1 + $0x34] sm:$0xf]
  %v48 = vld [vmem:[%s1 + $0x38] sm:$0xf]
  %v49 = vld [vmem:[%s1 + $0x3c] sm:$0xf]
  %v52 = vunpack.c.l.b16 %v32
  %v53 = vunpack.c.l.b16 %v33
  %v54 = vpack.c.b16 %v53, %v52
  %v72 = vunpack.c.l.b16 %v34
  %v73 = vunpack.c.l.b16 %v35
  %v74 = vunpack.c.l.b16 %v36
  %v75 = vunpack.c.l.b16 %v37
  %v76 = vunpack.c.l.b16 %v38
  %v77 = vunpack.c.l.b16 %v39
  %v78 = vunpack.c.l.b16 %v40
  %v79 = vunpack.c.l.b16 %v41
  %v80 = vunpack.c.l.b16 %v42
  %v81 = vunpack.c.l.b16 %v43
  %v82 = vunpack.c.l.b16 %v44
  %v83 = vunpack.c.l.b16 %v45
  %v84 = vunpack.c.l.b16 %v46
  %v85 = vunpack.c.l.b16 %v47
  %v86 = vunpack.c.l.b16 %v48
  %v87 = vunpack.c.l.b16 %v49
  %v88 = vpack.c.b16 %v73, %v72
  %v89 = vpack.c.b16 %v75, %v74
  %v90 = vpack.c.b16 %v77, %v76
  %v91 = vpack.c.b16 %v79, %v78
  %v92 = vpack.c.b16 %v81, %v80
  %v93 = vpack.c.b16 %v83, %v82
  %v94 = vpack.c.b16 %v85, %v84
  %v95 = vpack.c.b16 %v87, %v86
  %104 = vmatprep.subr.bf16.mxu0 0
  %105 = vmatpush1.bf16.msra.mxu0 %v88
  %106 = vmatprep.subr.bf16.mxu0 0
  %107 = vmatpush1.bf16.msra.mxu0 %v89
  %108 = vmatprep.subr.bf16.mxu0 0
  %109 = vmatpush1.bf16.msra.mxu0 %v90
  %110 = vmatprep.subr.bf16.mxu0 0
  %111 = vmatpush1.bf16.msra.mxu0 %v91
  %112 = vmatprep.subr.bf16.mxu0 0
  %113 = vmatpush1.bf16.msra.mxu0 %v92
  %114 = vmatprep.subr.bf16.mxu0 0
  %115 = vmatpush1.bf16.msra.mxu0 %v93
  %116 = vmatprep.subr.bf16.mxu0 0
  %117 = vmatpush1.bf16.msra.mxu0 %v94
  %118 = vmatprep.subr.bf16.mxu0 0
  %119 = vmatpush1.bf16.msra.mxu0 %v95
  %120 = vmatprep.subr.bf16.mxu0 0
  %121 = vmatpush1.bf16.msra.mxu0 0
  %122 = vmatprep.subr.bf16.mxu0 0
  %123 = vmatpush1.bf16.msra.mxu0 0
  %124 = vmatprep.subr.bf16.mxu0 0
  %125 = vmatpush1.bf16.msra.mxu0 0
  %126 = vmatprep.subr.bf16.mxu0 0
  %127 = vmatpush1.bf16.msra.mxu0 0
  %128 = vmatprep.subr.bf16.mxu0 0
  %129 = vmatpush1.bf16.msra.mxu0 0
  %130 = vmatprep.subr.bf16.mxu0 0
  %131 = vmatpush1.bf16.msra.mxu0 0
  %132 = vmatprep.subr.bf16.mxu0 0
  %133 = vmatpush1.bf16.msra.mxu0 0
  %134 = vmatprep.subr.bf16.mxu0 0
  %135 = vmatpush1.bf16.msra.mxu0 0
  %136 = vmatprep.mubr.bf16.mxu0 0
  %137 = vmatmul.mubr.bf16.gmra.mrb[0].mxu0 %v54
  %v138 = vpop.f32.mrb[0].mxu0
  %v139 = vadd.f32 0.0, %v138
  %v140 = vpop.f32.mrb[0].mxu0
  %v141 = vpop.f32.mrb[0].mxu0
  %v142 = vadd.f32 0.0, %v141
  %v143 = vpop.f32.mrb[0].mxu0
  %144 = vdwg.mxu0
  %v145 = vadd.f32 %v30, %v139
  %v146 = vadd.f32 %v31, %v142
  %147 = vst [vmem:[#allocation2] sm:$0xff] %v145
  %148 = vst [vmem:[#allocation2 + $0x8] sm:$0xff] %v146
  // Predicated region
  $region30: #{decoder_forward.21} parent=0 // pred_check
    %p149 = pneg %p24
  $region31: #{decoder_forward.21} parent=0 // pred_check_branch
    %151 = sbr.rel (%p149) target = $region33
  $region32: #{decoder_forward.21} parent=0 // pred_region
    %v152 = vld [vmem:[#allocation2] sm:$0xff]
    %v153 = vld [vmem:[#allocation2 + $0x8] sm:$0xff]
    %v154 = vld [vmem:[%s2] sm:$0x1]
    %v156 = vlaneseq
    %v157 = vshrl.u32 %v156, 7
    %v158 = vsub.s32 0, %v157
    %v159 = vrot.slane %v154, %v158
    %v161 = vadd.f32 %v152, %v159
    %v162 = vadd.f32 %v153, %v159
    %v163 = vld [vmem:[%s3] sm:$0xf]
    %v164 = vld [vmem:[%s3 + $0x4] sm:$0xf]
    %v165 = vunpack.c.l.bf16 %v163
    %v166 = vunpack.c.l.bf16 %v164
    %v167 = vadd.f32 %v161, %v165
    %v168 = vadd.f32 %v162, %v166
    %169 = vadd.xlane.f32.xlu0 %v167
    %v170 = vpop.xlane.xlu0 %169
    %171 = vadd.xlane.f32.xlu0 %v168
    %v172 = vpop.xlane.xlu0 %171
    %v173 = vrcp.pop 128.0
    %v174 = vmul.f32 %v170, %v173
    %v175 = vmul.f32 %v172, %v173
    %v176 = vsub.f32 %v167, %v174
    %v177 = vsub.f32 %v168, %v175
    %v178 = vmul.f32 %v176, %v176
    %v179 = vmul.f32 %v177, %v177
    %180 = vadd.xlane.f32.xlu0 %v178
    %v181 = vpop.xlane.xlu0 %180
    %182 = vadd.xlane.f32.xlu0 %v179
    %v183 = vpop.xlane.xlu0 %182
    %v184 = vmul.f32 %v181, %v173
    %v185 = vmul.f32 %v183, %v173
    %v186 = vadd.f32 %v184, 1e-12
    %v187 = vadd.f32 %v185, 1e-12
    %v188 = vrsqrt.pop %v186
    %v189 = vrsqrt.pop %v187
    %v190 = vld [vmem:[%s4] sm:$0x1]
    %v191 = vmul.f32 %v176, %v188
    %v192 = vmul.f32 %v177, %v189
    %v194 = vlaneseq
    %v195 = vshrl.u32 %v194, 7
    %v196 = vsub.s32 0, %v195
    %v197 = vrot.slane %v190, %v196
    %v199 = vmul.f32 %v197, %v191
    %v200 = vmul.f32 %v197, %v192
    %v201 = vld [vmem:[%s5] sm:$0x1]
    %v203 = vlaneseq
    %v204 = vshrl.u32 %v203, 7
    %v205 = vsub.s32 0, %v204
    %v206 = vrot.slane %v201, %v205
    %v208 = vadd.f32 %v199, %v206
    %v209 = vadd.f32 %v200, %v206
    %v210 = vpack.c.bf16 %v209, %v208
    %v212 = vunpack.c.l.b16 %v210
    %v213 = vunpack.c.h.b16 %v210
    %v214 = vpack.c.b16 %v212, %v212
    %v215 = vpack.c.b16 %v213, %v213
    %218 = vst [vmem:[%s6] sm:$0xf] %v214
    %219 = vst [vmem:[%s6 + $0x4] sm:$0xf] %v215
  $region33: #{decoder_forward.21} parent=0 // pred_fallthru
    _
  // Predicated region
  $region34: #{decoder_forward.21} parent=0 // pred_check
    _
  $region35: #{decoder_forward.21} parent=0 // pred_check_branch
    %221 = sbr.rel (0) target = $region37
  $region36: #{decoder_forward.21} parent=0 // pred_region
    _
  $region37: #{decoder_forward.21} parent=0 // pred_fallthru
    _
  // Predicated region
  $region38: #{decoder_forward.21} parent=0 // pred_check
    _
  $region39: #{decoder_forward.21} parent=0 // pred_check_branch
    %223 = sbr.rel (0) target = $region41
  $region40: #{decoder_forward.21} parent=0 // pred_region
    _
  $region41: #{decoder_forward.21} parent=0 // pred_fallthru
    _

// kernel: decoder_forward.20
$region0: #{decoder_forward.20}
  #allocation0 [shape = 'u32[]', space=smem, size = 0x4, offset = 0x4, fixed_abs, tag = 'smem constant byte address 0x4 - core index']
  #allocation1 [shape = 'u32[144,128]{1,0:T(1,128)}', space=vmem, size = 0x12000, scoped, tag = 'internal scratch']
  #allocation2 [shape = 'f32[4,8,1]{2,1,0:T(8,128)}', space=vmem, size = 0x4000, scoped, tag = 'scratch operand']
  #allocation3 [shape = 'f32[4,8,1]{2,1,0:T(8,128)}', space=vmem, size = 0x4000, scoped, tag = 'scratch operand']
  #allocation4 [shape = 'f32[8,128]{1,0:T(8,128)}', space=vmem, size = 0x1000, scoped, tag = 'scratch operand']
  %s0 = inlined_call_operand.vmem [shape: bf16[2,8,1], index: 0, kind: input, shape index: {}]
  %s1 = inlined_call_operand.vmem [shape: bf16[2,1,8], index: 1, kind: input, shape index: {}]
  %s2 = inlined_call_operand.vmem [shape: bf16[2,8,384], index: 2, kind: input, shape index: {}, may-alias: {2,3,4}]
  %s3 = inlined_call_operand.vmem [shape: bf16[2,8,384], index: 3, kind: input, shape index: {}, may-alias: {2,3,4}]
  %s4 = inlined_call_operand.vmem [shape: bf16[2,8,384], index: 4, kind: input, shape index: {}, may-alias: {2,3,4}]
  %s5 = inlined_call_operand.vmem [shape: bf16[2,8,128], index: 5, kind: output, shape index: {}]
  %s6 = sld [smem:[#allocation0]]
  $region61: #{decoder_forward.20} parent=0
    _
  %s8 = ssub.s32 1, %s6
  %s9 = scalar_select 0, %s8, %s6
  loop: start=0, step=1, limit=4
  $region2: #{decoder_forward.20} parent=0 // loop_pre_header
    _
  $region3: #{decoder_forward.20} parent=0 // loop_header
    %s11 = sphi 0, %s15
    %p12 = scmp.ge.s32.totalorder %s11, 4
    %s18 = sphi 0, %s37
    %s19 = sphi 0, %s33
    %s20 = sphi 0, %s29
    %s21 = sphi 0, %s18
    %s22 = sphi 0, %s19
    %s23 = sphi 0, %s20
    %s24 = sphi 0, %s21
    %s25 = sphi 0, %s22
    %s26 = sphi 0, %s23
    %s42 = sphi 0, %s44
    %s45 = sphi 0, %s42
    %s46 = sphi 0, %s45
    %s62 = sphi 0, %s46
    %s70 = sphi 0, %s72
    %s73 = sphi 0, %s70
    %s74 = sphi 0, %s73
    %s90 = sphi 0, %s74
    %s98 = sphi 0, %s100
    %s101 = sphi 0, %s98
    %s102 = sphi 0, %s101
    %s118 = sphi 0, %s102
    %s126 = sphi 0, %s128
    %s129 = sphi 0, %s126
    %s130 = sphi 0, %s129
    %s146 = sphi 0, %s130
    %s154 = sphi 0, %s156
    %s157 = sphi 0, %s154
    %s158 = sphi 0, %s157
    %s174 = sphi 0, %s158
    %s182 = sphi 0, %s184
    %s185 = sphi 0, %s182
    %s186 = sphi 0, %s185
    %s202 = sphi 0, %s186
  $region4: #{decoder_forward.20} parent=0 // loop_header_branch
    %14 = sbr.rel (%p12) target = $region8
  $region5: #{decoder_forward.20} parent=0 // loop_body
    %s16 = ssub.s32 %s11, 1
    %s17 = ssub.s32 %s11, 2
    %s27 = sadd.s32 1, %s20
    %p28 = scmp.ge.s32.totalorder %s27, 1
    %s29 = scalar_select %p28, 0, %s27
    %s30 = sadd.s32 1, %s19
    %s31 = scalar_select %p28, %s30, %s19
    %p32 = scmp.ge.s32.totalorder %s31, 1
    %s33 = scalar_select %p32, 0, %s31
    %s34 = sadd.s32 1, %s18
    %s35 = scalar_select %p32, %s34, %s18
    %p36 = scmp.ge.s32.totalorder %s35, 2
    %s37 = scalar_select %p36, 0, %s35
    %s38 = ssub.s32 %s18, %s37
    %s39 = ssub.s32 %s19, %s33
    %s40 = sor.u32 %s38, %s39
    %p41 = scmp.eq.s32.totalorder %s40, 0
    %s43 = sadd.s32 %s42, 1
    %s44 = scalar_select %p41, %s42, %s43
    %p47 = pneg %p41
    %p48 = scmp.eq.s32.totalorder %s11, 1
    %p49 = por %p47, %p48
    %p50 = scmp.ne.s32.totalorder %s42, %s45
    %p51 = scmp.eq.s32.totalorder %s11, 0
    %p52 = por %p50, %p51
    %p53 = scmp.ne.s32.totalorder %s42, %s45
    %p54 = scmp.eq.s32.totalorder %s16, 1
    %p55 = por %p53, %p54
    %p56 = scmp.ne.s32.totalorder %s45, %s46
    %p57 = scmp.eq.s32.totalorder %s16, 0
    %p58 = por %p56, %p57
    %p59 = scmp.ne.s32.totalorder %s45, %s46
    %p60 = scmp.eq.s32.totalorder %s17, 1
    %p61 = por %p59, %p60
    %p63 = scmp.ne.s32.totalorder %s46, %s62
    %p64 = scmp.eq.s32.totalorder %s17, 0
    %p65 = por %p63, %p64
    %s66 = ssub.s32 %s18, %s37
    %s67 = ssub.s32 %s20, %s29
    %s68 = sor.u32 %s66, %s67
    %p69 = scmp.eq.s32.totalorder %s68, 0
    %s71 = sadd.s32 %s70, 1
    %s72 = scalar_select %p69, %s70, %s71
    %p75 = pneg %p69
    %p76 = scmp.eq.s32.totalorder %s11, 1
    %p77 = por %p75, %p76
    %p78 = scmp.ne.s32.totalorder %s70, %s73
    %p79 = scmp.eq.s32.totalorder %s11, 0
    %p80 = por %p78, %p79
    %p81 = scmp.ne.s32.totalorder %s70, %s73
    %p82 = scmp.eq.s32.totalorder %s16, 1
    %p83 = por %p81, %p82
    %p84 = scmp.ne.s32.totalorder %s73, %s74
    %p85 = scmp.eq.s32.totalorder %s16, 0
    %p86 = por %p84, %p85
    %p87 = scmp.ne.s32.totalorder %s73, %s74
    %p88 = scmp.eq.s32.totalorder %s17, 1
    %p89 = por %p87, %p88
    %p91 = scmp.ne.s32.totalorder %s74, %s90
    %p92 = scmp.eq.s32.totalorder %s17, 0
    %p93 = por %p91, %p92
    %s94 = ssub.s32 %s18, %s37
    %s95 = ssub.s32 %s19, %s33
    %s96 = sor.u32 %s94, %s95
    %p97 = scmp.eq.s32.totalorder %s96, 0
    %s99 = sadd.s32 %s98, 1
    %s100 = scalar_select %p97, %s98, %s99
    %p103 = pneg %p97
    %p104 = scmp.eq.s32.totalorder %s11, 1
    %p105 = por %p103, %p104
    %p106 = scmp.ne.s32.totalorder %s98, %s101
    %p107 = scmp.eq.s32.totalorder %s11, 0
    %p108 = por %p106, %p107
    %p109 = scmp.ne.s32.totalorder %s98, %s101
    %p110 = scmp.eq.s32.totalorder %s16, 1
    %p111 = por %p109, %p110
    %p112 = scmp.ne.s32.totalorder %s101, %s102
    %p113 = scmp.eq.s32.totalorder %s16, 0
    %p114 = por %p112, %p113
    %p115 = scmp.ne.s32.totalorder %s101, %s102
    %p116 = scmp.eq.s32.totalorder %s17, 1
    %p117 = por %p115, %p116
    %p119 = scmp.ne.s32.totalorder %s102, %s118
    %p120 = scmp.eq.s32.totalorder %s17, 0
    %p121 = por %p119, %p120
    %s122 = ssub.s32 %s18, %s37
    %s123 = ssub.s32 %s20, %s29
    %s124 = sor.u32 %s122, %s123
    %p125 = scmp.eq.s32.totalorder %s124, 0
    %s127 = sadd.s32 %s126, 1
    %s128 = scalar_select %p125, %s126, %s127
    %p131 = pneg %p125
    %p132 = scmp.eq.s32.totalorder %s11, 1
    %p133 = por %p131, %p132
    %p134 = scmp.ne.s32.totalorder %s126, %s129
    %p135 = scmp.eq.s32.totalorder %s11, 0
    %p136 = por %p134, %p135
    %p137 = scmp.ne.s32.totalorder %s126, %s129
    %p138 = scmp.eq.s32.totalorder %s16, 1
    %p139 = por %p137, %p138
    %p140 = scmp.ne.s32.totalorder %s129, %s130
    %p141 = scmp.eq.s32.totalorder %s16, 0
    %p142 = por %p140, %p141
    %p143 = scmp.ne.s32.totalorder %s129, %s130
    %p144 = scmp.eq.s32.totalorder %s17, 1
    %p145 = por %p143, %p144
    %p147 = scmp.ne.s32.totalorder %s130, %s146
    %p148 = scmp.eq.s32.totalorder %s17, 0
    %p149 = por %p147, %p148
    %s150 = ssub.s32 %s18, %s37
    %s151 = ssub.s32 %s20, %s29
    %s152 = sor.u32 %s150, %s151
    %p153 = scmp.eq.s32.totalorder %s152, 0
    %s155 = sadd.s32 %s154, 1
    %s156 = scalar_select %p153, %s154, %s155
    %p159 = pneg %p153
    %p160 = scmp.eq.s32.totalorder %s11, 1
    %p161 = por %p159, %p160
    %p162 = scmp.ne.s32.totalorder %s154, %s157
    %p163 = scmp.eq.s32.totalorder %s11, 0
    %p164 = por %p162, %p163
    %p165 = scmp.ne.s32.totalorder %s154, %s157
    %p166 = scmp.eq.s32.totalorder %s16, 1
    %p167 = por %p165, %p166
    %p168 = scmp.ne.s32.totalorder %s157, %s158
    %p169 = scmp.eq.s32.totalorder %s16, 0
    %p170 = por %p168, %p169
    %p171 = scmp.ne.s32.totalorder %s157, %s158
    %p172 = scmp.eq.s32.totalorder %s17, 1
    %p173 = por %p171, %p172
    %p175 = scmp.ne.s32.totalorder %s158, %s174
    %p176 = scmp.eq.s32.totalorder %s17, 0
    %p177 = por %p175, %p176
    %s178 = ssub.s32 %s18, %s37
    %s179 = ssub.s32 %s19, %s33
    %s180 = sor.u32 %s178, %s179
    %p181 = scmp.eq.s32.totalorder %s180, 0
    %s183 = sadd.s32 %s182, 1
    %s184 = scalar_select %p181, %s182, %s183
    %p187 = pneg %p181
    %p188 = scmp.eq.s32.totalorder %s11, 1
    %p189 = por %p187, %p188
    %p190 = scmp.ne.s32.totalorder %s182, %s185
    %p191 = scmp.eq.s32.totalorder %s11, 0
    %p192 = por %p190, %p191
    %p193 = scmp.ne.s32.totalorder %s182, %s185
    %p194 = scmp.eq.s32.totalorder %s16, 1
    %p195 = por %p193, %p194
    %p196 = scmp.ne.s32.totalorder %s185, %s186
    %p197 = scmp.eq.s32.totalorder %s16, 0
    %p198 = por %p196, %p197
    %p199 = scmp.ne.s32.totalorder %s185, %s186
    %p200 = scmp.eq.s32.totalorder %s17, 1
    %p201 = por %p199, %p200
    %p203 = scmp.ne.s32.totalorder %s186, %s202
    %p204 = scmp.eq.s32.totalorder %s17, 0
    %p205 = por %p203, %p204
    %p206 = scmp.le.s32.totalorder 1, %s11
    %p207 = scmp.lt.s32.totalorder %s11, 3
    %p208 = pnand %p206, %p207
    %p209 = pneg %p208
    // Predicated region
    $region9: #{decoder_forward.20} parent=5 // pred_check
      _
    $region10: #{decoder_forward.20} parent=5 // pred_check_branch
      %211 = sbr.rel (%p208) target = $region12
    $region11: #{decoder_forward.20} parent=5 // pred_region
      %s212 = ssub.s32 %s11, 1
    $region12: #{decoder_forward.20} parent=5 // pred_fallthru
      _
    %p213 = scmp.lt.s32.totalorder %s11, 2
    // Predicated region
    $region13: #{decoder_forward.20} parent=5 // pred_check
      %p214 = pneg %p213
    $region14: #{decoder_forward.20} parent=5 // pred_check_branch
      %216 = sbr.rel (%p214) target = $region16
    $region15: #{decoder_forward.20} parent=5 // pred_region
      // Predicated region
      $region17: #{decoder_forward.20} parent=15 // pred_check
        %p217 = pneg %p52
      $region18: #{decoder_forward.20} parent=15 // pred_check_branch
        %219 = sbr.rel (%p217) target = $region20
      $region19: #{decoder_forward.20} parent=15 // pred_region
        %p220 = scmp.lt.s32.totalorder %s18, 1
        %s221 = scalar_select %p220, %s18, 1
        %p222 = scmp.lt.s32.totalorder %s19, 0
        %s223 = scalar_select %p222, %s19, 0
        %s224 = sadd.s32 %s223, %s221
        %s225 = smul.addr %s224, 4
        %s226 = scalar_lea.vmem %s0, %s225
      $region20: #{decoder_forward.20} parent=15 // pred_fallthru
        _
      // Predicated region
      $region21: #{decoder_forward.20} parent=15 // pred_check
        %p227 = pneg %p80
      $region22: #{decoder_forward.20} parent=15 // pred_check_branch
        %229 = sbr.rel (%p227) target = $region24
      $region23: #{decoder_forward.20} parent=15 // pred_region
        %p230 = scmp.lt.s32.totalorder %s18, 1
        %s231 = scalar_select %p230, %s18, 1
        %p232 = scmp.lt.s32.totalorder %s20, 0
        %s233 = scalar_select %p232, %s20, 0
        %s234 = sadd.s32 %s233, %s231
        %s235 = scalar_lea.vmem %s1, %s234
      $region24: #{decoder_forward.20} parent=15 // pred_fallthru
        _
      // Predicated region
      $region25: #{decoder_forward.20} parent=15 // pred_check
        %p236 = pneg %p108
      $region26: #{decoder_forward.20} parent=15 // pred_check_branch
        %238 = sbr.rel (%p236) target = $region28
      $region27: #{decoder_forward.20} parent=15 // pred_region
        %p239 = scmp.lt.s32.totalorder %s18, 1
        %s240 = scalar_select %p239, %s18, 1
        %p241 = scmp.lt.s32.totalorder %s19, 0
        %s242 = scalar_select %p241, %s19, 0
        %s243 = smul.addr %s242, 3
        %s244 = smul.addr %s240, 3
        %s245 = sadd.s32 %s243, %s244
        %s246 = smul.addr %s245, 4
        %s247 = scalar_lea.vmem %s2, %s246
      $region28: #{decoder_forward.20} parent=15 // pred_fallthru
        _
      // Predicated region
      $region29: #{decoder_forward.20} parent=15 // pred_check
        %p248 = pneg %p136
      $region30: #{decoder_forward.20} parent=15 // pred_check_branch
        %250 = sbr.rel (%p248) target = $region32
      $region31: #{decoder_forward.20} parent=15 // pred_region
        %p251 = scmp.lt.s32.totalorder %s18, 1
        %s252 = scalar_select %p251, %s18, 1
        %p253 = scmp.lt.s32.totalorder %s20, 0
        %s254 = scalar_select %p253, %s20, 0
        %s255 = smul.addr %s254, 3
        %s256 = sadd.s32 1, %s255
        %s257 = smul.addr %s252, 3
        %s258 = sadd.s32 %s256, %s257
        %s259 = smul.addr %s258, 4
        %s260 = scalar_lea.vmem %s3, %s259
      $region32: #{decoder_forward.20} parent=15 // pred_fallthru
        _
      // Predicated region
      $region33: #{decoder_forward.20} parent=15 // pred_check
        %p261 = pneg %p164
      $region34: #{decoder_forward.20} parent=15 // pred_check_branch
        %263 = sbr.rel (%p261) target = $region36
      $region35: #{decoder_forward.20} parent=15 // pred_region
        %p264 = scmp.lt.s32.totalorder %s18, 1
        %s265 = scalar_select %p264, %s18, 1
        %p266 = scmp.lt.s32.totalorder %s20, 0
        %s267 = scalar_select %p266, %s20, 0
        %s268 = smul.addr %s267, 3
        %s269 = sadd.s32 2, %s268
        %s270 = smul.addr %s265, 3
        %s271 = sadd.s32 %s269, %s270
        %s272 = smul.addr %s271, 4
        %s273 = scalar_lea.vmem %s4, %s272
      $region36: #{decoder_forward.20} parent=15 // pred_fallthru
        _
    $region16: #{decoder_forward.20} parent=5 // pred_fallthru
      _
    %p274 = scmp.le.s32.totalorder 1, %s11
    %p275 = scmp.lt.s32.totalorder %s11, 3
    %p276 = pnand %p274, %p275
    %p277 = pneg %p276
    // Predicated region
    $region37: #{decoder_forward.20} parent=5 // pred_check
      _
    $region38: #{decoder_forward.20} parent=5 // pred_check_branch
      %279 = sbr.rel (%p276) target = $region40
    $region39: #{decoder_forward.20} parent=5 // pred_region
      %s280 = ssub.s32 %s11, 1
      %p281 = scmp.lt.s32.totalorder %s21, 1
      %s282 = scalar_select %p281, %s21, 1
      %p283 = scmp.lt.s32.totalorder %s22, 0
      %s284 = scalar_select %p283, %s22, 0
      %s285 = sadd.s32 %s284, %s282
      %s286 = smul.addr %s285, 4
      %s287 = scalar_lea.vmem %s0, %s286
      %p288 = pneg %p58
      %p289 = pneg %p55
      %p290 = scmp.lt.s32.totalorder %s21, 1
      %s291 = scalar_select %p290, %s21, 1
      %p292 = scmp.lt.s32.totalorder %s23, 0
      %s293 = scalar_select %p292, %s23, 0
      %s294 = sadd.s32 %s293, %s291
      %s295 = scalar_lea.vmem %s1, %s294
      %p296 = pneg %p86
      %p297 = pneg %p83
      %p298 = scmp.lt.s32.totalorder %s21, 1
      %s299 = scalar_select %p298, %s21, 1
      %p300 = scmp.lt.s32.totalorder %s22, 0
      %s301 = scalar_select %p300, %s22, 0
      %s302 = smul.addr %s301, 3
      %s303 = smul.addr %s299, 3
      %s304 = sadd.s32 %s302, %s303
      %s305 = smul.addr %s304, 4
      %s306 = scalar_lea.vmem %s2, %s305
      %p307 = pneg %p114
      %p308 = pneg %p111
      %p309 = scmp.lt.s32.totalorder %s21, 1
      %s310 = scalar_select %p309, %s21, 1
      %p311 = scmp.lt.s32.totalorder %s23, 0
      %s312 = scalar_select %p311, %s23, 0
      %s313 = smul.addr %s312, 3
      %s314 = sadd.s32 1, %s313
      %s315 = smul.addr %s310, 3
      %s316 = sadd.s32 %s314, %s315
      %s317 = smul.addr %s316, 4
      %s318 = scalar_lea.vmem %s3, %s317
      %p319 = pneg %p142
      %p320 = pneg %p139
      %p321 = scmp.lt.s32.totalorder %s21, 1
      %s322 = scalar_select %p321, %s21, 1
      %p323 = scmp.lt.s32.totalorder %s23, 0
      %s324 = scalar_select %p323, %s23, 0
      %s325 = smul.addr %s324, 3
      %s326 = sadd.s32 2, %s325
      %s327 = smul.addr %s322, 3
      %s328 = sadd.s32 %s326, %s327
      %s329 = smul.addr %s328, 4
      %s330 = scalar_lea.vmem %s4, %s329
      %p331 = pneg %p170
      %p332 = pneg %p167
      %p333 = pneg %p198
      %p334 = pneg %p195
      %p335 = scmp.lt.s32.totalorder %s21, 1
      %s336 = scalar_select %p335, %s21, 1
      %p337 = scmp.lt.s32.totalorder %s22, 0
      %s338 = scalar_select %p337, %s22, 0
      %s339 = sadd.s32 %s338, %s336
      %s340 = smul.addr %s339, 4
      %s341 = scalar_lea.vmem %s5, %s340
      %p342 = scmp.lt.s32.totalorder %s21, 1
      %s343 = scalar_select %p342, %s21, 1
      %p344 = scmp.lt.s32.totalorder %s22, 0
      %s345 = scalar_select %p344, %s22, 0
      %s346 = sadd.s32 %s345, %s343
      %s347 = smul.addr %s346, 4
      %s348 = scalar_lea.vmem %s0, %s347
      %p349 = scmp.lt.s32.totalorder %s21, 1
      %s350 = scalar_select %p349, %s21, 1
      %p351 = scmp.lt.s32.totalorder %s23, 0
      %s352 = scalar_select %p351, %s23, 0
      %s353 = sadd.s32 %s352, %s350
      %s354 = scalar_lea.vmem %s1, %s353
      %p355 = scmp.lt.s32.totalorder %s21, 1
      %s356 = scalar_select %p355, %s21, 1
      %p357 = scmp.lt.s32.totalorder %s22, 0
      %s358 = scalar_select %p357, %s22, 0
      %s359 = smul.addr %s358, 3
      %s360 = smul.addr %s356, 3
      %s361 = sadd.s32 %s359, %s360
      %s362 = smul.addr %s361, 4
      %s363 = scalar_lea.vmem %s2, %s362
      %p364 = scmp.lt.s32.totalorder %s21, 1
      %s365 = scalar_select %p364, %s21, 1
      %p366 = scmp.lt.s32.totalorder %s23, 0
      %s367 = scalar_select %p366, %s23, 0
      %s368 = smul.addr %s367, 3
      %s369 = sadd.s32 1, %s368
      %s370 = smul.addr %s365, 3
      %s371 = sadd.s32 %s369, %s370
      %s372 = smul.addr %s371, 4
      %s373 = scalar_lea.vmem %s3, %s372
      %p374 = scmp.lt.s32.totalorder %s21, 1
      %s375 = scalar_select %p374, %s21, 1
      %p376 = scmp.lt.s32.totalorder %s23, 0
      %s377 = scalar_select %p376, %s23, 0
      %s378 = smul.addr %s377, 3
      %s379 = sadd.s32 2, %s378
      %s380 = smul.addr %s375, 3
      %s381 = sadd.s32 %s379, %s380
      %s382 = smul.addr %s381, 4
      %s383 = scalar_lea.vmem %s4, %s382
      %p384 = scmp.lt.s32.totalorder %s21, 1
      %s385 = scalar_select %p384, %s21, 1
      %p386 = scmp.lt.s32.totalorder %s22, 0
      %s387 = scalar_select %p386, %s22, 0
      %s388 = sadd.s32 %s387, %s385
      %s389 = smul.addr %s388, 4
      %s390 = scalar_lea.vmem %s5, %s389
      %p395 = scmp.eq.s32.totalorder %s23, 0
      // Predicated region
      $region41: #{decoder_forward.20} parent=39 // pred_check
        %p396 = pneg %p395
      $region42: #{decoder_forward.20} parent=39 // pred_check_branch
        %398 = sbr.rel (%p396) target = $region44
      $region43: #{decoder_forward.20} parent=39 // pred_region
        %vm399 = vcmask 7168
        %400 = vst.msk [vmem:[#allocation2] sm:$0xff] %vm399, -1e+30
        %401 = vst.msk [vmem:[#allocation2 + $0x8] sm:$0xff] %vm399, -1e+30
        %402 = vst.msk [vmem:[#allocation2 + $0x10] sm:$0xff] %vm399, -1e+30
        %403 = vst.msk [vmem:[#allocation2 + $0x18] sm:$0xff] %vm399, -1e+30
        %404 = vst.msk [vmem:[#allocation3] sm:$0xff] %vm399, 0.0
        %405 = vst.msk [vmem:[#allocation3 + $0x8] sm:$0xff] %vm399, 0.0
        %406 = vst.msk [vmem:[#allocation3 + $0x10] sm:$0xff] %vm399, 0.0
        %407 = vst.msk [vmem:[#allocation3 + $0x18] sm:$0xff] %vm399, 0.0
        %408 = vst [vmem:[#allocation4] sm:$0xff] 0.0
      $region44: #{decoder_forward.20} parent=39 // pred_fallthru
        _
      %v409 = vld [vmem:[%s363] sm:$0xf]
      %v410 = vld [vmem:[%s373] sm:$0xf]
      %v411 = vld [vmem:[%s383] sm:$0xf]
      %v412 = vld [vmem:[%s354] sm:$0x1]
      %vm413 = vcmp.gt.bf16.partialorder %v412, 0
      %v414 = vld [vmem:[%s348] sm:$0xf]
      %vm415 = vcmp.gt.bf16.partialorder %v414, 0
      %v416 = vsel %vm413, 65537, 0
      %v417 = vunpack.c.l.b16 %v416
      %vm418 = vcmp.ne.s32.totalorder %v417, 0
      %v419 = vsel %vm418, 1, 0
      %v420 = vlaneseq
      %v421 = vshrl.u32 %v420, 7
      %v422 = vsub.s32 0, %v421
      %v423 = vrot.slane %v419, %v422
      %vm424 = vcmp.eq.s32.totalorder %v423, 1
      %v425 = vsel %vm415, 65537, 0
      %v426 = vunpack.c.l.b16 %v425
      %vm427 = vcmp.ne.s32.totalorder %v426, 0
      %v428 = vsel %vm427, 1, 0
      %429 = vset.pattern.permute.xlu0 0
      %430 = vperm.xlu0 %429, %v428
      %v431 = vpop.permute.xlu0 %430
      %vm432 = vcmp.eq.s32.totalorder %v431, 1
      %vm433 = vmand %vm424, %vm432
      %s434 = smul.u32 %s22, 8
      %v435 = vlaneseq
      %v436 = vshrl.u32 %v435, 7
      %v437 = vstv %s434
      %v438 = vadd.s32 %v437, %v436
      %s439 = smul.u32 %s23, 8
      %v440 = vlaneseq
      %v441 = vand.u32 %v440, 127
      %v442 = vstv %s439
      %v443 = vadd.s32 %v442, %v441
      %vm444 = vcmp.le.s32.totalorder %v443, %v438
      %vm445 = vmand %vm433, %vm444
      %v446 = vmul.bf16 %v409, 1043676725
      %vm447 = vcmask 261120
      %v449 = vsel %vm447, %v446, 0
      %v452 = vsel %vm447, %v410, 0
      %454 = vmatprep.subr.bf16.mxu0 0
      %455 = vmatpush1.bf16.xpose.msra.mxu0 %v452
      %456 = vmatprep.subr.bf16.mxu0 0
      %457 = vmatpush1.bf16.xpose.msra.mxu0 0
      %458 = vmatprep.subr.bf16.mxu0 0
      %459 = vmatpush1.bf16.xpose.msra.mxu0 0
      %460 = vmatprep.subr.bf16.mxu0 0
      %461 = vmatpush1.bf16.xpose.msra.mxu0 0
      %462 = vmatprep.subr.bf16.mxu0 0
      %463 = vmatpush1.bf16.xpose.msra.mxu0 0
      %464 = vmatprep.subr.bf16.mxu0 0
      %465 = vmatpush1.bf16.xpose.msra.mxu0 0
      %466 = vmatprep.subr.bf16.mxu0 0
      %467 = vmatpush1.bf16.xpose.msra.mxu0 0
      %468 = vmatprep.subr.bf16.mxu0 0
      %469 = vmatpush1.bf16.xpose.msra.mxu0 0
      %470 = vmatprep.subr.bf16.mxu0 0
      %471 = vmatpush1.bf16.xpose.msra.mxu0 0
      %472 = vmatprep.subr.bf16.mxu0 0
      %473 = vmatpush1.bf16.xpose.msra.mxu0 0
      %474 = vmatprep.subr.bf16.mxu0 0
      %475 = vmatpush1.bf16.xpose.msra.mxu0 0
      %476 = vmatprep.subr.bf16.mxu0 0
      %477 = vmatpush1.bf16.xpose.msra.mxu0 0
      %478 = vmatprep.subr.bf16.mxu0 0
      %479 = vmatpush1.bf16.xpose.msra.mxu0 0
      %480 = vmatprep.subr.bf16.mxu0 0
      %481 = vmatpush1.bf16.xpose.msra.mxu0 0
      %482 = vmatprep.subr.bf16.mxu0 0
      %483 = vmatpush1.bf16.xpose.msra.mxu0 0
      %484 = vmatprep.subr.bf16.mxu0 0
      %485 = vmatpush1.bf16.xpose.msra.mxu0 0
      %486 = vmatprep.mubr.bf16.mxu0 0
      %487 = vmatmul.mubr.bf16.gmra.mrb[0].mxu0 %v449
      %v488 = vpop.f32.mrb[0].mxu0
      %v489 = vadd.f32 0.0, %v488
      %v490 = vpop.f32.mrb[0].mxu0
      %v491 = vpop.f32.mrb[0].mxu0
      %v492 = vpop.f32.mrb[0].mxu0
      %493 = vdwg.mxu0
      %v494 = vsel %vm445, %v489, -10000.0
      %v495 = vld [vmem:[#allocation2] sm:$0xff]
      %vm496 = vcmask 64512
      %v497 = vsel %vm496, %v494, -inf
      %498 = vmax.xlane.f32.xlu0 %v497
      %v499 = vpop.xlane.xlu0 %498
      %v500 = vmax.f32 %v495, %v499
      %v501 = vsub.f32 %v495, %v500
      %v502 = vmul.f32 %v501, 1.442695
      %v503 = vpow.pop %v502
      %505 = vset.pattern.permute.xlu0 0
      %506 = vperm.xlu0 %505, %v500
      %v507 = vpop.permute.xlu0 %506
      %v509 = vsub.f32 %v494, %v507
      %v510 = vmul.f32 %v509, 1.442695
      %v511 = vpow.pop %v510
      %v512 = vld [vmem:[#allocation3] sm:$0xff]
      %v513 = vmul.f32 %v503, %v512
      %v514 = vsel %vm496, %v511, 0.0
      %515 = vadd.xlane.f32.xlu0 %v514
      %v516 = vpop.xlane.xlu0 %515
      %v517 = vadd.f32 %v513, %v516
      %vm518 = vcmask 7168
      %519 = vst.msk [vmem:[#allocation3] sm:$0xff] %vm518, %v517
      %v520 = vld [vmem:[#allocation4] sm:$0xff]
      %522 = vset.pattern.permute.xlu0 0
      %523 = vperm.xlu0 %522, %v503
      %v524 = vpop.permute.xlu0 %523
      %v526 = vmul.f32 %v524, %v520
      %v527 = vpack.c.bf16 %v511, %v511
      %v529 = vsel %vm496, %v527, 0
      %vm531 = vcmask 1043456
      %v533 = vsel %vm531, %v411, 0
      %535 = vmatprep.subr.bf16.mxu0 0
      %536 = vmatpush1.bf16.msra.mxu0 %v533
      %537 = vmatprep.subr.bf16.mxu0 0
      %538 = vmatpush1.bf16.msra.mxu0 0
      %539 = vmatprep.subr.bf16.mxu0 0
      %540 = vmatpush1.bf16.msra.mxu0 0
      %541 = vmatprep.subr.bf16.mxu0 0
      %542 = vmatpush1.bf16.msra.mxu0 0
      %543 = vmatprep.subr.bf16.mxu0 0
      %544 = vmatpush1.bf16.msra.mxu0 0
      %545 = vmatprep.subr.bf16.mxu0 0
      %546 = vmatpush1.bf16.msra.mxu0 0
      %547 = vmatprep.subr.bf16.mxu0 0
      %548 = vmatpush1.bf16.msra.mxu0 0
      %549 = vmatprep.subr.bf16.mxu0 0
      %550 = vmatpush1.bf16.msra.mxu0 0
      %551 = vmatprep.subr.bf16.mxu0 0
      %552 = vmatpush1.bf16.msra.mxu0 0
      %553 = vmatprep.subr.bf16.mxu0 0
      %554 = vmatpush1.bf16.msra.mxu0 0
      %555 = vmatprep.subr.bf16.mxu0 0
      %556 = vmatpush1.bf16.msra.mxu0 0
      %557 = vmatprep.subr.bf16.mxu0 0
      %558 = vmatpush1.bf16.msra.mxu0 0
      %559 = vmatprep.subr.bf16.mxu0 0
      %560 = vmatpush1.bf16.msra.mxu0 0
      %561 = vmatprep.subr.bf16.mxu0 0
      %562 = vmatpush1.bf16.msra.mxu0 0
      %563 = vmatprep.subr.bf16.mxu0 0
      %564 = vmatpush1.bf16.msra.mxu0 0
      %565 = vmatprep.subr.bf16.mxu0 0
      %566 = vmatpush1.bf16.msra.mxu0 0
      %567 = vmatprep.mubr.bf16.mxu0 0
      %568 = vmatmul.mubr.bf16.gmra.mrb[0].mxu0 %v529
      %v569 = vpop.f32.mrb[0].mxu0
      %v570 = vadd.f32 0.0, %v569
      %v571 = vpop.f32.mrb[0].mxu0
      %v572 = vpop.f32.mrb[0].mxu0
      %v573 = vpop.f32.mrb[0].mxu0
      %574 = vdwg.mxu0
      %v575 = vadd.f32 %v526, %v570
      %576 = vst.msk [vmem:[#allocation4] sm:$0xff] %vm447, %v575
      %577 = vst.msk [vmem:[#allocation2] sm:$0xff] %vm518, %v500
      %v579 = vunpack.c.l.b16 %v446
      %v580 = vpack.c.b16 %v579, %v579
      %581 = vrot.lane.b32.xlu0 %v580, 96
      %v582 = vpop.permute.xlu0 %581
      %v584 = vunpack.c.l.b16 %v410
      %v585 = vpack.c.b16 %v584, %v584
      %586 = vrot.lane.b32.xlu0 %v585, 96
      %v587 = vpop.permute.xlu0 %586
      %v589 = vsel %vm447, %v582, 0
      %v592 = vsel %vm447, %v587, 0
      %594 = vmatprep.subr.bf16.mxu0 0
      %595 = vmatpush1.bf16.xpose.msra.mxu0 %v592
      %596 = vmatprep.subr.bf16.mxu0 0
      %597 = vmatpush1.bf16.xpose.msra.mxu0 0
      %598 = vmatprep.subr.bf16.mxu0 0
      %599 = vmatpush1.bf16.xpose.msra.mxu0 0
      %600 = vmatprep.subr.bf16.mxu0 0
      %601 = vmatpush1.bf16.xpose.msra.mxu0 0
      %602 = vmatprep.subr.bf16.mxu0 0
      %603 = vmatpush1.bf16.xpose.msra.mxu0 0
      %604 = vmatprep.subr.bf16.mxu0 0
      %605 = vmatpush1.bf16.xpose.msra.mxu0 0
      %606 = vmatprep.subr.bf16.mxu0 0
      %607 = vmatpush1.bf16.xpose.msra.mxu0 0
      %608 = vmatprep.subr.bf16.mxu0 0
      %609 = vmatpush1.bf16.xpose.msra.mxu0 0
      %610 = vmatprep.subr.bf16.mxu0 0
      %611 = vmatpush1.bf16.xpose.msra.mxu0 0
      %612 = vmatprep.subr.bf16.mxu0 0
      %613 = vmatpush1.bf16.xpose.msra.mxu0 0
      %614 = vmatprep.subr.bf16.mxu0 0
      %615 = vmatpush1.bf16.xpose.msra.mxu0 0
      %616 = vmatprep.subr.bf16.mxu0 0
      %617 = vmatpush1.bf16.xpose.msra.mxu0 0
      %618 = vmatprep.subr.bf16.mxu0 0
      %619 = vmatpush1.bf16.xpose.msra.mxu0 0
      %620 = vmatprep.subr.bf16.mxu0 0
      %621 = vmatpush1.bf16.xpose.msra.mxu0 0
      %622 = vmatprep.subr.bf16.mxu0 0
      %623 = vmatpush1.bf16.xpose.msra.mxu0 0
      %624 = vmatprep.subr.bf16.mxu0 0
      %625 = vmatpush1.bf16.xpose.msra.mxu0 0
      %626 = vmatprep.mubr.bf16.mxu0 0
      %627 = vmatmul.mubr.bf16.gmra.mrb[0].mxu0 %v589
      %v628 = vpop.f32.mrb[0].mxu0
      %v629 = vadd.f32 0.0, %v628
      %v630 = vpop.f32.mrb[0].mxu0
      %v631 = vpop.f32.mrb[0].mxu0
      %v632 = vpop.f32.mrb[0].mxu0
      %633 = vdwg.mxu0
      %v634 = vsel %vm445, %v629, -10000.0
      %s635 = scalar_lea.vmem [#allocation2], 8
      %v636 = vld [vmem:[%s635] sm:$0xff]
      %v637 = vsel %vm496, %v634, -inf
      %638 = vmax.xlane.f32.xlu0 %v637
      %v639 = vpop.xlane.xlu0 %638
      %v640 = vmax.f32 %v636, %v639
      %v641 = vsub.f32 %v636, %v640
      %v642 = vmul.f32 %v641, 1.442695
      %v643 = vpow.pop %v642
      %645 = vset.pattern.permute.xlu0 0
      %646 = vperm.xlu0 %645, %v640
      %v647 = vpop.permute.xlu0 %646
      %v649 = vsub.f32 %v634, %v647
      %v650 = vmul.f32 %v649, 1.442695
      %v651 = vpow.pop %v650
      %s652 = scalar_lea.vmem [#allocation3], 8
      %v653 = vld [vmem:[%s652] sm:$0xff]
      %v654 = vmul.f32 %v643, %v653
      %v655 = vsel %vm496, %v651, 0.0
      %656 = vadd.xlane.f32.xlu0 %v655
      %v657 = vpop.xlane.xlu0 %656
      %v658 = vadd.f32 %v654, %v657
      %659 = vst.msk [vmem:[%s652] sm:$0xff] %vm518, %v658
      %v660 = vld [vmem:[#allocation4] sm:$0xff]
      %662 = vset.pattern.permute.xlu0 0
      %663 = vperm.xlu0 %662, %v643
      %v664 = vpop.permute.xlu0 %663
      %v666 = vmul.f32 %v664, %v660
      %v667 = vpack.c.bf16 %v651, %v651
      %v669 = vunpack.c.l.b16 %v411
      %v670 = vpack.c.b16 %v669, %v669
      %671 = vrot.lane.b32.xlu0 %v670, 96
      %v672 = vpop.permute.xlu0 %671
      %v674 = vsel %vm496, %v667, 0
      %v677 = vsel %vm531, %v672, 0
      %679 = vmatprep.subr.bf16.mxu0 0
      %680 = vmatpush1.bf16.msra.mxu0 %v677
      %681 = vmatprep.subr.bf16.mxu0 0
      %682 = vmatpush1.bf16.msra.mxu0 0
      %683 = vmatprep.subr.bf16.mxu0 0
      %684 = vmatpush1.bf16.msra.mxu0 0
      %685 = vmatprep.subr.bf16.mxu0 0
      %686 = vmatpush1.bf16.msra.mxu0 0
      %687 = vmatprep.subr.bf16.mxu0 0
      %688 = vmatpush1.bf16.msra.mxu0 0
      %689 = vmatprep.subr.bf16.mxu0 0
      %690 = vmatpush1.bf16.msra.mxu0 0
      %691 = vmatprep.subr.bf16.mxu0 0
      %692 = vmatpush1.bf16.msra.mxu0 0
      %693 = vmatprep.subr.bf16.mxu0 0
      %694 = vmatpush1.bf16.msra.mxu0 0
      %695 = vmatprep.subr.bf16.mxu0 0
      %696 = vmatpush1.bf16.msra.mxu0 0
      %697 = vmatprep.subr.bf16.mxu0 0
      %698 = vmatpush1.bf16.msra.mxu0 0
      %699 = vmatprep.subr.bf16.mxu0 0
      %700 = vmatpush1.bf16.msra.mxu0 0
      %701 = vmatprep.subr.bf16.mxu0 0
      %702 = vmatpush1.bf16.msra.mxu0 0
      %703 = vmatprep.subr.bf16.mxu0 0
      %704 = vmatpush1.bf16.msra.mxu0 0
      %705 = vmatprep.subr.bf16.mxu0 0
      %706 = vmatpush1.bf16.msra.mxu0 0
      %707 = vmatprep.subr.bf16.mxu0 0
      %708 = vmatpush1.bf16.msra.mxu0 0
      %709 = vmatprep.subr.bf16.mxu0 0
      %710 = vmatpush1.bf16.msra.mxu0 0
      %711 = vmatprep.mubr.bf16.mxu0 0
      %712 = vmatmul.mubr.bf16.gmra.mrb[0].mxu0 %v674
      %v713 = vpop.f32.mrb[0].mxu0
      %v714 = vadd.f32 0.0, %v713
      %v715 = vpop.f32.mrb[0].mxu0
      %v716 = vpop.f32.mrb[0].mxu0
      %v717 = vpop.f32.mrb[0].mxu0
      %718 = vdwg.mxu0
      %720 = vrot.lane.b32.xlu0 %v714, 32
      %v721 = vpop.permute.xlu0 %720
      %v723 = vadd.f32 %v666, %v721
      %vm724 = vcmask 523520
      %725 = vst.msk [vmem:[#allocation4] sm:$0xff] %vm724, %v723
      %726 = vst.msk [vmem:[%s635] sm:$0xff] %vm518, %v640
      %727 = vrot.lane.b32.xlu0 %v580, 64
      %v728 = vpop.permute.xlu0 %727
      %729 = vrot.lane.b32.xlu0 %v585, 64
      %v730 = vpop.permute.xlu0 %729
      %v732 = vsel %vm447, %v728, 0
      %v735 = vsel %vm447, %v730, 0
      %737 = vmatprep.subr.bf16.mxu0 0
      %738 = vmatpush1.bf16.xpose.msra.mxu0 %v735
      %739 = vmatprep.subr.bf16.mxu0 0
      %740 = vmatpush1.bf16.xpose.msra.mxu0 0
      %741 = vmatprep.subr.bf16.mxu0 0
      %742 = vmatpush1.bf16.xpose.msra.mxu0 0
      %743 = vmatprep.subr.bf16.mxu0 0
      %744 = vmatpush1.bf16.xpose.msra.mxu0 0
      %745 = vmatprep.subr.bf16.mxu0 0
      %746 = vmatpush1.bf16.xpose.msra.mxu0 0
      %747 = vmatprep.subr.bf16.mxu0 0
      %748 = vmatpush1.bf16.xpose.msra.mxu0 0
      %749 = vmatprep.subr.bf16.mxu0 0
      %750 = vmatpush1.bf16.xpose.msra.mxu0 0
      %751 = vmatprep.subr.bf16.mxu0 0
      %752 = vmatpush1.bf16.xpose.msra.mxu0 0
      %753 = vmatprep.subr.bf16.mxu0 0
      %754 = vmatpush1.bf16.xpose.msra.mxu0 0
      %755 = vmatprep.subr.bf16.mxu0 0
      %756 = vmatpush1.bf16.xpose.msra.mxu0 0
      %757 = vmatprep.subr.bf16.mxu0 0
      %758 = vmatpush1.bf16.xpose.msra.mxu0 0
      %759 = vmatprep.subr.bf16.mxu0 0
      %760 = vmatpush1.bf16.xpose.msra.mxu0 0
      %761 = vmatprep.subr.bf16.mxu0 0
      %762 = vmatpush1.bf16.xpose.msra.mxu0 0
      %763 = vmatprep.subr.bf16.mxu0 0
      %764 = vmatpush1.bf16.xpose.msra.mxu0 0
      %765 = vmatprep.subr.bf16.mxu0 0
      %766 = vmatpush1.bf16.xpose.msra.mxu0 0
      %767 = vmatprep.subr.bf16.mxu0 0
      %768 = vmatpush1.bf16.xpose.msra.mxu0 0
      %769 = vmatprep.mubr.bf16.mxu0 0
      %770 = vmatmul.mubr.bf16.gmra.mrb[0].mxu0 %v732
      %v771 = vpop.f32.mrb[0].mxu0
      %v772 = vadd.f32 0.0, %v771
      %v773 = vpop.f32.mrb[0].mxu0
      %v774 = vpop.f32.mrb[0].mxu0
      %v775 = vpop.f32.mrb[0].mxu0
      %776 = vdwg.mxu0
      %v777 = vsel %vm445, %v772, -10000.0
      %s778 = scalar_lea.vmem [#allocation2], 16
      %v779 = vld [vmem:[%s778] sm:$0xff]
      %v780 = vsel %vm496, %v777, -inf
      %781 = vmax.xlane.f32.xlu0 %v780
      %v782 = vpop.xlane.xlu0 %781
      %v783 = vmax.f32 %v779, %v782
      %v784 = vsub.f32 %v779, %v783
      %v785 = vmul.f32 %v784, 1.442695
      %v786 = vpow.pop %v785
      %788 = vset.pattern.permute.xlu0 0
      %789 = vperm.xlu0 %788, %v783
      %v790 = vpop.permute.xlu0 %789
      %v792 = vsub.f32 %v777, %v790
      %v793 = vmul.f32 %v792, 1.442695
      %v794 = vpow.pop %v793
      %s795 = scalar_lea.vmem [#allocation3], 16
      %v796 = vld [vmem:[%s795] sm:$0xff]
      %v797 = vmul.f32 %v786, %v796
      %v798 = vsel %vm496, %v794, 0.0
      %799 = vadd.xlane.f32.xlu0 %v798
      %v800 = vpop.xlane.xlu0 %799
      %v801 = vadd.f32 %v797, %v800
      %802 = vst.msk [vmem:[%s795] sm:$0xff] %vm518, %v801
      %v803 = vld [vmem:[#allocation4] sm:$0xff]
      %805 = vset.pattern.permute.xlu0 0
      %806 = vperm.xlu0 %805, %v786
      %v807 = vpop.permute.xlu0 %806
      %v809 = vmul.f32 %v807, %v803
      %v810 = vpack.c.bf16 %v794, %v794
      %811 = vrot.lane.b32.xlu0 %v670, 64
      %v812 = vpop.permute.xlu0 %811
      %v814 = vsel %vm496, %v810, 0
      %v817 = vsel %vm531, %v812, 0
      %819 = vmatprep.subr.bf16.mxu0 0
      %820 = vmatpush1.bf16.msra.mxu0 %v817
      %821 = vmatprep.subr.bf16.mxu0 0
      %822 = vmatpush1.bf16.msra.mxu0 0
      %823 = vmatprep.subr.bf16.mxu0 0
      %824 = vmatpush1.bf16.msra.mxu0 0
      %825 = vmatprep.subr.bf16.mxu0 0
      %826 = vmatpush1.bf16.msra.mxu0 0
      %827 = vmatprep.subr.bf16.mxu0 0
      %828 = vmatpush1.bf16.msra.mxu0 0
      %829 = vmatprep.subr.bf16.mxu0 0
      %830 = vmatpush1.bf16.msra.mxu0 0
      %831 = vmatprep.subr.bf16.mxu0 0
      %832 = vmatpush1.bf16.msra.mxu0 0
      %833 = vmatprep.subr.bf16.mxu0 0
      %834 = vmatpush1.bf16.msra.mxu0 0
      %835 = vmatprep.subr.bf16.mxu0 0
      %836 = vmatpush1.bf16.msra.mxu0 0
      %837 = vmatprep.subr.bf16.mxu0 0
      %838 = vmatpush1.bf16.msra.mxu0 0
      %839 = vmatprep.subr.bf16.mxu0 0
      %840 = vmatpush1.bf16.msra.mxu0 0
      %841 = vmatprep.subr.bf16.mxu0 0
      %842 = vmatpush1.bf16.msra.mxu0 0
      %843 = vmatprep.subr.bf16.mxu0 0
      %844 = vmatpush1.bf16.msra.mxu0 0
      %845 = vmatprep.subr.bf16.mxu0 0
      %846 = vmatpush1.bf16.msra.mxu0 0
      %847 = vmatprep.subr.bf16.mxu0 0
      %848 = vmatpush1.bf16.msra.mxu0 0
      %849 = vmatprep.subr.bf16.mxu0 0
      %850 = vmatpush1.bf16.msra.mxu0 0
      %851 = vmatprep.mubr.bf16.mxu0 0
      %852 = vmatmul.mubr.bf16.gmra.mrb[0].mxu0 %v814
      %v853 = vpop.f32.mrb[0].mxu0
      %v854 = vadd.f32 0.0, %v853
      %v855 = vpop.f32.mrb[0].mxu0
      %v856 = vpop.f32.mrb[0].mxu0
      %v857 = vpop.f32.mrb[0].mxu0
      %858 = vdwg.mxu0
      %860 = vrot.lane.b32.xlu0 %v854, 64
      %v861 = vpop.permute.xlu0 %860
      %v863 = vadd.f32 %v809, %v861
      %vm864 = vcmask 785920
      %865 = vst.msk [vmem:[#allocation4] sm:$0xff] %vm864, %v863
      %866 = vst.msk [vmem:[%s778] sm:$0xff] %vm518, %v783
      %867 = vrot.lane.b32.xlu0 %v580, 32
      %v868 = vpop.permute.xlu0 %867
      %869 = vrot.lane.b32.xlu0 %v585, 32
      %v870 = vpop.permute.xlu0 %869
      %v872 = vsel %vm447, %v868, 0
      %v875 = vsel %vm447, %v870, 0
      %877 = vmatprep.subr.bf16.mxu0 0
      %878 = vmatpush1.bf16.xpose.msra.mxu0 %v875
      %879 = vmatprep.subr.bf16.mxu0 0
      %880 = vmatpush1.bf16.xpose.msra.mxu0 0
      %881 = vmatprep.subr.bf16.mxu0 0
      %882 = vmatpush1.bf16.xpose.msra.mxu0 0
      %883 = vmatprep.subr.bf16.mxu0 0
      %884 = vmatpush1.bf16.xpose.msra.mxu0 0
      %885 = vmatprep.subr.bf16.mxu0 0
      %886 = vmatpush1.bf16.xpose.msra.mxu0 0
      %887 = vmatprep.subr.bf16.mxu0 0
      %888 = vmatpush1.bf16.xpose.msra.mxu0 0
      %889 = vmatprep.subr.bf16.mxu0 0
      %890 = vmatpush1.bf16.xpose.msra.mxu0 0
      %891 = vmatprep.subr.bf16.mxu0 0
      %892 = vmatpush1.bf16.xpose.msra.mxu0 0
      %893 = vmatprep.subr.bf16.mxu0 0
      %894 = vmatpush1.bf16.xpose.msra.mxu0 0
      %895 = vmatprep.subr.bf16.mxu0 0
      %896 = vmatpush1.bf16.xpose.msra.mxu0 0
      %897 = vmatprep.subr.bf16.mxu0 0
      %898 = vmatpush1.bf16.xpose.msra.mxu0 0
      %899 = vmatprep.subr.bf16.mxu0 0
      %900 = vmatpush1.bf16.xpose.msra.mxu0 0
      %901 = vmatprep.subr.bf16.mxu0 0
      %902 = vmatpush1.bf16.xpose.msra.mxu0 0
      %903 = vmatprep.subr.bf16.mxu0 0
      %904 = vmatpush1.bf16.xpose.msra.mxu0 0
      %905 = vmatprep.subr.bf16.mxu0 0
      %906 = vmatpush1.bf16.xpose.msra.mxu0 0
      %907 = vmatprep.subr.bf16.mxu0 0
      %908 = vmatpush1.bf16.xpose.msra.mxu0 0
      %909 = vmatprep.mubr.bf16.mxu0 0
      %910 = vmatmul.mubr.bf16.gmra.mrb[0].mxu0 %v872
      %v911 = vpop.f32.mrb[0].mxu0
      %v912 = vadd.f32 0.0, %v911
      %v913 = vpop.f32.mrb[0].mxu0
      %v914 = vpop.f32.mrb[0].mxu0
      %v915 = vpop.f32.mrb[0].mxu0
      %916 = vdwg.mxu0
      %v917 = vsel %vm445, %v912, -10000.0
      %s918 = scalar_lea.vmem [#allocation2], 24
      %v919 = vld [vmem:[%s918] sm:$0xff]
      %v920 = vsel %vm496, %v917, -inf
      %921 = vmax.xlane.f32.xlu0 %v920
      %v922 = vpop.xlane.xlu0 %921
      %v923 = vmax.f32 %v919, %v922
      %v924 = vsub.f32 %v919, %v923
      %v925 = vmul.f32 %v924, 1.442695
      %v926 = vpow.pop %v925
      %928 = vset.pattern.permute.xlu0 0
      %929 = vperm.xlu0 %928, %v923
      %v930 = vpop.permute.xlu0 %929
      %v932 = vsub.f32 %v917, %v930
      %v933 = vmul.f32 %v932, 1.442695
      %v934 = vpow.pop %v933
      %s935 = scalar_lea.vmem [#allocation3], 24
      %v936 = vld [vmem:[%s935] sm:$0xff]
      %v937 = vmul.f32 %v926, %v936
      %v938 = vsel %vm496, %v934, 0.0
      %939 = vadd.xlane.f32.xlu0 %v938
      %v940 = vpop.xlane.xlu0 %939
      %v941 = vadd.f32 %v937, %v940
      %942 = vst.msk [vmem:[%s935] sm:$0xff] %vm518, %v941
      %v943 = vld [vmem:[#allocation4] sm:$0xff]
      %945 = vset.pattern.permute.xlu0 0
      %946 = vperm.xlu0 %945, %v926
      %v947 = vpop.permute.xlu0 %946
      %v949 = vmul.f32 %v947, %v943
      %v950 = vpack.c.bf16 %v934, %v934
      %951 = vrot.lane.b32.xlu0 %v670, 32
      %v952 = vpop.permute.xlu0 %951
      %v954 = vsel %vm496, %v950, 0
      %v957 = vsel %vm531, %v952, 0
      %959 = vmatprep.subr.bf16.mxu0 0
      %960 = vmatpush1.bf16.msra.mxu0 %v957
      %961 = vmatprep.subr.bf16.mxu0 0
      %962 = vmatpush1.bf16.msra.mxu0 0
      %963 = vmatprep.subr.bf16.mxu0 0
      %964 = vmatpush1.bf16.msra.mxu0 0
      %965 = vmatprep.subr.bf16.mxu0 0
      %966 = vmatpush1.bf16.msra.mxu0 0
      %967 = vmatprep.subr.bf16.mxu0 0
      %968 = vmatpush1.bf16.msra.mxu0 0
      %969 = vmatprep.subr.bf16.mxu0 0
      %970 = vmatpush1.bf16.msra.mxu0 0
      %971 = vmatprep.subr.bf16.mxu0 0
      %972 = vmatpush1.bf16.msra.mxu0 0
      %973 = vmatprep.subr.bf16.mxu0 0
      %974 = vmatpush1.bf16.msra.mxu0 0
      %975 = vmatprep.subr.bf16.mxu0 0
      %976 = vmatpush1.bf16.msra.mxu0 0
      %977 = vmatprep.subr.bf16.mxu0 0
      %978 = vmatpush1.bf16.msra.mxu0 0
      %979 = vmatprep.subr.bf16.mxu0 0
      %980 = vmatpush1.bf16.msra.mxu0 0
      %981 = vmatprep.subr.bf16.mxu0 0
      %982 = vmatpush1.bf16.msra.mxu0 0
      %983 = vmatprep.subr.bf16.mxu0 0
      %984 = vmatpush1.bf16.msra.mxu0 0
      %985 = vmatprep.subr.bf16.mxu0 0
      %986 = vmatpush1.bf16.msra.mxu0 0
      %987 = vmatprep.subr.bf16.mxu0 0
      %988 = vmatpush1.bf16.msra.mxu0 0
      %989 = vmatprep.subr.bf16.mxu0 0
      %990 = vmatpush1.bf16.msra.mxu0 0
      %991 = vmatprep.mubr.bf16.mxu0 0
      %992 = vmatmul.mubr.bf16.gmra.mrb[0].mxu0 %v954
      %v993 = vpop.f32.mrb[0].mxu0
      %v994 = vadd.f32 0.0, %v993
      %v995 = vpop.f32.mrb[0].mxu0
      %v996 = vpop.f32.mrb[0].mxu0
      %v997 = vpop.f32.mrb[0].mxu0
      %998 = vdwg.mxu0
      %1000 = vrot.lane.b32.xlu0 %v994, 96
      %v1001 = vpop.permute.xlu0 %1000
      %v1003 = vadd.f32 %v949, %v1001
      %vm1004 = vcmask 1048320
      %1005 = vst.msk [vmem:[#allocation4] sm:$0xff] %vm1004, %v1003
      %1006 = vst.msk [vmem:[%s918] sm:$0xff] %vm518, %v923
      // Predicated region
      $region45: #{decoder_forward.20} parent=39 // pred_check
        %p1007 = pneg %p395
      $region46: #{decoder_forward.20} parent=39 // pred_check_branch
        %1009 = sbr.rel (%p1007) target = $region48
      $region47: #{decoder_forward.20} parent=39 // pred_region
        %v1010 = vld [vmem:[#allocation4] sm:$0xff]
        %v1011 = vld [vmem:[#allocation3] sm:$0xff]
        %v1012 = vrcp.pop %v1011
        %1014 = vset.pattern.permute.xlu0 0
        %1015 = vperm.xlu0 %1014, %v1012
        %v1016 = vpop.permute.xlu0 %1015
        %v1018 = vmul.f32 %v1010, %v1016
        %1019 = vst.msk [vmem:[#allocation4] sm:$0xff] %vm447, %v1018
        %v1020 = vld [vmem:[#allocation4] sm:$0xff]
        %v1021 = vld [vmem:[%s652] sm:$0xff]
        %v1022 = vrcp.pop %v1021
        %1024 = vset.pattern.permute.xlu0 0
        %1025 = vperm.xlu0 %1024, %v1022
        %v1026 = vpop.permute.xlu0 %1025
        %v1028 = vmul.f32 %v1020, %v1026
        %1029 = vst.msk [vmem:[#allocation4] sm:$0xff] %vm724, %v1028
        %v1030 = vld [vmem:[#allocation4] sm:$0xff]
        %v1031 = vld [vmem:[%s795] sm:$0xff]
        %v1032 = vrcp.pop %v1031
        %1034 = vset.pattern.permute.xlu0 0
        %1035 = vperm.xlu0 %1034, %v1032
        %v1036 = vpop.permute.xlu0 %1035
        %v1038 = vmul.f32 %v1030, %v1036
        %1039 = vst.msk [vmem:[#allocation4] sm:$0xff] %vm864, %v1038
        %v1040 = vld [vmem:[#allocation4] sm:$0xff]
        %v1041 = vld [vmem:[%s935] sm:$0xff]
        %v1042 = vrcp.pop %v1041
        %1044 = vset.pattern.permute.xlu0 0
        %1045 = vperm.xlu0 %1044, %v1042
        %v1046 = vpop.permute.xlu0 %1045
        %v1048 = vmul.f32 %v1040, %v1046
        %1049 = vst.msk [vmem:[#allocation4] sm:$0xff] %vm1004, %v1048
        %v1050 = vld [vmem:[#allocation4] sm:$0xff]
        %v1051 = vpack.c.bf16 %v1050, %v1050
        %1052 = vst [vmem:[%s390] sm:$0xf] %v1051
      $region48: #{decoder_forward.20} parent=39 // pred_fallthru
        _
      %p1053 = scmp.lt.s32.totalorder %s21, 1
      %s1054 = scalar_select %p1053, %s21, 1
      %p1055 = scmp.lt.s32.totalorder %s22, 0
      %s1056 = scalar_select %p1055, %s22, 0
      %s1057 = sadd.s32 %s1056, %s1054
      %s1058 = smul.addr %s1057, 4
      %s1059 = scalar_lea.vmem %s5, %s1058
      // Predicated region
      $region49: #{decoder_forward.20} parent=39 // pred_check
        %p1060 = pneg %p195
      $region50: #{decoder_forward.20} parent=39 // pred_check_branch
        %1062 = sbr.rel (%p1060) target = $region52
      $region51: #{decoder_forward.20} parent=39 // pred_region
        _
      $region52: #{decoder_forward.20} parent=39 // pred_fallthru
        _
    $region40: #{decoder_forward.20} parent=5 // pred_fallthru
      _
    %p1063 = scmp.le.s32.totalorder 2, %s11
    // Predicated region
    $region53: #{decoder_forward.20} parent=5 // pred_check
      %p1064 = pneg %p1063
    $region54: #{decoder_forward.20} parent=5 // pred_check_branch
      %1066 = sbr.rel (%p1064) target = $region56
    $region55: #{decoder_forward.20} parent=5 // pred_region
      %s1067 = ssub.s32 %s11, 2
      // Predicated region
      $region57: #{decoder_forward.20} parent=55 // pred_check
        %p1068 = pneg %p201
      $region58: #{decoder_forward.20} parent=55 // pred_check_branch
        %1070 = sbr.rel (%p1068) target = $region60
      $region59: #{decoder_forward.20} parent=55 // pred_region
        %p1071 = scmp.lt.s32.totalorder %s24, 1
        %s1072 = scalar_select %p1071, %s24, 1
        %p1073 = scmp.lt.s32.totalorder %s25, 0
        %s1074 = scalar_select %p1073, %s25, 0
        %s1075 = sadd.s32 %s1074, %s1072
        %s1076 = smul.addr %s1075, 4
        %s1077 = scalar_lea.vmem %s5, %s1076
      $region60: #{decoder_forward.20} parent=55 // pred_fallthru
        _
    $region56: #{decoder_forward.20} parent=5 // pred_fallthru
      _
  $region6: #{decoder_forward.20} parent=0 // loop_footer
    %s15 = sadd.s32 1, %s11
  $region7: #{decoder_forward.20} parent=0 // loop_footer_branch
    %10 = sbr.rel target = $region3
  $region8: #{decoder_forward.20} parent=0 // loop_exit
    _

// kernel: decoder_forward.26
$region0: #{decoder_forward.26}
  #allocation0 [shape = 'u32[]', space=smem, size = 0x4, offset = 0x4, fixed_abs, tag = 'smem constant byte address 0x4 - core index']
  #allocation1 [shape = 'u32[144,128]{1,0:T(1,128)}', space=vmem, size = 0x12000, scoped, tag = 'internal scratch']
  #allocation2 [shape = 'f32[16,256]{1,0:T(8,128)}', space=vmem, size = 0x4000, scoped, tag = 'scratch operand']
  %s0 = inlined_call_operand.vmem [shape: bf16[16,128], index: 0, kind: input, shape index: {}]
  %s1 = inlined_call_operand.vmem [shape: bf16[128,256], index: 1, kind: input, shape index: {}]
  %s2 = inlined_call_operand.vmem [shape: f32[1,256], index: 2, kind: input, shape index: {}]
  %s3 = inlined_call_operand.vmem [shape: bf16[16,256], index: 3, kind: output, shape index: {}]
  %s4 = sld [smem:[#allocation0]]
  $region30: #{decoder_forward.26} parent=0
    _
  %s6 = ssub.s32 1, %s4
  %s7 = scalar_select 0, %s6, %s4
  // Predicated region
  $region2: #{decoder_forward.26} parent=0 // pred_check
    _
  $region3: #{decoder_forward.26} parent=0 // pred_check_branch
    %9 = sbr.rel (0) target = $region5
  $region4: #{decoder_forward.26} parent=0 // pred_region
    _
  $region5: #{decoder_forward.26} parent=0 // pred_fallthru
    _
  // Predicated region
  $region6: #{decoder_forward.26} parent=0 // pred_check
    _
  $region7: #{decoder_forward.26} parent=0 // pred_check_branch
    %11 = sbr.rel (0) target = $region9
  $region8: #{decoder_forward.26} parent=0 // pred_region
    _
  $region9: #{decoder_forward.26} parent=0 // pred_fallthru
    _
  // Predicated region
  $region10: #{decoder_forward.26} parent=0 // pred_check
    _
  $region11: #{decoder_forward.26} parent=0 // pred_check_branch
    %13 = sbr.rel (0) target = $region13
  $region12: #{decoder_forward.26} parent=0 // pred_region
    _
  $region13: #{decoder_forward.26} parent=0 // pred_fallthru
    _
  %p15 = scmp.eq.s32.totalorder 0, 0
  // Predicated region
  $region14: #{decoder_forward.26} parent=0 // pred_check
    %p16 = pneg %p15
  $region15: #{decoder_forward.26} parent=0 // pred_check_branch
    %18 = sbr.rel (%p16) target = $region17
  $region16: #{decoder_forward.26} parent=0 // pred_region
    %19 = vst [vmem:[#allocation2] sm:$0xff] 0.0
    %20 = vst [vmem:[#allocation2 + $0x8] sm:$0xff] 0.0
    %21 = vst [vmem:[#allocation2 + $0x10] sm:$0xff] 0.0
    %22 = vst [vmem:[#allocation2 + $0x18] sm:$0xff] 0.0
  $region17: #{decoder_forward.26} parent=0 // pred_fallthru
    _
  %v23 = vld [vmem:[#allocation2] sm:$0xff]
  %v24 = vld [vmem:[#allocation2 + $0x8] sm:$0xff]
  %v25 = vld [vmem:[#allocation2 + $0x10] sm:$0xff]
  %v26 = vld [vmem:[#allocation2 + $0x18] sm:$0xff]
  %v27 = vld [vmem:[%s0] sm:$0xf]
  %v28 = vld [vmem:[%s0 + $0x4] sm:$0xf]
  %v29 = vld [vmem:[%s1] sm:$0xff]
  %v30 = vld [vmem:[%s1 + $0x8] sm:$0xff]
  %v31 = vld [vmem:[%s1 + $0x10] sm:$0xff]
  %v32 = vld [vmem:[%s1 + $0x18] sm:$0xff]
  %v33 = vld [vmem:[%s1 + $0x20] sm:$0xff]
  %v34 = vld [vmem:[%s1 + $0x28] sm:$0xff]
  %v35 = vld [vmem:[%s1 + $0x30] sm:$0xff]
  %v36 = vld [vmem:[%s1 + $0x38] sm:$0xff]
  %v37 = vld [vmem:[%s1 + $0x40] sm:$0xff]
  %v38 = vld [vmem:[%s1 + $0x48] sm:$0xff]
  %v39 = vld [vmem:[%s1 + $0x50] sm:$0xff]
  %v40 = vld [vmem:[%s1 + $0x58] sm:$0xff]
  %v41 = vld [vmem:[%s1 + $0x60] sm:$0xff]
  %v42 = vld [vmem:[%s1 + $0x68] sm:$0xff]
  %v43 = vld [vmem:[%s1 + $0x70] sm:$0xff]
  %v44 = vld [vmem:[%s1 + $0x78] sm:$0xff]
  %v47 = vunpack.c.l.b16 %v27
  %v48 = vunpack.c.l.b16 %v28
  %v49 = vpack.c.b16 %v48, %v47
  %v67 = vunpack.c.l.b16 %v29
  %v68 = vunpack.c.h.b16 %v29
  %v69 = vunpack.c.l.b16 %v30
  %v70 = vunpack.c.h.b16 %v30
  %v71 = vunpack.c.l.b16 %v31
  %v72 = vunpack.c.h.b16 %v31
  %v73 = vunpack.c.l.b16 %v32
  %v74 = vunpack.c.h.b16 %v32
  %v75 = vunpack.c.l.b16 %v33
  %v76 = vunpack.c.h.b16 %v33
  %v77 = vunpack.c.l.b16 %v34
  %v78 = vunpack.c.h.b16 %v34
  %v79 = vunpack.c.l.b16 %v35
  %v80 = vunpack.c.h.b16 %v35
  %v81 = vunpack.c.l.b16 %v36
  %v82 = vunpack.c.h.b16 %v36
  %v83 = vunpack.c.l.b16 %v37
  %v84 = vunpack.c.h.b16 %v37
  %v85 = vunpack.c.l.b16 %v38
  %v86 = vunpack.c.h.b16 %v38
  %v87 = vunpack.c.l.b16 %v39
  %v88 = vunpack.c.h.b16 %v39
  %v89 = vunpack.c.l.b16 %v40
  %v90 = vunpack.c.h.b16 %v40
  %v91 = vunpack.c.l.b16 %v41
  %v92 = vunpack.c.h.b16 %v41
  %v93 = vunpack.c.l.b16 %v42
  %v94 = vunpack.c.h.b16 %v42
  %v95 = vunpack.c.l.b16 %v43
  %v96 = vunpack.c.h.b16 %v43
  %v97 = vunpack.c.l.b16 %v44
  %v98 = vunpack.c.h.b16 %v44
  %v99 = vpack.c.b16 %v69, %v67
  %v100 = vpack.c.b16 %v70, %v68
  %v101 = vpack.c.b16 %v73, %v71
  %v102 = vpack.c.b16 %v74, %v72
  %v103 = vpack.c.b16 %v77, %v75
  %v104 = vpack.c.b16 %v78, %v76
  %v105 = vpack.c.b16 %v81, %v79
  %v106 = vpack.c.b16 %v82, %v80
  %v107 = vpack.c.b16 %v85, %v83
  %v108 = vpack.c.b16 %v86, %v84
  %v109 = vpack.c.b16 %v89, %v87
  %v110 = vpack.c.b16 %v90, %v88
  %v111 = vpack.c.b16 %v93, %v91
  %v112 = vpack.c.b16 %v94, %v92
  %v113 = vpack.c.b16 %v97, %v95
  %v114 = vpack.c.b16 %v98, %v96
  %131 = vmatprep.subr.bf16.mxu0 %v100
  %132 = vmatpush1.bf16.msra.mxu0 %v99
  %133 = vmatprep.subr.bf16.mxu0 %v102
  %134 = vmatpush1.bf16.msra.mxu0 %v101
  %135 = vmatprep.subr.bf16.mxu0 %v104
  %136 = vmatpush1.bf16.msra.mxu0 %v103
  %137 = vmatprep.subr.bf16.mxu0 %v106
  %138 = vmatpush1.bf16.msra.mxu0 %v105
  %139 = vmatprep.subr.bf16.mxu0 %v108
  %140 = vmatpush1.bf16.msra.mxu0 %v107
  %141 = vmatprep.subr.bf16.mxu0 %v110
  %142 = vmatpush1.bf16.msra.mxu0 %v109
  %143 = vmatprep.subr.bf16.mxu0 %v112
  %144 = vmatpush1.bf16.msra.mxu0 %v111
  %145 = vmatprep.subr.bf16.mxu0 %v114
  %146 = vmatpush1.bf16.msra.mxu0 %v113
  %147 = vmatprep.subr.bf16.mxu0 0
  %148 = vmatpush1.bf16.msra.mxu0 0
  %149 = vmatprep.subr.bf16.mxu0 0
  %150 = vmatpush1.bf16.msra.mxu0 0
  %151 = vmatprep.subr.bf16.mxu0 0
  %152 = vmatpush1.bf16.msra.mxu0 0
  %153 = vmatprep.subr.bf16.mxu0 0
  %154 = vmatpush1.bf16.msra.mxu0 0
  %155 = vmatprep.subr.bf16.mxu0 0
  %156 = vmatpush1.bf16.msra.mxu0 0
  %157 = vmatprep.subr.bf16.mxu0 0
  %158 = vmatpush1.bf16.msra.mxu0 0
  %159 = vmatprep.subr.bf16.mxu0 0
  %160 = vmatpush1.bf16.msra.mxu0 0
  %161 = vmatprep.subr.bf16.mxu0 0
  %162 = vmatpush1.bf16.msra.mxu0 0
  %163 = vmatprep.mubr.bf16.mxu0 0
  %164 = vmatmul.mubr.bf16.gmra.mrb[0].mxu0 %v49
  %v165 = vpop.f32.mrb[0].mxu0
  %v166 = vadd.f32 0.0, %v165
  %v167 = vpop.f32.mrb[0].mxu0
  %v168 = vadd.f32 0.0, %v167
  %v169 = vpop.f32.mrb[0].mxu0
  %v170 = vadd.f32 0.0, %v169
  %v171 = vpop.f32.mrb[0].mxu0
  %v172 = vadd.f32 0.0, %v171
  %173 = vdwg.mxu0
  %v174 = vadd.f32 %v23, %v166
  %v175 = vadd.f32 %v24, %v168
  %v176 = vadd.f32 %v25, %v170
  %v177 = vadd.f32 %v26, %v172
  %178 = vst [vmem:[#allocation2] sm:$0xff] %v174
  %179 = vst [vmem:[#allocation2 + $0x8] sm:$0xff] %v175
  %180 = vst [vmem:[#allocation2 + $0x10] sm:$0xff] %v176
  %181 = vst [vmem:[#allocation2 + $0x18] sm:$0xff] %v177
  // Predicated region
  $region18: #{decoder_forward.26} parent=0 // pred_check
    %p182 = pneg %p15
  $region19: #{decoder_forward.26} parent=0 // pred_check_branch
    %184 = sbr.rel (%p182) target = $region21
  $region20: #{decoder_forward.26} parent=0 // pred_region
    %v185 = vld [vmem:[#allocation2] sm:$0xff]
    %v186 = vld [vmem:[#allocation2 + $0x8] sm:$0xff]
    %v187 = vld [vmem:[#allocation2 + $0x10] sm:$0xff]
    %v188 = vld [vmem:[#allocation2 + $0x18] sm:$0xff]
    %v189 = vld [vmem:[%s2] sm:$0x3]
    %v191 = vlaneseq
    %v192 = vshrl.u32 %v191, 7
    %v193 = vsub.s32 0, %v192
    %v194 = vrot.slane %v189, %v193
    %v195 = vlaneseq
    %v196 = vshrl.u32 %v195, 7
    %v197 = vsub.s32 1, %v196
    %v198 = vrot.slane %v189, %v197
    %v201 = vadd.f32 %v185, %v194
    %v202 = vadd.f32 %v186, %v198
    %v203 = vadd.f32 %v187, %v194
    %v204 = vadd.f32 %v188, %v198
    %v205 = vmax.f32 %v201, 0.0
    %v206 = vmax.f32 %v202, 0.0
    %v207 = vmax.f32 %v203, 0.0
    %v208 = vmax.f32 %v204, 0.0
    %v209 = vpack.c.bf16 %v207, %v205
    %v210 = vpack.c.bf16 %v208, %v206
    %v213 = vunpack.c.l.b16 %v209
    %v214 = vunpack.c.l.b16 %v210
    %v215 = vunpack.c.h.b16 %v209
    %v216 = vunpack.c.h.b16 %v210
    %v217 = vpack.c.b16 %v214, %v213
    %v218 = vpack.c.b16 %v216, %v215
    %221 = vst [vmem:[%s3] sm:$0xff] %v217
    %222 = vst [vmem:[%s3 + $0x8] sm:$0xff] %v218
  $region21: #{decoder_forward.26} parent=0 // pred_fallthru
    _
  // Predicated region
  $region22: #{decoder_forward.26} parent=0 // pred_check
    _
  $region23: #{decoder_forward.26} parent=0 // pred_check_branch
    %224 = sbr.rel (0) target = $region25
  $region24: #{decoder_forward.26} parent=0 // pred_region
    _
  $region25: #{decoder_forward.26} parent=0 // pred_fallthru
    _
  // Predicated region
  $region26: #{decoder_forward.26} parent=0 // pred_check
    _
  $region27: #{decoder_forward.26} parent=0 // pred_check_branch
    %226 = sbr.rel (0) target = $region29
  $region28: #{decoder_forward.26} parent=0 // pred_region
    _
  $region29: #{decoder_forward.26} parent=0 // pred_fallthru
    _

// kernel: decoder_forward.23
$region0: #{decoder_forward.23}
  #allocation0 [shape = 'u32[]', space=smem, size = 0x4, offset = 0x4, fixed_abs, tag = 'smem constant byte address 0x4 - core index']
  #allocation1 [shape = 'u32[144,128]{1,0:T(1,128)}', space=vmem, size = 0x12000, scoped, tag = 'internal scratch']
  #allocation2 [shape = 'f32[16,256]{1,0:T(8,128)}', space=vmem, size = 0x4000, scoped, tag = 'scratch operand']
  %s0 = inlined_call_operand.vmem [shape: bf16[16,128], index: 0, kind: input, shape index: {}]
  %s1 = inlined_call_operand.vmem [shape: bf16[128,256], index: 1, kind: input, shape index: {}]
  %s2 = inlined_call_operand.vmem [shape: f32[1,256], index: 2, kind: input, shape index: {}]
  %s3 = inlined_call_operand.vmem [shape: bf16[16,256], index: 3, kind: output, shape index: {}]
  %s4 = sld [smem:[#allocation0]]
  $region30: #{decoder_forward.23} parent=0
    _
  %s6 = ssub.s32 1, %s4
  %s7 = scalar_select 0, %s6, %s4
  // Predicated region
  $region2: #{decoder_forward.23} parent=0 // pred_check
    _
  $region3: #{decoder_forward.23} parent=0 // pred_check_branch
    %9 = sbr.rel (0) target = $region5
  $region4: #{decoder_forward.23} parent=0 // pred_region
    _
  $region5: #{decoder_forward.23} parent=0 // pred_fallthru
    _
  // Predicated region
  $region6: #{decoder_forward.23} parent=0 // pred_check
    _
  $region7: #{decoder_forward.23} parent=0 // pred_check_branch
    %11 = sbr.rel (0) target = $region9
  $region8: #{decoder_forward.23} parent=0 // pred_region
    _
  $region9: #{decoder_forward.23} parent=0 // pred_fallthru
    _
  // Predicated region
  $region10: #{decoder_forward.23} parent=0 // pred_check
    _
  $region11: #{decoder_forward.23} parent=0 // pred_check_branch
    %13 = sbr.rel (0) target = $region13
  $region12: #{decoder_forward.23} parent=0 // pred_region
    _
  $region13: #{decoder_forward.23} parent=0 // pred_fallthru
    _
  %p15 = scmp.eq.s32.totalorder 0, 0
  // Predicated region
  $region14: #{decoder_forward.23} parent=0 // pred_check
    %p16 = pneg %p15
  $region15: #{decoder_forward.23} parent=0 // pred_check_branch
    %18 = sbr.rel (%p16) target = $region17
  $region16: #{decoder_forward.23} parent=0 // pred_region
    %19 = vst [vmem:[#allocation2] sm:$0xff] 0.0
    %20 = vst [vmem:[#allocation2 + $0x8] sm:$0xff] 0.0
    %21 = vst [vmem:[#allocation2 + $0x10] sm:$0xff] 0.0
    %22 = vst [vmem:[#allocation2 + $0x18] sm:$0xff] 0.0
  $region17: #{decoder_forward.23} parent=0 // pred_fallthru
    _
  %v23 = vld [vmem:[#allocation2] sm:$0xff]
  %v24 = vld [vmem:[#allocation2 + $0x8] sm:$0xff]
  %v25 = vld [vmem:[#allocation2 + $0x10] sm:$0xff]
  %v26 = vld [vmem:[#allocation2 + $0x18] sm:$0xff]
  %v27 = vld [vmem:[%s0] sm:$0xf]
  %v28 = vld [vmem:[%s0 + $0x4] sm:$0xf]
  %v29 = vld [vmem:[%s1] sm:$0xff]
  %v30 = vld [vmem:[%s1 + $0x8] sm:$0xff]
  %v31 = vld [vmem:[%s1 + $0x10] sm:$0xff]
  %v32 = vld [vmem:[%s1 + $0x18] sm:$0xff]
  %v33 = vld [vmem:[%s1 + $0x20] sm:$0xff]
  %v34 = vld [vmem:[%s1 + $0x28] sm:$0xff]
  %v35 = vld [vmem:[%s1 + $0x30] sm:$0xff]
  %v36 = vld [vmem:[%s1 + $0x38] sm:$0xff]
  %v37 = vld [vmem:[%s1 + $0x40] sm:$0xff]
  %v38 = vld [vmem:[%s1 + $0x48] sm:$0xff]
  %v39 = vld [vmem:[%s1 + $0x50] sm:$0xff]
  %v40 = vld [vmem:[%s1 + $0x58] sm:$0xff]
  %v41 = vld [vmem:[%s1 + $0x60] sm:$0xff]
  %v42 = vld [vmem:[%s1 + $0x68] sm:$0xff]
  %v43 = vld [vmem:[%s1 + $0x70] sm:$0xff]
  %v44 = vld [vmem:[%s1 + $0x78] sm:$0xff]
  %v47 = vunpack.c.l.b16 %v27
  %v48 = vunpack.c.l.b16 %v28
  %v49 = vpack.c.b16 %v48, %v47
  %v67 = vunpack.c.l.b16 %v29
  %v68 = vunpack.c.h.b16 %v29
  %v69 = vunpack.c.l.b16 %v30
  %v70 = vunpack.c.h.b16 %v30
  %v71 = vunpack.c.l.b16 %v31
  %v72 = vunpack.c.h.b16 %v31
  %v73 = vunpack.c.l.b16 %v32
  %v74 = vunpack.c.h.b16 %v32
  %v75 = vunpack.c.l.b16 %v33
  %v76 = vunpack.c.h.b16 %v33
  %v77 = vunpack.c.l.b16 %v34
  %v78 = vunpack.c.h.b16 %v34
  %v79 = vunpack.c.l.b16 %v35
  %v80 = vunpack.c.h.b16 %v35
  %v81 = vunpack.c.l.b16 %v36
  %v82 = vunpack.c.h.b16 %v36
  %v83 = vunpack.c.l.b16 %v37
  %v84 = vunpack.c.h.b16 %v37
  %v85 = vunpack.c.l.b16 %v38
  %v86 = vunpack.c.h.b16 %v38
  %v87 = vunpack.c.l.b16 %v39
  %v88 = vunpack.c.h.b16 %v39
  %v89 = vunpack.c.l.b16 %v40
  %v90 = vunpack.c.h.b16 %v40
  %v91 = vunpack.c.l.b16 %v41
  %v92 = vunpack.c.h.b16 %v41
  %v93 = vunpack.c.l.b16 %v42
  %v94 = vunpack.c.h.b16 %v42
  %v95 = vunpack.c.l.b16 %v43
  %v96 = vunpack.c.h.b16 %v43
  %v97 = vunpack.c.l.b16 %v44
  %v98 = vunpack.c.h.b16 %v44
  %v99 = vpack.c.b16 %v69, %v67
  %v100 = vpack.c.b16 %v70, %v68
  %v101 = vpack.c.b16 %v73, %v71
  %v102 = vpack.c.b16 %v74, %v72
  %v103 = vpack.c.b16 %v77, %v75
  %v104 = vpack.c.b16 %v78, %v76
  %v105 = vpack.c.b16 %v81, %v79
  %v106 = vpack.c.b16 %v82, %v80
  %v107 = vpack.c.b16 %v85, %v83
  %v108 = vpack.c.b16 %v86, %v84
  %v109 = vpack.c.b16 %v89, %v87
  %v110 = vpack.c.b16 %v90, %v88
  %v111 = vpack.c.b16 %v93, %v91
  %v112 = vpack.c.b16 %v94, %v92
  %v113 = vpack.c.b16 %v97, %v95
  %v114 = vpack.c.b16 %v98, %v96
  %131 = vmatprep.subr.bf16.mxu0 %v100
  %132 = vmatpush1.bf16.msra.mxu0 %v99
  %133 = vmatprep.subr.bf16.mxu0 %v102
  %134 = vmatpush1.bf16.msra.mxu0 %v101
  %135 = vmatprep.subr.bf16.mxu0 %v104
  %136 = vmatpush1.bf16.msra.mxu0 %v103
  %137 = vmatprep.subr.bf16.mxu0 %v106
  %138 = vmatpush1.bf16.msra.mxu0 %v105
  %139 = vmatprep.subr.bf16.mxu0 %v108
  %140 = vmatpush1.bf16.msra.mxu0 %v107
  %141 = vmatprep.subr.bf16.mxu0 %v110
  %142 = vmatpush1.bf16.msra.mxu0 %v109
  %143 = vmatprep.subr.bf16.mxu0 %v112
  %144 = vmatpush1.bf16.msra.mxu0 %v111
  %145 = vmatprep.subr.bf16.mxu0 %v114
  %146 = vmatpush1.bf16.msra.mxu0 %v113
  %147 = vmatprep.subr.bf16.mxu0 0
  %148 = vmatpush1.bf16.msra.mxu0 0
  %149 = vmatprep.subr.bf16.mxu0 0
  %150 = vmatpush1.bf16.msra.mxu0 0
  %151 = vmatprep.subr.bf16.mxu0 0
  %152 = vmatpush1.bf16.msra.mxu0 0
  %153 = vmatprep.subr.bf16.mxu0 0
  %154 = vmatpush1.bf16.msra.mxu0 0
  %155 = vmatprep.subr.bf16.mxu0 0
  %156 = vmatpush1.bf16.msra.mxu0 0
  %157 = vmatprep.subr.bf16.mxu0 0
  %158 = vmatpush1.bf16.msra.mxu0 0
  %159 = vmatprep.subr.bf16.mxu0 0
  %160 = vmatpush1.bf16.msra.mxu0 0
  %161 = vmatprep.subr.bf16.mxu0 0
  %162 = vmatpush1.bf16.msra.mxu0 0
  %163 = vmatprep.mubr.bf16.mxu0 0
  %164 = vmatmul.mubr.bf16.gmra.mrb[0].mxu0 %v49
  %v165 = vpop.f32.mrb[0].mxu0
  %v166 = vadd.f32 0.0, %v165
  %v167 = vpop.f32.mrb[0].mxu0
  %v168 = vadd.f32 0.0, %v167
  %v169 = vpop.f32.mrb[0].mxu0
  %v170 = vadd.f32 0.0, %v169
  %v171 = vpop.f32.mrb[0].mxu0
  %v172 = vadd.f32 0.0, %v171
  %173 = vdwg.mxu0
  %v174 = vadd.f32 %v23, %v166
  %v175 = vadd.f32 %v24, %v168
  %v176 = vadd.f32 %v25, %v170
  %v177 = vadd.f32 %v26, %v172
  %178 = vst [vmem:[#allocation2] sm:$0xff] %v174
  %179 = vst [vmem:[#allocation2 + $0x8] sm:$0xff] %v175
  %180 = vst [vmem:[#allocation2 + $0x10] sm:$0xff] %v176
  %181 = vst [vmem:[#allocation2 + $0x18] sm:$0xff] %v177
  // Predicated region
  $region18: #{decoder_forward.23} parent=0 // pred_check
    %p182 = pneg %p15
  $region19: #{decoder_forward.23} parent=0 // pred_check_branch
    %184 = sbr.rel (%p182) target = $region21
  $region20: #{decoder_forward.23} parent=0 // pred_region
    %v185 = vld [vmem:[#allocation2] sm:$0xff]
    %v186 = vld [vmem:[#allocation2 + $0x8] sm:$0xff]
    %v187 = vld [vmem:[#allocation2 + $0x10] sm:$0xff]
    %v188 = vld [vmem:[#allocation2 + $0x18] sm:$0xff]
    %v189 = vld [vmem:[%s2] sm:$0x3]
    %v191 = vlaneseq
    %v192 = vshrl.u32 %v191, 7
    %v193 = vsub.s32 0, %v192
    %v194 = vrot.slane %v189, %v193
    %v195 = vlaneseq
    %v196 = vshrl.u32 %v195, 7
    %v197 = vsub.s32 1, %v196
    %v198 = vrot.slane %v189, %v197
    %v201 = vadd.f32 %v185, %v194
    %v202 = vadd.f32 %v186, %v198
    %v203 = vadd.f32 %v187, %v194
    %v204 = vadd.f32 %v188, %v198
    %v205 = vpack.c.bf16 %v203, %v201
    %v206 = vpack.c.bf16 %v204, %v202
    %v209 = vunpack.c.l.b16 %v205
    %v210 = vunpack.c.l.b16 %v206
    %v211 = vunpack.c.h.b16 %v205
    %v212 = vunpack.c.h.b16 %v206
    %v213 = vpack.c.b16 %v210, %v209
    %v214 = vpack.c.b16 %v212, %v211
    %217 = vst [vmem:[%s3] sm:$0xff] %v213
    %218 = vst [vmem:[%s3 + $0x8] sm:$0xff] %v214
  $region21: #{decoder_forward.23} parent=0 // pred_fallthru
    _
  // Predicated region
  $region22: #{decoder_forward.23} parent=0 // pred_check
    _
  $region23: #{decoder_forward.23} parent=0 // pred_check_branch
    %220 = sbr.rel (0) target = $region25
  $region24: #{decoder_forward.23} parent=0 // pred_region
    _
  $region25: #{decoder_forward.23} parent=0 // pred_fallthru
    _
  // Predicated region
  $region26: #{decoder_forward.23} parent=0 // pred_check
    _
  $region27: #{decoder_forward.23} parent=0 // pred_check_branch
    %222 = sbr.rel (0) target = $region29
  $region28: #{decoder_forward.23} parent=0 // pred_region
    _
  $region29: #{decoder_forward.23} parent=0 // pred_fallthru
    _

// kernel: decoder_forward.24
$region0: #{decoder_forward.24}
  #allocation0 [shape = 'u32[]', space=smem, size = 0x4, offset = 0x4, fixed_abs, tag = 'smem constant byte address 0x4 - core index']
  #allocation1 [shape = 'u32[144,128]{1,0:T(1,128)}', space=vmem, size = 0x12000, scoped, tag = 'internal scratch']
  #allocation2 [shape = 'f32[4,8,1]{2,1,0:T(8,128)}', space=vmem, size = 0x4000, scoped, tag = 'scratch operand']
  #allocation3 [shape = 'f32[4,8,1]{2,1,0:T(8,128)}', space=vmem, size = 0x4000, scoped, tag = 'scratch operand']
  #allocation4 [shape = 'f32[8,128]{1,0:T(8,128)}', space=vmem, size = 0x1000, scoped, tag = 'scratch operand']
  %s0 = inlined_call_operand.vmem [shape: bf16[2,8,1], index: 0, kind: input, shape index: {}]
  %s1 = inlined_call_operand.vmem [shape: bf16[2,1,8], index: 1, kind: input, shape index: {}]
  %s2 = inlined_call_operand.vmem [shape: bf16[2,8,128], index: 2, kind: input, shape index: {}]
  %s3 = inlined_call_operand.vmem [shape: bf16[2,8,256], index: 3, kind: input, shape index: {}, may-alias: {3,4}]
  %s4 = inlined_call_operand.vmem [shape: bf16[2,8,256], index: 4, kind: input, shape index: {}, may-alias: {3,4}]
  %s5 = inlined_call_operand.vmem [shape: bf16[2,8,128], index: 5, kind: output, shape index: {}]
  %s6 = sld [smem:[#allocation0]]
  $region61: #{decoder_forward.24} parent=0
    _
  %s8 = ssub.s32 1, %s6
  %s9 = scalar_select 0, %s8, %s6
  loop: start=0, step=1, limit=4
  $region2: #{decoder_forward.24} parent=0 // loop_pre_header
    _
  $region3: #{decoder_forward.24} parent=0 // loop_header
    %s11 = sphi 0, %s15
    %p12 = scmp.ge.s32.totalorder %s11, 4
    %s18 = sphi 0, %s37
    %s19 = sphi 0, %s33
    %s20 = sphi 0, %s29
    %s21 = sphi 0, %s18
    %s22 = sphi 0, %s19
    %s23 = sphi 0, %s20
    %s24 = sphi 0, %s21
    %s25 = sphi 0, %s22
    %s26 = sphi 0, %s23
    %s42 = sphi 0, %s44
    %s45 = sphi 0, %s42
    %s46 = sphi 0, %s45
    %s62 = sphi 0, %s46
    %s70 = sphi 0, %s72
    %s73 = sphi 0, %s70
    %s74 = sphi 0, %s73
    %s90 = sphi 0, %s74
    %s98 = sphi 0, %s100
    %s101 = sphi 0, %s98
    %s102 = sphi 0, %s101
    %s118 = sphi 0, %s102
    %s126 = sphi 0, %s128
    %s129 = sphi 0, %s126
    %s130 = sphi 0, %s129
    %s146 = sphi 0, %s130
    %s154 = sphi 0, %s156
    %s157 = sphi 0, %s154
    %s158 = sphi 0, %s157
    %s174 = sphi 0, %s158
    %s182 = sphi 0, %s184
    %s185 = sphi 0, %s182
    %s186 = sphi 0, %s185
    %s202 = sphi 0, %s186
  $region4: #{decoder_forward.24} parent=0 // loop_header_branch
    %14 = sbr.rel (%p12) target = $region8
  $region5: #{decoder_forward.24} parent=0 // loop_body
    %s16 = ssub.s32 %s11, 1
    %s17 = ssub.s32 %s11, 2
    %s27 = sadd.s32 1, %s20
    %p28 = scmp.ge.s32.totalorder %s27, 1
    %s29 = scalar_select %p28, 0, %s27
    %s30 = sadd.s32 1, %s19
    %s31 = scalar_select %p28, %s30, %s19
    %p32 = scmp.ge.s32.totalorder %s31, 1
    %s33 = scalar_select %p32, 0, %s31
    %s34 = sadd.s32 1, %s18
    %s35 = scalar_select %p32, %s34, %s18
    %p36 = scmp.ge.s32.totalorder %s35, 2
    %s37 = scalar_select %p36, 0, %s35
    %s38 = ssub.s32 %s18, %s37
    %s39 = ssub.s32 %s19, %s33
    %s40 = sor.u32 %s38, %s39
    %p41 = scmp.eq.s32.totalorder %s40, 0
    %s43 = sadd.s32 %s42, 1
    %s44 = scalar_select %p41, %s42, %s43
    %p47 = pneg %p41
    %p48 = scmp.eq.s32.totalorder %s11, 1
    %p49 = por %p47, %p48
    %p50 = scmp.ne.s32.totalorder %s42, %s45
    %p51 = scmp.eq.s32.totalorder %s11, 0
    %p52 = por %p50, %p51
    %p53 = scmp.ne.s32.totalorder %s42, %s45
    %p54 = scmp.eq.s32.totalorder %s16, 1
    %p55 = por %p53, %p54
    %p56 = scmp.ne.s32.totalorder %s45, %s46
    %p57 = scmp.eq.s32.totalorder %s16, 0
    %p58 = por %p56, %p57
    %p59 = scmp.ne.s32.totalorder %s45, %s46
    %p60 = scmp.eq.s32.totalorder %s17, 1
    %p61 = por %p59, %p60
    %p63 = scmp.ne.s32.totalorder %s46, %s62
    %p64 = scmp.eq.s32.totalorder %s17, 0
    %p65 = por %p63, %p64
    %s66 = ssub.s32 %s18, %s37
    %s67 = ssub.s32 %s20, %s29
    %s68 = sor.u32 %s66, %s67
    %p69 = scmp.eq.s32.totalorder %s68, 0
    %s71 = sadd.s32 %s70, 1
    %s72 = scalar_select %p69, %s70, %s71
    %p75 = pneg %p69
    %p76 = scmp.eq.s32.totalorder %s11, 1
    %p77 = por %p75, %p76
    %p78 = scmp.ne.s32.totalorder %s70, %s73
    %p79 = scmp.eq.s32.totalorder %s11, 0
    %p80 = por %p78, %p79
    %p81 = scmp.ne.s32.totalorder %s70, %s73
    %p82 = scmp.eq.s32.totalorder %s16, 1
    %p83 = por %p81, %p82
    %p84 = scmp.ne.s32.totalorder %s73, %s74
    %p85 = scmp.eq.s32.totalorder %s16, 0
    %p86 = por %p84, %p85
    %p87 = scmp.ne.s32.totalorder %s73, %s74
    %p88 = scmp.eq.s32.totalorder %s17, 1
    %p89 = por %p87, %p88
    %p91 = scmp.ne.s32.totalorder %s74, %s90
    %p92 = scmp.eq.s32.totalorder %s17, 0
    %p93 = por %p91, %p92
    %s94 = ssub.s32 %s18, %s37
    %s95 = ssub.s32 %s19, %s33
    %s96 = sor.u32 %s94, %s95
    %p97 = scmp.eq.s32.totalorder %s96, 0
    %s99 = sadd.s32 %s98, 1
    %s100 = scalar_select %p97, %s98, %s99
    %p103 = pneg %p97
    %p104 = scmp.eq.s32.totalorder %s11, 1
    %p105 = por %p103, %p104
    %p106 = scmp.ne.s32.totalorder %s98, %s101
    %p107 = scmp.eq.s32.totalorder %s11, 0
    %p108 = por %p106, %p107
    %p109 = scmp.ne.s32.totalorder %s98, %s101
    %p110 = scmp.eq.s32.totalorder %s16, 1
    %p111 = por %p109, %p110
    %p112 = scmp.ne.s32.totalorder %s101, %s102
    %p113 = scmp.eq.s32.totalorder %s16, 0
    %p114 = por %p112, %p113
    %p115 = scmp.ne.s32.totalorder %s101, %s102
    %p116 = scmp.eq.s32.totalorder %s17, 1
    %p117 = por %p115, %p116
    %p119 = scmp.ne.s32.totalorder %s102, %s118
    %p120 = scmp.eq.s32.totalorder %s17, 0
    %p121 = por %p119, %p120
    %s122 = ssub.s32 %s18, %s37
    %s123 = ssub.s32 %s20, %s29
    %s124 = sor.u32 %s122, %s123
    %p125 = scmp.eq.s32.totalorder %s124, 0
    %s127 = sadd.s32 %s126, 1
    %s128 = scalar_select %p125, %s126, %s127
    %p131 = pneg %p125
    %p132 = scmp.eq.s32.totalorder %s11, 1
    %p133 = por %p131, %p132
    %p134 = scmp.ne.s32.totalorder %s126, %s129
    %p135 = scmp.eq.s32.totalorder %s11, 0
    %p136 = por %p134, %p135
    %p137 = scmp.ne.s32.totalorder %s126, %s129
    %p138 = scmp.eq.s32.totalorder %s16, 1
    %p139 = por %p137, %p138
    %p140 = scmp.ne.s32.totalorder %s129, %s130
    %p141 = scmp.eq.s32.totalorder %s16, 0
    %p142 = por %p140, %p141
    %p143 = scmp.ne.s32.totalorder %s129, %s130
    %p144 = scmp.eq.s32.totalorder %s17, 1
    %p145 = por %p143, %p144
    %p147 = scmp.ne.s32.totalorder %s130, %s146
    %p148 = scmp.eq.s32.totalorder %s17, 0
    %p149 = por %p147, %p148
    %s150 = ssub.s32 %s18, %s37
    %s151 = ssub.s32 %s20, %s29
    %s152 = sor.u32 %s150, %s151
    %p153 = scmp.eq.s32.totalorder %s152, 0
    %s155 = sadd.s32 %s154, 1
    %s156 = scalar_select %p153, %s154, %s155
    %p159 = pneg %p153
    %p160 = scmp.eq.s32.totalorder %s11, 1
    %p161 = por %p159, %p160
    %p162 = scmp.ne.s32.totalorder %s154, %s157
    %p163 = scmp.eq.s32.totalorder %s11, 0
    %p164 = por %p162, %p163
    %p165 = scmp.ne.s32.totalorder %s154, %s157
    %p166 = scmp.eq.s32.totalorder %s16, 1
    %p167 = por %p165, %p166
    %p168 = scmp.ne.s32.totalorder %s157, %s158
    %p169 = scmp.eq.s32.totalorder %s16, 0
    %p170 = por %p168, %p169
    %p171 = scmp.ne.s32.totalorder %s157, %s158
    %p172 = scmp.eq.s32.totalorder %s17, 1
    %p173 = por %p171, %p172
    %p175 = scmp.ne.s32.totalorder %s158, %s174
    %p176 = scmp.eq.s32.totalorder %s17, 0
    %p177 = por %p175, %p176
    %s178 = ssub.s32 %s18, %s37
    %s179 = ssub.s32 %s19, %s33
    %s180 = sor.u32 %s178, %s179
    %p181 = scmp.eq.s32.totalorder %s180, 0
    %s183 = sadd.s32 %s182, 1
    %s184 = scalar_select %p181, %s182, %s183
    %p187 = pneg %p181
    %p188 = scmp.eq.s32.totalorder %s11, 1
    %p189 = por %p187, %p188
    %p190 = scmp.ne.s32.totalorder %s182, %s185
    %p191 = scmp.eq.s32.totalorder %s11, 0
    %p192 = por %p190, %p191
    %p193 = scmp.ne.s32.totalorder %s182, %s185
    %p194 = scmp.eq.s32.totalorder %s16, 1
    %p195 = por %p193, %p194
    %p196 = scmp.ne.s32.totalorder %s185, %s186
    %p197 = scmp.eq.s32.totalorder %s16, 0
    %p198 = por %p196, %p197
    %p199 = scmp.ne.s32.totalorder %s185, %s186
    %p200 = scmp.eq.s32.totalorder %s17, 1
    %p201 = por %p199, %p200
    %p203 = scmp.ne.s32.totalorder %s186, %s202
    %p204 = scmp.eq.s32.totalorder %s17, 0
    %p205 = por %p203, %p204
    %p206 = scmp.le.s32.totalorder 1, %s11
    %p207 = scmp.lt.s32.totalorder %s11, 3
    %p208 = pnand %p206, %p207
    %p209 = pneg %p208
    // Predicated region
    $region9: #{decoder_forward.24} parent=5 // pred_check
      _
    $region10: #{decoder_forward.24} parent=5 // pred_check_branch
      %211 = sbr.rel (%p208) target = $region12
    $region11: #{decoder_forward.24} parent=5 // pred_region
      %s212 = ssub.s32 %s11, 1
    $region12: #{decoder_forward.24} parent=5 // pred_fallthru
      _
    %p213 = scmp.lt.s32.totalorder %s11, 2
    // Predicated region
    $region13: #{decoder_forward.24} parent=5 // pred_check
      %p214 = pneg %p213
    $region14: #{decoder_forward.24} parent=5 // pred_check_branch
      %216 = sbr.rel (%p214) target = $region16
    $region15: #{decoder_forward.24} parent=5 // pred_region
      // Predicated region
      $region17: #{decoder_forward.24} parent=15 // pred_check
        %p217 = pneg %p52
      $region18: #{decoder_forward.24} parent=15 // pred_check_branch
        %219 = sbr.rel (%p217) target = $region20
      $region19: #{decoder_forward.24} parent=15 // pred_region
        %p220 = scmp.lt.s32.totalorder %s18, 1
        %s221 = scalar_select %p220, %s18, 1
        %p222 = scmp.lt.s32.totalorder %s19, 0
        %s223 = scalar_select %p222, %s19, 0
        %s224 = sadd.s32 %s223, %s221
        %s225 = smul.addr %s224, 4
        %s226 = scalar_lea.vmem %s0, %s225
      $region20: #{decoder_forward.24} parent=15 // pred_fallthru
        _
      // Predicated region
      $region21: #{decoder_forward.24} parent=15 // pred_check
        %p227 = pneg %p80
      $region22: #{decoder_forward.24} parent=15 // pred_check_branch
        %229 = sbr.rel (%p227) target = $region24
      $region23: #{decoder_forward.24} parent=15 // pred_region
        %p230 = scmp.lt.s32.totalorder %s18, 1
        %s231 = scalar_select %p230, %s18, 1
        %p232 = scmp.lt.s32.totalorder %s20, 0
        %s233 = scalar_select %p232, %s20, 0
        %s234 = sadd.s32 %s233, %s231
        %s235 = scalar_lea.vmem %s1, %s234
      $region24: #{decoder_forward.24} parent=15 // pred_fallthru
        _
      // Predicated region
      $region25: #{decoder_forward.24} parent=15 // pred_check
        %p236 = pneg %p108
      $region26: #{decoder_forward.24} parent=15 // pred_check_branch
        %238 = sbr.rel (%p236) target = $region28
      $region27: #{decoder_forward.24} parent=15 // pred_region
        %p239 = scmp.lt.s32.totalorder %s18, 1
        %s240 = scalar_select %p239, %s18, 1
        %p241 = scmp.lt.s32.totalorder %s19, 0
        %s242 = scalar_select %p241, %s19, 0
        %s243 = sadd.s32 %s242, %s240
        %s244 = smul.addr %s243, 4
        %s245 = scalar_lea.vmem %s2, %s244
      $region28: #{decoder_forward.24} parent=15 // pred_fallthru
        _
      // Predicated region
      $region29: #{decoder_forward.24} parent=15 // pred_check
        %p246 = pneg %p136
      $region30: #{decoder_forward.24} parent=15 // pred_check_branch
        %248 = sbr.rel (%p246) target = $region32
      $region31: #{decoder_forward.24} parent=15 // pred_region
        %p249 = scmp.lt.s32.totalorder %s18, 1
        %s250 = scalar_select %p249, %s18, 1
        %p251 = scmp.lt.s32.totalorder %s20, 0
        %s252 = scalar_select %p251, %s20, 0
        %s253 = smul.addr %s252, 2
        %s254 = smul.addr %s250, 2
        %s255 = sadd.s32 %s253, %s254
        %s256 = smul.addr %s255, 4
        %s257 = scalar_lea.vmem %s3, %s256
      $region32: #{decoder_forward.24} parent=15 // pred_fallthru
        _
      // Predicated region
      $region33: #{decoder_forward.24} parent=15 // pred_check
        %p258 = pneg %p164
      $region34: #{decoder_forward.24} parent=15 // pred_check_branch
        %260 = sbr.rel (%p258) target = $region36
      $region35: #{decoder_forward.24} parent=15 // pred_region
        %p261 = scmp.lt.s32.totalorder %s18, 1
        %s262 = scalar_select %p261, %s18, 1
        %p263 = scmp.lt.s32.totalorder %s20, 0
        %s264 = scalar_select %p263, %s20, 0
        %s265 = smul.addr %s264, 2
        %s266 = sadd.s32 1, %s265
        %s267 = smul.addr %s262, 2
        %s268 = sadd.s32 %s266, %s267
        %s269 = smul.addr %s268, 4
        %s270 = scalar_lea.vmem %s4, %s269
      $region36: #{decoder_forward.24} parent=15 // pred_fallthru
        _
    $region16: #{decoder_forward.24} parent=5 // pred_fallthru
      _
    %p271 = scmp.le.s32.totalorder 1, %s11
    %p272 = scmp.lt.s32.totalorder %s11, 3
    %p273 = pnand %p271, %p272
    %p274 = pneg %p273
    // Predicated region
    $region37: #{decoder_forward.24} parent=5 // pred_check
      _
    $region38: #{decoder_forward.24} parent=5 // pred_check_branch
      %276 = sbr.rel (%p273) target = $region40
    $region39: #{decoder_forward.24} parent=5 // pred_region
      %s277 = ssub.s32 %s11, 1
      %p278 = scmp.lt.s32.totalorder %s21, 1
      %s279 = scalar_select %p278, %s21, 1
      %p280 = scmp.lt.s32.totalorder %s22, 0
      %s281 = scalar_select %p280, %s22, 0
      %s282 = sadd.s32 %s281, %s279
      %s283 = smul.addr %s282, 4
      %s284 = scalar_lea.vmem %s0, %s283
      %p285 = pneg %p58
      %p286 = pneg %p55
      %p287 = scmp.lt.s32.totalorder %s21, 1
      %s288 = scalar_select %p287, %s21, 1
      %p289 = scmp.lt.s32.totalorder %s23, 0
      %s290 = scalar_select %p289, %s23, 0
      %s291 = sadd.s32 %s290, %s288
      %s292 = scalar_lea.vmem %s1, %s291
      %p293 = pneg %p86
      %p294 = pneg %p83
      %p295 = scmp.lt.s32.totalorder %s21, 1
      %s296 = scalar_select %p295, %s21, 1
      %p297 = scmp.lt.s32.totalorder %s22, 0
      %s298 = scalar_select %p297, %s22, 0
      %s299 = sadd.s32 %s298, %s296
      %s300 = smul.addr %s299, 4
      %s301 = scalar_lea.vmem %s2, %s300
      %p302 = pneg %p114
      %p303 = pneg %p111
      %p304 = scmp.lt.s32.totalorder %s21, 1
      %s305 = scalar_select %p304, %s21, 1
      %p306 = scmp.lt.s32.totalorder %s23, 0
      %s307 = scalar_select %p306, %s23, 0
      %s308 = smul.addr %s307, 2
      %s309 = smul.addr %s305, 2
      %s310 = sadd.s32 %s308, %s309
      %s311 = smul.addr %s310, 4
      %s312 = scalar_lea.vmem %s3, %s311
      %p313 = pneg %p142
      %p314 = pneg %p139
      %p315 = scmp.lt.s32.totalorder %s21, 1
      %s316 = scalar_select %p315, %s21, 1
      %p317 = scmp.lt.s32.totalorder %s23, 0
      %s318 = scalar_select %p317, %s23, 0
      %s319 = smul.addr %s318, 2
      %s320 = sadd.s32 1, %s319
      %s321 = smul.addr %s316, 2
      %s322 = sadd.s32 %s320, %s321
      %s323 = smul.addr %s322, 4
      %s324 = scalar_lea.vmem %s4, %s323
      %p325 = pneg %p170
      %p326 = pneg %p167
      %p327 = pneg %p198
      %p328 = pneg %p195
      %p329 = scmp.lt.s32.totalorder %s21, 1
      %s330 = scalar_select %p329, %s21, 1
      %p331 = scmp.lt.s32.totalorder %s22, 0
      %s332 = scalar_select %p331, %s22, 0
      %s333 = sadd.s32 %s332, %s330
      %s334 = smul.addr %s333, 4
      %s335 = scalar_lea.vmem %s5, %s334
      %p336 = scmp.lt.s32.totalorder %s21, 1
      %s337 = scalar_select %p336, %s21, 1
      %p338 = scmp.lt.s32.totalorder %s22, 0
      %s339 = scalar_select %p338, %s22, 0
      %s340 = sadd.s32 %s339, %s337
      %s341 = smul.addr %s340, 4
      %s342 = scalar_lea.vmem %s0, %s341
      %p343 = scmp.lt.s32.totalorder %s21, 1
      %s344 = scalar_select %p343, %s21, 1
      %p345 = scmp.lt.s32.totalorder %s23, 0
      %s346 = scalar_select %p345, %s23, 0
      %s347 = sadd.s32 %s346, %s344
      %s348 = scalar_lea.vmem %s1, %s347
      %p349 = scmp.lt.s32.totalorder %s21, 1
      %s350 = scalar_select %p349, %s21, 1
      %p351 = scmp.lt.s32.totalorder %s22, 0
      %s352 = scalar_select %p351, %s22, 0
      %s353 = sadd.s32 %s352, %s350
      %s354 = smul.addr %s353, 4
      %s355 = scalar_lea.vmem %s2, %s354
      %p356 = scmp.lt.s32.totalorder %s21, 1
      %s357 = scalar_select %p356, %s21, 1
      %p358 = scmp.lt.s32.totalorder %s23, 0
      %s359 = scalar_select %p358, %s23, 0
      %s360 = smul.addr %s359, 2
      %s361 = smul.addr %s357, 2
      %s362 = sadd.s32 %s360, %s361
      %s363 = smul.addr %s362, 4
      %s364 = scalar_lea.vmem %s3, %s363
      %p365 = scmp.lt.s32.totalorder %s21, 1
      %s366 = scalar_select %p365, %s21, 1
      %p367 = scmp.lt.s32.totalorder %s23, 0
      %s368 = scalar_select %p367, %s23, 0
      %s369 = smul.addr %s368, 2
      %s370 = sadd.s32 1, %s369
      %s371 = smul.addr %s366, 2
      %s372 = sadd.s32 %s370, %s371
      %s373 = smul.addr %s372, 4
      %s374 = scalar_lea.vmem %s4, %s373
      %p375 = scmp.lt.s32.totalorder %s21, 1
      %s376 = scalar_select %p375, %s21, 1
      %p377 = scmp.lt.s32.totalorder %s22, 0
      %s378 = scalar_select %p377, %s22, 0
      %s379 = sadd.s32 %s378, %s376
      %s380 = smul.addr %s379, 4
      %s381 = scalar_lea.vmem %s5, %s380
      %p386 = scmp.eq.s32.totalorder %s23, 0
      // Predicated region
      $region41: #{decoder_forward.24} parent=39 // pred_check
        %p387 = pneg %p386
      $region42: #{decoder_forward.24} parent=39 // pred_check_branch
        %389 = sbr.rel (%p387) target = $region44
      $region43: #{decoder_forward.24} parent=39 // pred_region
        %vm390 = vcmask 7168
        %391 = vst.msk [vmem:[#allocation2] sm:$0xff] %vm390, -1e+30
        %392 = vst.msk [vmem:[#allocation2 + $0x8] sm:$0xff] %vm390, -1e+30
        %393 = vst.msk [vmem:[#allocation2 + $0x10] sm:$0xff] %vm390, -1e+30
        %394 = vst.msk [vmem:[#allocation2 + $0x18] sm:$0xff] %vm390, -1e+30
        %395 = vst.msk [vmem:[#allocation3] sm:$0xff] %vm390, 0.0
        %396 = vst.msk [vmem:[#allocation3 + $0x8] sm:$0xff] %vm390, 0.0
        %397 = vst.msk [vmem:[#allocation3 + $0x10] sm:$0xff] %vm390, 0.0
        %398 = vst.msk [vmem:[#allocation3 + $0x18] sm:$0xff] %vm390, 0.0
        %399 = vst [vmem:[#allocation4] sm:$0xff] 0.0
      $region44: #{decoder_forward.24} parent=39 // pred_fallthru
        _
      %v400 = vld [vmem:[%s355] sm:$0xf]
      %v401 = vld [vmem:[%s364] sm:$0xf]
      %v402 = vld [vmem:[%s374] sm:$0xf]
      %v403 = vld [vmem:[%s348] sm:$0x1]
      %vm404 = vcmp.gt.bf16.partialorder %v403, 0
      %v405 = vld [vmem:[%s342] sm:$0xf]
      %vm406 = vcmp.gt.bf16.partialorder %v405, 0
      %v407 = vsel %vm404, 65537, 0
      %v408 = vunpack.c.l.b16 %v407
      %vm409 = vcmp.ne.s32.totalorder %v408, 0
      %v410 = vsel %vm409, 1, 0
      %v411 = vlaneseq
      %v412 = vshrl.u32 %v411, 7
      %v413 = vsub.s32 0, %v412
      %v414 = vrot.slane %v410, %v413
      %vm415 = vcmp.eq.s32.totalorder %v414, 1
      %v416 = vsel %vm406, 65537, 0
      %v417 = vunpack.c.l.b16 %v416
      %vm418 = vcmp.ne.s32.totalorder %v417, 0
      %v419 = vsel %vm418, 1, 0
      %420 = vset.pattern.permute.xlu0 0
      %421 = vperm.xlu0 %420, %v419
      %v422 = vpop.permute.xlu0 %421
      %vm423 = vcmp.eq.s32.totalorder %v422, 1
      %vm424 = vmand %vm415, %vm423
      %v425 = vmul.bf16 %v400, 1043676725
      %vm426 = vcmask 261120
      %v428 = vsel %vm426, %v425, 0
      %v431 = vsel %vm426, %v401, 0
      %433 = vmatprep.subr.bf16.mxu0 0
      %434 = vmatpush1.bf16.xpose.msra.mxu0 %v431
      %435 = vmatprep.subr.bf16.mxu0 0
      %436 = vmatpush1.bf16.xpose.msra.mxu0 0
      %437 = vmatprep.subr.bf16.mxu0 0
      %438 = vmatpush1.bf16.xpose.msra.mxu0 0
      %439 = vmatprep.subr.bf16.mxu0 0
      %440 = vmatpush1.bf16.xpose.msra.mxu0 0
      %441 = vmatprep.subr.bf16.mxu0 0
      %442 = vmatpush1.bf16.xpose.msra.mxu0 0
      %443 = vmatprep.subr.bf16.mxu0 0
      %444 = vmatpush1.bf16.xpose.msra.mxu0 0
      %445 = vmatprep.subr.bf16.mxu0 0
      %446 = vmatpush1.bf16.xpose.msra.mxu0 0
      %447 = vmatprep.subr.bf16.mxu0 0
      %448 = vmatpush1.bf16.xpose.msra.mxu0 0
      %449 = vmatprep.subr.bf16.mxu0 0
      %450 = vmatpush1.bf16.xpose.msra.mxu0 0
      %451 = vmatprep.subr.bf16.mxu0 0
      %452 = vmatpush1.bf16.xpose.msra.mxu0 0
      %453 = vmatprep.subr.bf16.mxu0 0
      %454 = vmatpush1.bf16.xpose.msra.mxu0 0
      %455 = vmatprep.subr.bf16.mxu0 0
      %456 = vmatpush1.bf16.xpose.msra.mxu0 0
      %457 = vmatprep.subr.bf16.mxu0 0
      %458 = vmatpush1.bf16.xpose.msra.mxu0 0
      %459 = vmatprep.subr.bf16.mxu0 0
      %460 = vmatpush1.bf16.xpose.msra.mxu0 0
      %461 = vmatprep.subr.bf16.mxu0 0
      %462 = vmatpush1.bf16.xpose.msra.mxu0 0
      %463 = vmatprep.subr.bf16.mxu0 0
      %464 = vmatpush1.bf16.xpose.msra.mxu0 0
      %465 = vmatprep.mubr.bf16.mxu0 0
      %466 = vmatmul.mubr.bf16.gmra.mrb[0].mxu0 %v428
      %v467 = vpop.f32.mrb[0].mxu0
      %v468 = vadd.f32 0.0, %v467
      %v469 = vpop.f32.mrb[0].mxu0
      %v470 = vpop.f32.mrb[0].mxu0
      %v471 = vpop.f32.mrb[0].mxu0
      %472 = vdwg.mxu0
      %v473 = vsel %vm424, %v468, -10000.0
      %v474 = vld [vmem:[#allocation2] sm:$0xff]
      %vm475 = vcmask 64512
      %v476 = vsel %vm475, %v473, -inf
      %477 = vmax.xlane.f32.xlu0 %v476
      %v478 = vpop.xlane.xlu0 %477
      %v479 = vmax.f32 %v474, %v478
      %v480 = vsub.f32 %v474, %v479
      %v481 = vmul.f32 %v480, 1.442695
      %v482 = vpow.pop %v481
      %484 = vset.pattern.permute.xlu0 0
      %485 = vperm.xlu0 %484, %v479
      %v486 = vpop.permute.xlu0 %485
      %v488 = vsub.f32 %v473, %v486
      %v489 = vmul.f32 %v488, 1.442695
      %v490 = vpow.pop %v489
      %v491 = vld [vmem:[#allocation3] sm:$0xff]
      %v492 = vmul.f32 %v482, %v491
      %v493 = vsel %vm475, %v490, 0.0
      %494 = vadd.xlane.f32.xlu0 %v493
      %v495 = vpop.xlane.xlu0 %494
      %v496 = vadd.f32 %v492, %v495
      %vm497 = vcmask 7168
      %498 = vst.msk [vmem:[#allocation3] sm:$0xff] %vm497, %v496
      %v499 = vld [vmem:[#allocation4] sm:$0xff]
      %501 = vset.pattern.permute.xlu0 0
      %502 = vperm.xlu0 %501, %v482
      %v503 = vpop.permute.xlu0 %502
      %v505 = vmul.f32 %v503, %v499
      %v506 = vpack.c.bf16 %v490, %v490
      %v508 = vsel %vm475, %v506, 0
      %vm510 = vcmask 1043456
      %v512 = vsel %vm510, %v402, 0
      %514 = vmatprep.subr.bf16.mxu0 0
      %515 = vmatpush1.bf16.msra.mxu0 %v512
      %516 = vmatprep.subr.bf16.mxu0 0
      %517 = vmatpush1.bf16.msra.mxu0 0
      %518 = vmatprep.subr.bf16.mxu0 0
      %519 = vmatpush1.bf16.msra.mxu0 0
      %520 = vmatprep.subr.bf16.mxu0 0
      %521 = vmatpush1.bf16.msra.mxu0 0
      %522 = vmatprep.subr.bf16.mxu0 0
      %523 = vmatpush1.bf16.msra.mxu0 0
      %524 = vmatprep.subr.bf16.mxu0 0
      %525 = vmatpush1.bf16.msra.mxu0 0
      %526 = vmatprep.subr.bf16.mxu0 0
      %527 = vmatpush1.bf16.msra.mxu0 0
      %528 = vmatprep.subr.bf16.mxu0 0
      %529 = vmatpush1.bf16.msra.mxu0 0
      %530 = vmatprep.subr.bf16.mxu0 0
      %531 = vmatpush1.bf16.msra.mxu0 0
      %532 = vmatprep.subr.bf16.mxu0 0
      %533 = vmatpush1.bf16.msra.mxu0 0
      %534 = vmatprep.subr.bf16.mxu0 0
      %535 = vmatpush1.bf16.msra.mxu0 0
      %536 = vmatprep.subr.bf16.mxu0 0
      %537 = vmatpush1.bf16.msra.mxu0 0
      %538 = vmatprep.subr.bf16.mxu0 0
      %539 = vmatpush1.bf16.msra.mxu0 0
      %540 = vmatprep.subr.bf16.mxu0 0
      %541 = vmatpush1.bf16.msra.mxu0 0
      %542 = vmatprep.subr.bf16.mxu0 0
      %543 = vmatpush1.bf16.msra.mxu0 0
      %544 = vmatprep.subr.bf16.mxu0 0
      %545 = vmatpush1.bf16.msra.mxu0 0
      %546 = vmatprep.mubr.bf16.mxu0 0
      %547 = vmatmul.mubr.bf16.gmra.mrb[0].mxu0 %v508
      %v548 = vpop.f32.mrb[0].mxu0
      %v549 = vadd.f32 0.0, %v548
      %v550 = vpop.f32.mrb[0].mxu0
      %v551 = vpop.f32.mrb[0].mxu0
      %v552 = vpop.f32.mrb[0].mxu0
      %553 = vdwg.mxu0
      %v554 = vadd.f32 %v505, %v549
      %555 = vst.msk [vmem:[#allocation4] sm:$0xff] %vm426, %v554
      %556 = vst.msk [vmem:[#allocation2] sm:$0xff] %vm497, %v479
      %v558 = vunpack.c.l.b16 %v425
      %v559 = vpack.c.b16 %v558, %v558
      %560 = vrot.lane.b32.xlu0 %v559, 96
      %v561 = vpop.permute.xlu0 %560
      %v563 = vunpack.c.l.b16 %v401
      %v564 = vpack.c.b16 %v563, %v563
      %565 = vrot.lane.b32.xlu0 %v564, 96
      %v566 = vpop.permute.xlu0 %565
      %v568 = vsel %vm426, %v561, 0
      %v571 = vsel %vm426, %v566, 0
      %573 = vmatprep.subr.bf16.mxu0 0
      %574 = vmatpush1.bf16.xpose.msra.mxu0 %v571
      %575 = vmatprep.subr.bf16.mxu0 0
      %576 = vmatpush1.bf16.xpose.msra.mxu0 0
      %577 = vmatprep.subr.bf16.mxu0 0
      %578 = vmatpush1.bf16.xpose.msra.mxu0 0
      %579 = vmatprep.subr.bf16.mxu0 0
      %580 = vmatpush1.bf16.xpose.msra.mxu0 0
      %581 = vmatprep.subr.bf16.mxu0 0
      %582 = vmatpush1.bf16.xpose.msra.mxu0 0
      %583 = vmatprep.subr.bf16.mxu0 0
      %584 = vmatpush1.bf16.xpose.msra.mxu0 0
      %585 = vmatprep.subr.bf16.mxu0 0
      %586 = vmatpush1.bf16.xpose.msra.mxu0 0
      %587 = vmatprep.subr.bf16.mxu0 0
      %588 = vmatpush1.bf16.xpose.msra.mxu0 0
      %589 = vmatprep.subr.bf16.mxu0 0
      %590 = vmatpush1.bf16.xpose.msra.mxu0 0
      %591 = vmatprep.subr.bf16.mxu0 0
      %592 = vmatpush1.bf16.xpose.msra.mxu0 0
      %593 = vmatprep.subr.bf16.mxu0 0
      %594 = vmatpush1.bf16.xpose.msra.mxu0 0
      %595 = vmatprep.subr.bf16.mxu0 0
      %596 = vmatpush1.bf16.xpose.msra.mxu0 0
      %597 = vmatprep.subr.bf16.mxu0 0
      %598 = vmatpush1.bf16.xpose.msra.mxu0 0
      %599 = vmatprep.subr.bf16.mxu0 0
      %600 = vmatpush1.bf16.xpose.msra.mxu0 0
      %601 = vmatprep.subr.bf16.mxu0 0
      %602 = vmatpush1.bf16.xpose.msra.mxu0 0
      %603 = vmatprep.subr.bf16.mxu0 0
      %604 = vmatpush1.bf16.xpose.msra.mxu0 0
      %605 = vmatprep.mubr.bf16.mxu0 0
      %606 = vmatmul.mubr.bf16.gmra.mrb[0].mxu0 %v568
      %v607 = vpop.f32.mrb[0].mxu0
      %v608 = vadd.f32 0.0, %v607
      %v609 = vpop.f32.mrb[0].mxu0
      %v610 = vpop.f32.mrb[0].mxu0
      %v611 = vpop.f32.mrb[0].mxu0
      %612 = vdwg.mxu0
      %v613 = vsel %vm424, %v608, -10000.0
      %s614 = scalar_lea.vmem [#allocation2], 8
      %v615 = vld [vmem:[%s614] sm:$0xff]
      %v616 = vsel %vm475, %v613, -inf
      %617 = vmax.xlane.f32.xlu0 %v616
      %v618 = vpop.xlane.xlu0 %617
      %v619 = vmax.f32 %v615, %v618
      %v620 = vsub.f32 %v615, %v619
      %v621 = vmul.f32 %v620, 1.442695
      %v622 = vpow.pop %v621
      %624 = vset.pattern.permute.xlu0 0
      %625 = vperm.xlu0 %624, %v619
      %v626 = vpop.permute.xlu0 %625
      %v628 = vsub.f32 %v613, %v626
      %v629 = vmul.f32 %v628, 1.442695
      %v630 = vpow.pop %v629
      %s631 = scalar_lea.vmem [#allocation3], 8
      %v632 = vld [vmem:[%s631] sm:$0xff]
      %v633 = vmul.f32 %v622, %v632
      %v634 = vsel %vm475, %v630, 0.0
      %635 = vadd.xlane.f32.xlu0 %v634
      %v636 = vpop.xlane.xlu0 %635
      %v637 = vadd.f32 %v633, %v636
      %638 = vst.msk [vmem:[%s631] sm:$0xff] %vm497, %v637
      %v639 = vld [vmem:[#allocation4] sm:$0xff]
      %641 = vset.pattern.permute.xlu0 0
      %642 = vperm.xlu0 %641, %v622
      %v643 = vpop.permute.xlu0 %642
      %v645 = vmul.f32 %v643, %v639
      %v646 = vpack.c.bf16 %v630, %v630
      %v648 = vunpack.c.l.b16 %v402
      %v649 = vpack.c.b16 %v648, %v648
      %650 = vrot.lane.b32.xlu0 %v649, 96
      %v651 = vpop.permute.xlu0 %650
      %v653 = vsel %vm475, %v646, 0
      %v656 = vsel %vm510, %v651, 0
      %658 = vmatprep.subr.bf16.mxu0 0
      %659 = vmatpush1.bf16.msra.mxu0 %v656
      %660 = vmatprep.subr.bf16.mxu0 0
      %661 = vmatpush1.bf16.msra.mxu0 0
      %662 = vmatprep.subr.bf16.mxu0 0
      %663 = vmatpush1.bf16.msra.mxu0 0
      %664 = vmatprep.subr.bf16.mxu0 0
      %665 = vmatpush1.bf16.msra.mxu0 0
      %666 = vmatprep.subr.bf16.mxu0 0
      %667 = vmatpush1.bf16.msra.mxu0 0
      %668 = vmatprep.subr.bf16.mxu0 0
      %669 = vmatpush1.bf16.msra.mxu0 0
      %670 = vmatprep.subr.bf16.mxu0 0
      %671 = vmatpush1.bf16.msra.mxu0 0
      %672 = vmatprep.subr.bf16.mxu0 0
      %673 = vmatpush1.bf16.msra.mxu0 0
      %674 = vmatprep.subr.bf16.mxu0 0
      %675 = vmatpush1.bf16.msra.mxu0 0
      %676 = vmatprep.subr.bf16.mxu0 0
      %677 = vmatpush1.bf16.msra.mxu0 0
      %678 = vmatprep.subr.bf16.mxu0 0
      %679 = vmatpush1.bf16.msra.mxu0 0
      %680 = vmatprep.subr.bf16.mxu0 0
      %681 = vmatpush1.bf16.msra.mxu0 0
      %682 = vmatprep.subr.bf16.mxu0 0
      %683 = vmatpush1.bf16.msra.mxu0 0
      %684 = vmatprep.subr.bf16.mxu0 0
      %685 = vmatpush1.bf16.msra.mxu0 0
      %686 = vmatprep.subr.bf16.mxu0 0
      %687 = vmatpush1.bf16.msra.mxu0 0
      %688 = vmatprep.subr.bf16.mxu0 0
      %689 = vmatpush1.bf16.msra.mxu0 0
      %690 = vmatprep.mubr.bf16.mxu0 0
      %691 = vmatmul.mubr.bf16.gmra.mrb[0].mxu0 %v653
      %v692 = vpop.f32.mrb[0].mxu0
      %v693 = vadd.f32 0.0, %v692
      %v694 = vpop.f32.mrb[0].mxu0
      %v695 = vpop.f32.mrb[0].mxu0
      %v696 = vpop.f32.mrb[0].mxu0
      %697 = vdwg.mxu0
      %699 = vrot.lane.b32.xlu0 %v693, 32
      %v700 = vpop.permute.xlu0 %699
      %v702 = vadd.f32 %v645, %v700
      %vm703 = vcmask 523520
      %704 = vst.msk [vmem:[#allocation4] sm:$0xff] %vm703, %v702
      %705 = vst.msk [vmem:[%s614] sm:$0xff] %vm497, %v619
      %706 = vrot.lane.b32.xlu0 %v559, 64
      %v707 = vpop.permute.xlu0 %706
      %708 = vrot.lane.b32.xlu0 %v564, 64
      %v709 = vpop.permute.xlu0 %708
      %v711 = vsel %vm426, %v707, 0
      %v714 = vsel %vm426, %v709, 0
      %716 = vmatprep.subr.bf16.mxu0 0
      %717 = vmatpush1.bf16.xpose.msra.mxu0 %v714
      %718 = vmatprep.subr.bf16.mxu0 0
      %719 = vmatpush1.bf16.xpose.msra.mxu0 0
      %720 = vmatprep.subr.bf16.mxu0 0
      %721 = vmatpush1.bf16.xpose.msra.mxu0 0
      %722 = vmatprep.subr.bf16.mxu0 0
      %723 = vmatpush1.bf16.xpose.msra.mxu0 0
      %724 = vmatprep.subr.bf16.mxu0 0
      %725 = vmatpush1.bf16.xpose.msra.mxu0 0
      %726 = vmatprep.subr.bf16.mxu0 0
      %727 = vmatpush1.bf16.xpose.msra.mxu0 0
      %728 = vmatprep.subr.bf16.mxu0 0
      %729 = vmatpush1.bf16.xpose.msra.mxu0 0
      %730 = vmatprep.subr.bf16.mxu0 0
      %731 = vmatpush1.bf16.xpose.msra.mxu0 0
      %732 = vmatprep.subr.bf16.mxu0 0
      %733 = vmatpush1.bf16.xpose.msra.mxu0 0
      %734 = vmatprep.subr.bf16.mxu0 0
      %735 = vmatpush1.bf16.xpose.msra.mxu0 0
      %736 = vmatprep.subr.bf16.mxu0 0
      %737 = vmatpush1.bf16.xpose.msra.mxu0 0
      %738 = vmatprep.subr.bf16.mxu0 0
      %739 = vmatpush1.bf16.xpose.msra.mxu0 0
      %740 = vmatprep.subr.bf16.mxu0 0
      %741 = vmatpush1.bf16.xpose.msra.mxu0 0
      %742 = vmatprep.subr.bf16.mxu0 0
      %743 = vmatpush1.bf16.xpose.msra.mxu0 0
      %744 = vmatprep.subr.bf16.mxu0 0
      %745 = vmatpush1.bf16.xpose.msra.mxu0 0
      %746 = vmatprep.subr.bf16.mxu0 0
      %747 = vmatpush1.bf16.xpose.msra.mxu0 0
      %748 = vmatprep.mubr.bf16.mxu0 0
      %749 = vmatmul.mubr.bf16.gmra.mrb[0].mxu0 %v711
      %v750 = vpop.f32.mrb[0].mxu0
      %v751 = vadd.f32 0.0, %v750
      %v752 = vpop.f32.mrb[0].mxu0
      %v753 = vpop.f32.mrb[0].mxu0
      %v754 = vpop.f32.mrb[0].mxu0
      %755 = vdwg.mxu0
      %v756 = vsel %vm424, %v751, -10000.0
      %s757 = scalar_lea.vmem [#allocation2], 16
      %v758 = vld [vmem:[%s757] sm:$0xff]
      %v759 = vsel %vm475, %v756, -inf
      %760 = vmax.xlane.f32.xlu0 %v759
      %v761 = vpop.xlane.xlu0 %760
      %v762 = vmax.f32 %v758, %v761
      %v763 = vsub.f32 %v758, %v762
      %v764 = vmul.f32 %v763, 1.442695
      %v765 = vpow.pop %v764
      %767 = vset.pattern.permute.xlu0 0
      %768 = vperm.xlu0 %767, %v762
      %v769 = vpop.permute.xlu0 %768
      %v771 = vsub.f32 %v756, %v769
      %v772 = vmul.f32 %v771, 1.442695
      %v773 = vpow.pop %v772
      %s774 = scalar_lea.vmem [#allocation3], 16
      %v775 = vld [vmem:[%s774] sm:$0xff]
      %v776 = vmul.f32 %v765, %v775
      %v777 = vsel %vm475, %v773, 0.0
      %778 = vadd.xlane.f32.xlu0 %v777
      %v779 = vpop.xlane.xlu0 %778
      %v780 = vadd.f32 %v776, %v779
      %781 = vst.msk [vmem:[%s774] sm:$0xff] %vm497, %v780
      %v782 = vld [vmem:[#allocation4] sm:$0xff]
      %784 = vset.pattern.permute.xlu0 0
      %785 = vperm.xlu0 %784, %v765
      %v786 = vpop.permute.xlu0 %785
      %v788 = vmul.f32 %v786, %v782
      %v789 = vpack.c.bf16 %v773, %v773
      %790 = vrot.lane.b32.xlu0 %v649, 64
      %v791 = vpop.permute.xlu0 %790
      %v793 = vsel %vm475, %v789, 0
      %v796 = vsel %vm510, %v791, 0
      %798 = vmatprep.subr.bf16.mxu0 0
      %799 = vmatpush1.bf16.msra.mxu0 %v796
      %800 = vmatprep.subr.bf16.mxu0 0
      %801 = vmatpush1.bf16.msra.mxu0 0
      %802 = vmatprep.subr.bf16.mxu0 0
      %803 = vmatpush1.bf16.msra.mxu0 0
      %804 = vmatprep.subr.bf16.mxu0 0
      %805 = vmatpush1.bf16.msra.mxu0 0
      %806 = vmatprep.subr.bf16.mxu0 0
      %807 = vmatpush1.bf16.msra.mxu0 0
      %808 = vmatprep.subr.bf16.mxu0 0
      %809 = vmatpush1.bf16.msra.mxu0 0
      %810 = vmatprep.subr.bf16.mxu0 0
      %811 = vmatpush1.bf16.msra.mxu0 0
      %812 = vmatprep.subr.bf16.mxu0 0
      %813 = vmatpush1.bf16.msra.mxu0 0
      %814 = vmatprep.subr.bf16.mxu0 0
      %815 = vmatpush1.bf16.msra.mxu0 0
      %816 = vmatprep.subr.bf16.mxu0 0
      %817 = vmatpush1.bf16.msra.mxu0 0
      %818 = vmatprep.subr.bf16.mxu0 0
      %819 = vmatpush1.bf16.msra.mxu0 0
      %820 = vmatprep.subr.bf16.mxu0 0
      %821 = vmatpush1.bf16.msra.mxu0 0
      %822 = vmatprep.subr.bf16.mxu0 0
      %823 = vmatpush1.bf16.msra.mxu0 0
      %824 = vmatprep.subr.bf16.mxu0 0
      %825 = vmatpush1.bf16.msra.mxu0 0
      %826 = vmatprep.subr.bf16.mxu0 0
      %827 = vmatpush1.bf16.msra.mxu0 0
      %828 = vmatprep.subr.bf16.mxu0 0
      %829 = vmatpush1.bf16.msra.mxu0 0
      %830 = vmatprep.mubr.bf16.mxu0 0
      %831 = vmatmul.mubr.bf16.gmra.mrb[0].mxu0 %v793
      %v832 = vpop.f32.mrb[0].mxu0
      %v833 = vadd.f32 0.0, %v832
      %v834 = vpop.f32.mrb[0].mxu0
      %v835 = vpop.f32.mrb[0].mxu0
      %v836 = vpop.f32.mrb[0].mxu0
      %837 = vdwg.mxu0
      %839 = vrot.lane.b32.xlu0 %v833, 64
      %v840 = vpop.permute.xlu0 %839
      %v842 = vadd.f32 %v788, %v840
      %vm843 = vcmask 785920
      %844 = vst.msk [vmem:[#allocation4] sm:$0xff] %vm843, %v842
      %845 = vst.msk [vmem:[%s757] sm:$0xff] %vm497, %v762
      %846 = vrot.lane.b32.xlu0 %v559, 32
      %v847 = vpop.permute.xlu0 %846
      %848 = vrot.lane.b32.xlu0 %v564, 32
      %v849 = vpop.permute.xlu0 %848
      %v851 = vsel %vm426, %v847, 0
      %v854 = vsel %vm426, %v849, 0
      %856 = vmatprep.subr.bf16.mxu0 0
      %857 = vmatpush1.bf16.xpose.msra.mxu0 %v854
      %858 = vmatprep.subr.bf16.mxu0 0
      %859 = vmatpush1.bf16.xpose.msra.mxu0 0
      %860 = vmatprep.subr.bf16.mxu0 0
      %861 = vmatpush1.bf16.xpose.msra.mxu0 0
      %862 = vmatprep.subr.bf16.mxu0 0
      %863 = vmatpush1.bf16.xpose.msra.mxu0 0
      %864 = vmatprep.subr.bf16.mxu0 0
      %865 = vmatpush1.bf16.xpose.msra.mxu0 0
      %866 = vmatprep.subr.bf16.mxu0 0
      %867 = vmatpush1.bf16.xpose.msra.mxu0 0
      %868 = vmatprep.subr.bf16.mxu0 0
      %869 = vmatpush1.bf16.xpose.msra.mxu0 0
      %870 = vmatprep.subr.bf16.mxu0 0
      %871 = vmatpush1.bf16.xpose.msra.mxu0 0
      %872 = vmatprep.subr.bf16.mxu0 0
      %873 = vmatpush1.bf16.xpose.msra.mxu0 0
      %874 = vmatprep.subr.bf16.mxu0 0
      %875 = vmatpush1.bf16.xpose.msra.mxu0 0
      %876 = vmatprep.subr.bf16.mxu0 0
      %877 = vmatpush1.bf16.xpose.msra.mxu0 0
      %878 = vmatprep.subr.bf16.mxu0 0
      %879 = vmatpush1.bf16.xpose.msra.mxu0 0
      %880 = vmatprep.subr.bf16.mxu0 0
      %881 = vmatpush1.bf16.xpose.msra.mxu0 0
      %882 = vmatprep.subr.bf16.mxu0 0
      %883 = vmatpush1.bf16.xpose.msra.mxu0 0
      %884 = vmatprep.subr.bf16.mxu0 0
      %885 = vmatpush1.bf16.xpose.msra.mxu0 0
      %886 = vmatprep.subr.bf16.mxu0 0
      %887 = vmatpush1.bf16.xpose.msra.mxu0 0
      %888 = vmatprep.mubr.bf16.mxu0 0
      %889 = vmatmul.mubr.bf16.gmra.mrb[0].mxu0 %v851
      %v890 = vpop.f32.mrb[0].mxu0
      %v891 = vadd.f32 0.0, %v890
      %v892 = vpop.f32.mrb[0].mxu0
      %v893 = vpop.f32.mrb[0].mxu0
      %v894 = vpop.f32.mrb[0].mxu0
      %895 = vdwg.mxu0
      %v896 = vsel %vm424, %v891, -10000.0
      %s897 = scalar_lea.vmem [#allocation2], 24
      %v898 = vld [vmem:[%s897] sm:$0xff]
      %v899 = vsel %vm475, %v896, -inf
      %900 = vmax.xlane.f32.xlu0 %v899
      %v901 = vpop.xlane.xlu0 %900
      %v902 = vmax.f32 %v898, %v901
      %v903 = vsub.f32 %v898, %v902
      %v904 = vmul.f32 %v903, 1.442695
      %v905 = vpow.pop %v904
      %907 = vset.pattern.permute.xlu0 0
      %908 = vperm.xlu0 %907, %v902
      %v909 = vpop.permute.xlu0 %908
      %v911 = vsub.f32 %v896, %v909
      %v912 = vmul.f32 %v911, 1.442695
      %v913 = vpow.pop %v912
      %s914 = scalar_lea.vmem [#allocation3], 24
      %v915 = vld [vmem:[%s914] sm:$0xff]
      %v916 = vmul.f32 %v905, %v915
      %v917 = vsel %vm475, %v913, 0.0
      %918 = vadd.xlane.f32.xlu0 %v917
      %v919 = vpop.xlane.xlu0 %918
      %v920 = vadd.f32 %v916, %v919
      %921 = vst.msk [vmem:[%s914] sm:$0xff] %vm497, %v920
      %v922 = vld [vmem:[#allocation4] sm:$0xff]
      %924 = vset.pattern.permute.xlu0 0
      %925 = vperm.xlu0 %924, %v905
      %v926 = vpop.permute.xlu0 %925
      %v928 = vmul.f32 %v926, %v922
      %v929 = vpack.c.bf16 %v913, %v913
      %930 = vrot.lane.b32.xlu0 %v649, 32
      %v931 = vpop.permute.xlu0 %930
      %v933 = vsel %vm475, %v929, 0
      %v936 = vsel %vm510, %v931, 0
      %938 = vmatprep.subr.bf16.mxu0 0
      %939 = vmatpush1.bf16.msra.mxu0 %v936
      %940 = vmatprep.subr.bf16.mxu0 0
      %941 = vmatpush1.bf16.msra.mxu0 0
      %942 = vmatprep.subr.bf16.mxu0 0
      %943 = vmatpush1.bf16.msra.mxu0 0
      %944 = vmatprep.subr.bf16.mxu0 0
      %945 = vmatpush1.bf16.msra.mxu0 0
      %946 = vmatprep.subr.bf16.mxu0 0
      %947 = vmatpush1.bf16.msra.mxu0 0
      %948 = vmatprep.subr.bf16.mxu0 0
      %949 = vmatpush1.bf16.msra.mxu0 0
      %950 = vmatprep.subr.bf16.mxu0 0
      %951 = vmatpush1.bf16.msra.mxu0 0
      %952 = vmatprep.subr.bf16.mxu0 0
      %953 = vmatpush1.bf16.msra.mxu0 0
      %954 = vmatprep.subr.bf16.mxu0 0
      %955 = vmatpush1.bf16.msra.mxu0 0
      %956 = vmatprep.subr.bf16.mxu0 0
      %957 = vmatpush1.bf16.msra.mxu0 0
      %958 = vmatprep.subr.bf16.mxu0 0
      %959 = vmatpush1.bf16.msra.mxu0 0
      %960 = vmatprep.subr.bf16.mxu0 0
      %961 = vmatpush1.bf16.msra.mxu0 0
      %962 = vmatprep.subr.bf16.mxu0 0
      %963 = vmatpush1.bf16.msra.mxu0 0
      %964 = vmatprep.subr.bf16.mxu0 0
      %965 = vmatpush1.bf16.msra.mxu0 0
      %966 = vmatprep.subr.bf16.mxu0 0
      %967 = vmatpush1.bf16.msra.mxu0 0
      %968 = vmatprep.subr.bf16.mxu0 0
      %969 = vmatpush1.bf16.msra.mxu0 0
      %970 = vmatprep.mubr.bf16.mxu0 0
      %971 = vmatmul.mubr.bf16.gmra.mrb[0].mxu0 %v933
      %v972 = vpop.f32.mrb[0].mxu0
      %v973 = vadd.f32 0.0, %v972
      %v974 = vpop.f32.mrb[0].mxu0
      %v975 = vpop.f32.mrb[0].mxu0
      %v976 = vpop.f32.mrb[0].mxu0
      %977 = vdwg.mxu0
      %979 = vrot.lane.b32.xlu0 %v973, 96
      %v980 = vpop.permute.xlu0 %979
      %v982 = vadd.f32 %v928, %v980
      %vm983 = vcmask 1048320
      %984 = vst.msk [vmem:[#allocation4] sm:$0xff] %vm983, %v982
      %985 = vst.msk [vmem:[%s897] sm:$0xff] %vm497, %v902
      // Predicated region
      $region45: #{decoder_forward.24} parent=39 // pred_check
        %p986 = pneg %p386
      $region46: #{decoder_forward.24} parent=39 // pred_check_branch
        %988 = sbr.rel (%p986) target = $region48
      $region47: #{decoder_forward.24} parent=39 // pred_region
        %v989 = vld [vmem:[#allocation4] sm:$0xff]
        %v990 = vld [vmem:[#allocation3] sm:$0xff]
        %v991 = vrcp.pop %v990
        %993 = vset.pattern.permute.xlu0 0
        %994 = vperm.xlu0 %993, %v991
        %v995 = vpop.permute.xlu0 %994
        %v997 = vmul.f32 %v989, %v995
        %998 = vst.msk [vmem:[#allocation4] sm:$0xff] %vm426, %v997
        %v999 = vld [vmem:[#allocation4] sm:$0xff]
        %v1000 = vld [vmem:[%s631] sm:$0xff]
        %v1001 = vrcp.pop %v1000
        %1003 = vset.pattern.permute.xlu0 0
        %1004 = vperm.xlu0 %1003, %v1001
        %v1005 = vpop.permute.xlu0 %1004
        %v1007 = vmul.f32 %v999, %v1005
        %1008 = vst.msk [vmem:[#allocation4] sm:$0xff] %vm703, %v1007
        %v1009 = vld [vmem:[#allocation4] sm:$0xff]
        %v1010 = vld [vmem:[%s774] sm:$0xff]
        %v1011 = vrcp.pop %v1010
        %1013 = vset.pattern.permute.xlu0 0
        %1014 = vperm.xlu0 %1013, %v1011
        %v1015 = vpop.permute.xlu0 %1014
        %v1017 = vmul.f32 %v1009, %v1015
        %1018 = vst.msk [vmem:[#allocation4] sm:$0xff] %vm843, %v1017
        %v1019 = vld [vmem:[#allocation4] sm:$0xff]
        %v1020 = vld [vmem:[%s914] sm:$0xff]
        %v1021 = vrcp.pop %v1020
        %1023 = vset.pattern.permute.xlu0 0
        %1024 = vperm.xlu0 %1023, %v1021
        %v1025 = vpop.permute.xlu0 %1024
        %v1027 = vmul.f32 %v1019, %v1025
        %1028 = vst.msk [vmem:[#allocation4] sm:$0xff] %vm983, %v1027
        %v1029 = vld [vmem:[#allocation4] sm:$0xff]
        %v1030 = vpack.c.bf16 %v1029, %v1029
        %1031 = vst [vmem:[%s381] sm:$0xf] %v1030
      $region48: #{decoder_forward.24} parent=39 // pred_fallthru
        _
      %p1032 = scmp.lt.s32.totalorder %s21, 1
      %s1033 = scalar_select %p1032, %s21, 1
      %p1034 = scmp.lt.s32.totalorder %s22, 0
      %s1035 = scalar_select %p1034, %s22, 0
      %s1036 = sadd.s32 %s1035, %s1033
      %s1037 = smul.addr %s1036, 4
      %s1038 = scalar_lea.vmem %s5, %s1037
      // Predicated region
      $region49: #{decoder_forward.24} parent=39 // pred_check
        %p1039 = pneg %p195
      $region50: #{decoder_forward.24} parent=39 // pred_check_branch
        %1041 = sbr.rel (%p1039) target = $region52
      $region51: #{decoder_forward.24} parent=39 // pred_region
        _
      $region52: #{decoder_forward.24} parent=39 // pred_fallthru
        _
    $region40: #{decoder_forward.24} parent=5 // pred_fallthru
      _
    %p1042 = scmp.le.s32.totalorder 2, %s11
    // Predicated region
    $region53: #{decoder_forward.24} parent=5 // pred_check
      %p1043 = pneg %p1042
    $region54: #{decoder_forward.24} parent=5 // pred_check_branch
      %1045 = sbr.rel (%p1043) target = $region56
    $region55: #{decoder_forward.24} parent=5 // pred_region
      %s1046 = ssub.s32 %s11, 2
      // Predicated region
      $region57: #{decoder_forward.24} parent=55 // pred_check
        %p1047 = pneg %p201
      $region58: #{decoder_forward.24} parent=55 // pred_check_branch
        %1049 = sbr.rel (%p1047) target = $region60
      $region59: #{decoder_forward.24} parent=55 // pred_region
        %p1050 = scmp.lt.s32.totalorder %s24, 1
        %s1051 = scalar_select %p1050, %s24, 1
        %p1052 = scmp.lt.s32.totalorder %s25, 0
        %s1053 = scalar_select %p1052, %s25, 0
        %s1054 = sadd.s32 %s1053, %s1051
        %s1055 = smul.addr %s1054, 4
        %s1056 = scalar_lea.vmem %s5, %s1055
      $region60: #{decoder_forward.24} parent=55 // pred_fallthru
        _
    $region56: #{decoder_forward.24} parent=5 // pred_fallthru
      _
  $region6: #{decoder_forward.24} parent=0 // loop_footer
    %s15 = sadd.s32 1, %s11
  $region7: #{decoder_forward.24} parent=0 // loop_footer_branch
    %10 = sbr.rel target = $region3
  $region8: #{decoder_forward.24} parent=0 // loop_exit
    _

// kernel: decoder_forward.27
$region0: #{decoder_forward.27}
  #allocation0 [shape = 'u32[]', space=smem, size = 0x4, offset = 0x4, fixed_abs, tag = 'smem constant byte address 0x4 - core index']
  #allocation1 [shape = 'u32[144,128]{1,0:T(1,128)}', space=vmem, size = 0x12000, scoped, tag = 'internal scratch']
  #allocation2 [shape = 'f32[16,128]{1,0:T(8,128)}', space=vmem, size = 0x2000, scoped, tag = 'scratch operand']
  %s0 = inlined_call_operand.vmem [shape: bf16[16,256], index: 0, kind: input, shape index: {}]
  %s1 = inlined_call_operand.vmem [shape: bf16[256,128], index: 1, kind: input, shape index: {}]
  %s2 = inlined_call_operand.vmem [shape: f32[1,128], index: 2, kind: input, shape index: {}]
  %s3 = inlined_call_operand.vmem [shape: bf16[16,128], index: 3, kind: input, shape index: {}]
  %s4 = inlined_call_operand.vmem [shape: f32[1,128], index: 4, kind: input, shape index: {}]
  %s5 = inlined_call_operand.vmem [shape: f32[1,128], index: 5, kind: input, shape index: {}]
  %s6 = inlined_call_operand.vmem [shape: bf16[16,128], index: 6, kind: output, shape index: {}]
  %s7 = sld [smem:[#allocation0]]
  $region42: #{decoder_forward.27} parent=0
    _
  %s9 = ssub.s32 1, %s7
  %s10 = scalar_select 0, %s9, %s7
  // Predicated region
  $region2: #{decoder_forward.27} parent=0 // pred_check
    _
  $region3: #{decoder_forward.27} parent=0 // pred_check_branch
    %12 = sbr.rel (0) target = $region5
  $region4: #{decoder_forward.27} parent=0 // pred_region
    _
  $region5: #{decoder_forward.27} parent=0 // pred_fallthru
    _
  // Predicated region
  $region6: #{decoder_forward.27} parent=0 // pred_check
    _
  $region7: #{decoder_forward.27} parent=0 // pred_check_branch
    %14 = sbr.rel (0) target = $region9
  $region8: #{decoder_forward.27} parent=0 // pred_region
    _
  $region9: #{decoder_forward.27} parent=0 // pred_fallthru
    _
  // Predicated region
  $region10: #{decoder_forward.27} parent=0 // pred_check
    _
  $region11: #{decoder_forward.27} parent=0 // pred_check_branch
    %16 = sbr.rel (0) target = $region13
  $region12: #{decoder_forward.27} parent=0 // pred_region
    _
  $region13: #{decoder_forward.27} parent=0 // pred_fallthru
    _
  // Predicated region
  $region14: #{decoder_forward.27} parent=0 // pred_check
    _
  $region15: #{decoder_forward.27} parent=0 // pred_check_branch
    %18 = sbr.rel (0) target = $region17
  $region16: #{decoder_forward.27} parent=0 // pred_region
    _
  $region17: #{decoder_forward.27} parent=0 // pred_fallthru
    _
  // Predicated region
  $region18: #{decoder_forward.27} parent=0 // pred_check
    _
  $region19: #{decoder_forward.27} parent=0 // pred_check_branch
    %20 = sbr.rel (0) target = $region21
  $region20: #{decoder_forward.27} parent=0 // pred_region
    _
  $region21: #{decoder_forward.27} parent=0 // pred_fallthru
    _
  // Predicated region
  $region22: #{decoder_forward.27} parent=0 // pred_check
    _
  $region23: #{decoder_forward.27} parent=0 // pred_check_branch
    %22 = sbr.rel (0) target = $region25
  $region24: #{decoder_forward.27} parent=0 // pred_region
    _
  $region25: #{decoder_forward.27} parent=0 // pred_fallthru
    _
  %p24 = scmp.eq.s32.totalorder 0, 0
  // Predicated region
  $region26: #{decoder_forward.27} parent=0 // pred_check
    %p25 = pneg %p24
  $region27: #{decoder_forward.27} parent=0 // pred_check_branch
    %27 = sbr.rel (%p25) target = $region29
  $region28: #{decoder_forward.27} parent=0 // pred_region
    %28 = vst [vmem:[#allocation2] sm:$0xff] 0.0
    %29 = vst [vmem:[#allocation2 + $0x8] sm:$0xff] 0.0
  $region29: #{decoder_forward.27} parent=0 // pred_fallthru
    _
  %v30 = vld [vmem:[#allocation2] sm:$0xff]
  %v31 = vld [vmem:[#allocation2 + $0x8] sm:$0xff]
  %v32 = vld [vmem:[%s0] sm:$0xff]
  %v33 = vld [vmem:[%s0 + $0x8] sm:$0xff]
  %v34 = vld [vmem:[%s1] sm:$0xf]
  %v35 = vld [vmem:[%s1 + $0x4] sm:$0xf]
  %v36 = vld [vmem:[%s1 + $0x8] sm:$0xf]
  %v37 = vld [vmem:[%s1 + $0xc] sm:$0xf]
  %v38 = vld [vmem:[%s1 + $0x10] sm:$0xf]
  %v39 = vld [vmem:[%s1 + $0x14] sm:$0xf]
  %v40 = vld [vmem:[%s1 + $0x18] sm:$0xf]
  %v41 = vld [vmem:[%s1 + $0x1c] sm:$0xf]
  %v42 = vld [vmem:[%s1 + $0x20] sm:$0xf]
  %v43 = vld [vmem:[%s1 + $0x24] sm:$0xf]
  %v44 = vld [vmem:[%s1 + $0x28] sm:$0xf]
  %v45 = vld [vmem:[%s1 + $0x2c] sm:$0xf]
  %v46 = vld [vmem:[%s1 + $0x30] sm:$0xf]
  %v47 = vld [vmem:[%s1 + $0x34] sm:$0xf]
  %v48 = vld [vmem:[%s1 + $0x38] sm:$0xf]
  %v49 = vld [vmem:[%s1 + $0x3c] sm:$0xf]
  %v50 = vld [vmem:[%s1 + $0x40] sm:$0xf]
  %v51 = vld [vmem:[%s1 + $0x44] sm:$0xf]
  %v52 = vld [vmem:[%s1 + $0x48] sm:$0xf]
  %v53 = vld [vmem:[%s1 + $0x4c] sm:$0xf]
  %v54 = vld [vmem:[%s1 + $0x50] sm:$0xf]
  %v55 = vld [vmem:[%s1 + $0x54] sm:$0xf]
  %v56 = vld [vmem:[%s1 + $0x58] sm:$0xf]
  %v57 = vld [vmem:[%s1 + $0x5c] sm:$0xf]
  %v58 = vld [vmem:[%s1 + $0x60] sm:$0xf]
  %v59 = vld [vmem:[%s1 + $0x64] sm:$0xf]
  %v60 = vld [vmem:[%s1 + $0x68] sm:$0xf]
  %v61 = vld [vmem:[%s1 + $0x6c] sm:$0xf]
  %v62 = vld [vmem:[%s1 + $0x70] sm:$0xf]
  %v63 = vld [vmem:[%s1 + $0x74] sm:$0xf]
  %v64 = vld [vmem:[%s1 + $0x78] sm:$0xf]
  %v65 = vld [vmem:[%s1 + $0x7c] sm:$0xf]
  %v68 = vunpack.c.l.b16 %v32
  %v69 = vunpack.c.h.b16 %v32
  %v70 = vunpack.c.l.b16 %v33
  %v71 = vunpack.c.h.b16 %v33
  %v72 = vpack.c.b16 %v70, %v68
  %v73 = vpack.c.b16 %v71, %v69
  %v108 = vunpack.c.l.b16 %v34
  %v109 = vunpack.c.l.b16 %v35
  %v110 = vunpack.c.l.b16 %v36
  %v111 = vunpack.c.l.b16 %v37
  %v112 = vunpack.c.l.b16 %v38
  %v113 = vunpack.c.l.b16 %v39
  %v114 = vunpack.c.l.b16 %v40
  %v115 = vunpack.c.l.b16 %v41
  %v116 = vunpack.c.l.b16 %v42
  %v117 = vunpack.c.l.b16 %v43
  %v118 = vunpack.c.l.b16 %v44
  %v119 = vunpack.c.l.b16 %v45
  %v120 = vunpack.c.l.b16 %v46
  %v121 = vunpack.c.l.b16 %v47
  %v122 = vunpack.c.l.b16 %v48
  %v123 = vunpack.c.l.b16 %v49
  %v124 = vunpack.c.l.b16 %v50
  %v125 = vunpack.c.l.b16 %v51
  %v126 = vunpack.c.l.b16 %v52
  %v127 = vunpack.c.l.b16 %v53
  %v128 = vunpack.c.l.b16 %v54
  %v129 = vunpack.c.l.b16 %v55
  %v130 = vunpack.c.l.b16 %v56
  %v131 = vunpack.c.l.b16 %v57
  %v132 = vunpack.c.l.b16 %v58
  %v133 = vunpack.c.l.b16 %v59
  %v134 = vunpack.c.l.b16 %v60
  %v135 = vunpack.c.l.b16 %v61
  %v136 = vunpack.c.l.b16 %v62
  %v137 = vunpack.c.l.b16 %v63
  %v138 = vunpack.c.l.b16 %v64
  %v139 = vunpack.c.l.b16 %v65
  %v140 = vpack.c.b16 %v109, %v108
  %v141 = vpack.c.b16 %v111, %v110
  %v142 = vpack.c.b16 %v113, %v112
  %v143 = vpack.c.b16 %v115, %v114
  %v144 = vpack.c.b16 %v117, %v116
  %v145 = vpack.c.b16 %v119, %v118
  %v146 = vpack.c.b16 %v121, %v120
  %v147 = vpack.c.b16 %v123, %v122
  %v148 = vpack.c.b16 %v125, %v124
  %v149 = vpack.c.b16 %v127, %v126
  %v150 = vpack.c.b16 %v129, %v128
  %v151 = vpack.c.b16 %v131, %v130
  %v152 = vpack.c.b16 %v133, %v132
  %v153 = vpack.c.b16 %v135, %v134
  %v154 = vpack.c.b16 %v137, %v136
  %v155 = vpack.c.b16 %v139, %v138
  %172 = vmatprep.subr.bf16.mxu0 0
  %173 = vmatpush1.bf16.msra.mxu0 %v140
  %174 = vmatprep.subr.bf16.mxu0 0
  %175 = vmatpush1.bf16.msra.mxu0 %v141
  %176 = vmatprep.subr.bf16.mxu0 0
  %177 = vmatpush1.bf16.msra.mxu0 %v142
  %178 = vmatprep.subr.bf16.mxu0 0
  %179 = vmatpush1.bf16.msra.mxu0 %v143
  %180 = vmatprep.subr.bf16.mxu0 0
  %181 = vmatpush1.bf16.msra.mxu0 %v144
  %182 = vmatprep.subr.bf16.mxu0 0
  %183 = vmatpush1.bf16.msra.mxu0 %v145
  %184 = vmatprep.subr.bf16.mxu0 0
  %185 = vmatpush1.bf16.msra.mxu0 %v146
  %186 = vmatprep.subr.bf16.mxu0 0
  %187 = vmatpush1.bf16.msra.mxu0 %v147
  %188 = vmatprep.subr.bf16.mxu0 0
  %189 = vmatpush1.bf16.msra.mxu0 %v148
  %190 = vmatprep.subr.bf16.mxu0 0
  %191 = vmatpush1.bf16.msra.mxu0 %v149
  %192 = vmatprep.subr.bf16.mxu0 0
  %193 = vmatpush1.bf16.msra.mxu0 %v150
  %194 = vmatprep.subr.bf16.mxu0 0
  %195 = vmatpush1.bf16.msra.mxu0 %v151
  %196 = vmatprep.subr.bf16.mxu0 0
  %197 = vmatpush1.bf16.msra.mxu0 %v152
  %198 = vmatprep.subr.bf16.mxu0 0
  %199 = vmatpush1.bf16.msra.mxu0 %v153
  %200 = vmatprep.subr.bf16.mxu0 0
  %201 = vmatpush1.bf16.msra.mxu0 %v154
  %202 = vmatprep.subr.bf16.mxu0 0
  %203 = vmatpush1.bf16.msra.mxu0 %v155
  %204 = vmatprep.mubr.bf16.mxu0 %v73
  %205 = vmatmul.mubr.bf16.gmra.mrb[0].mxu0 %v72
  %v206 = vpop.f32.mrb[0].mxu0
  %v207 = vadd.f32 0.0, %v206
  %v208 = vpop.f32.mrb[0].mxu0
  %v209 = vpop.f32.mrb[0].mxu0
  %v210 = vadd.f32 0.0, %v209
  %v211 = vpop.f32.mrb[0].mxu0
  %212 = vdwg.mxu0
  %v213 = vadd.f32 %v30, %v207
  %v214 = vadd.f32 %v31, %v210
  %215 = vst [vmem:[#allocation2] sm:$0xff] %v213
  %216 = vst [vmem:[#allocation2 + $0x8] sm:$0xff] %v214
  // Predicated region
  $region30: #{decoder_forward.27} parent=0 // pred_check
    %p217 = pneg %p24
  $region31: #{decoder_forward.27} parent=0 // pred_check_branch
    %219 = sbr.rel (%p217) target = $region33
  $region32: #{decoder_forward.27} parent=0 // pred_region
    %v220 = vld [vmem:[#allocation2] sm:$0xff]
    %v221 = vld [vmem:[#allocation2 + $0x8] sm:$0xff]
    %v222 = vld [vmem:[%s2] sm:$0x1]
    %v224 = vlaneseq
    %v225 = vshrl.u32 %v224, 7
    %v226 = vsub.s32 0, %v225
    %v227 = vrot.slane %v222, %v226
    %v229 = vadd.f32 %v220, %v227
    %v230 = vadd.f32 %v221, %v227
    %v231 = vld [vmem:[%s3] sm:$0xf]
    %v232 = vld [vmem:[%s3 + $0x4] sm:$0xf]
    %v233 = vunpack.c.l.bf16 %v231
    %v234 = vunpack.c.l.bf16 %v232
    %v235 = vadd.f32 %v229, %v233
    %v236 = vadd.f32 %v230, %v234
    %237 = vadd.xlane.f32.xlu0 %v235
    %v238 = vpop.xlane.xlu0 %237
    %239 = vadd.xlane.f32.xlu0 %v236
    %v240 = vpop.xlane.xlu0 %239
    %v241 = vrcp.pop 128.0
    %v242 = vmul.f32 %v238, %v241
    %v243 = vmul.f32 %v240, %v241
    %v244 = vsub.f32 %v235, %v242
    %v245 = vsub.f32 %v236, %v243
    %v246 = vmul.f32 %v244, %v244
    %v247 = vmul.f32 %v245, %v245
    %248 = vadd.xlane.f32.xlu0 %v246
    %v249 = vpop.xlane.xlu0 %248
    %250 = vadd.xlane.f32.xlu0 %v247
    %v251 = vpop.xlane.xlu0 %250
    %v252 = vmul.f32 %v249, %v241
    %v253 = vmul.f32 %v251, %v241
    %v254 = vadd.f32 %v252, 1e-12
    %v255 = vadd.f32 %v253, 1e-12
    %v256 = vrsqrt.pop %v254
    %v257 = vrsqrt.pop %v255
    %v258 = vld [vmem:[%s4] sm:$0x1]
    %v259 = vmul.f32 %v244, %v256
    %v260 = vmul.f32 %v245, %v257
    %v262 = vlaneseq
    %v263 = vshrl.u32 %v262, 7
    %v264 = vsub.s32 0, %v263
    %v265 = vrot.slane %v258, %v264
    %v267 = vmul.f32 %v265, %v259
    %v268 = vmul.f32 %v265, %v260
    %v269 = vld [vmem:[%s5] sm:$0x1]
    %v271 = vlaneseq
    %v272 = vshrl.u32 %v271, 7
    %v273 = vsub.s32 0, %v272
    %v274 = vrot.slane %v269, %v273
    %v276 = vadd.f32 %v267, %v274
    %v277 = vadd.f32 %v268, %v274
    %v278 = vpack.c.bf16 %v277, %v276
    %v280 = vunpack.c.l.b16 %v278
    %v281 = vunpack.c.h.b16 %v278
    %v282 = vpack.c.b16 %v280, %v280
    %v283 = vpack.c.b16 %v281, %v281
    %286 = vst [vmem:[%s6] sm:$0xf] %v282
    %287 = vst [vmem:[%s6 + $0x4] sm:$0xf] %v283
  $region33: #{decoder_forward.27} parent=0 // pred_fallthru
    _
  // Predicated region
  $region34: #{decoder_forward.27} parent=0 // pred_check
    _
  $region35: #{decoder_forward.27} parent=0 // pred_check_branch
    %289 = sbr.rel (0) target = $region37
  $region36: #{decoder_forward.27} parent=0 // pred_region
    _
  $region37: #{decoder_forward.27} parent=0 // pred_fallthru
    _
  // Predicated region
  $region38: #{decoder_forward.27} parent=0 // pred_check
    _
  $region39: #{decoder_forward.27} parent=0 // pred_check_branch
    %291 = sbr.rel (0) target = $region41
  $region40: #{decoder_forward.27} parent=0 // pred_region
    _
  $region41: #{decoder_forward.27} parent=0 // pred_fallthru
    _

// kernel: decoder_forward.37
$region0: #{decoder_forward.37}
  #allocation0 [shape = 'u32[]', space=smem, size = 0x4, offset = 0x4, fixed_abs, tag = 'smem constant byte address 0x4 - core index']
  #allocation1 [shape = 'u32[144,128]{1,0:T(1,128)}', space=vmem, size = 0x12000, scoped, tag = 'internal scratch']
  #allocation2 [shape = 'f32[16,32]{1,0:T(8,128)}', space=vmem, size = 0x2000, scoped, tag = 'scratch operand']
  %s0 = inlined_call_operand.vmem [shape: bf16[16,128], index: 0, kind: input, shape index: {}]
  %s1 = inlined_call_operand.vmem [shape: bf16[128,32], index: 1, kind: input, shape index: {}]
  %s2 = inlined_call_operand.vmem [shape: f32[1,32], index: 2, kind: input, shape index: {}]
  %s3 = inlined_call_operand.hbm [shape: f32[16,32], index: 3, kind: output, shape index: {}]
  %s4 = sld [smem:[#allocation0]]
  $region30: #{decoder_forward.37} parent=0
    _
  %s6 = ssub.s32 1, %s4
  %s7 = scalar_select 0, %s6, %s4
  $region1: #{decoder_forward.37} parent=0
    #allocation3 [shape = 'u8[8192]{0}', space=vmem, size = 0x2000, scoped, tag = 'output window, operand 0, single buffered']
    #allocation4 [shape = 's32[1]{0}', space=sflag, size = 0x4, scoped, tag = 'scoped memory for decoder_forward.37']
    %8 = vsyncpa [#allocation4], 0
    // Predicated region
    $region2: #{decoder_forward.37} parent=1 // pred_check
      _
    $region3: #{decoder_forward.37} parent=1 // pred_check_branch
      %10 = sbr.rel (0) target = $region5
    $region4: #{decoder_forward.37} parent=1 // pred_region
      _
    $region5: #{decoder_forward.37} parent=1 // pred_fallthru
      _
    // Predicated region
    $region6: #{decoder_forward.37} parent=1 // pred_check
      _
    $region7: #{decoder_forward.37} parent=1 // pred_check_branch
      %12 = sbr.rel (0) target = $region9
    $region8: #{decoder_forward.37} parent=1 // pred_region
      _
    $region9: #{decoder_forward.37} parent=1 // pred_fallthru
      _
    // Predicated region
    $region10: #{decoder_forward.37} parent=1 // pred_check
      _
    $region11: #{decoder_forward.37} parent=1 // pred_check_branch
      %14 = sbr.rel (0) target = $region13
    $region12: #{decoder_forward.37} parent=1 // pred_region
      _
    $region13: #{decoder_forward.37} parent=1 // pred_fallthru
      _
    %p16 = scmp.eq.s32.totalorder 0, 0
    // Predicated region
    $region14: #{decoder_forward.37} parent=1 // pred_check
      %p17 = pneg %p16
    $region15: #{decoder_forward.37} parent=1 // pred_check_branch
      %19 = sbr.rel (%p17) target = $region17
    $region16: #{decoder_forward.37} parent=1 // pred_region
      %vm20 = vcmask 261120
      %21 = vst.msk [vmem:[#allocation2] sm:$0xff] %vm20, 0.0
      %22 = vst.msk [vmem:[#allocation2 + $0x8] sm:$0xff] %vm20, 0.0
    $region17: #{decoder_forward.37} parent=1 // pred_fallthru
      _
    %v23 = vld [vmem:[#allocation2] sm:$0xff]
    %v24 = vld [vmem:[#allocation2 + $0x8] sm:$0xff]
    %v25 = vld [vmem:[%s0] sm:$0xf]
    %v26 = vld [vmem:[%s0 + $0x4] sm:$0xf]
    %v27 = vld [vmem:[%s1] sm:$0xf]
    %v28 = vld [vmem:[%s1 + $0x4] sm:$0xf]
    %v29 = vld [vmem:[%s1 + $0x8] sm:$0xf]
    %v30 = vld [vmem:[%s1 + $0xc] sm:$0xf]
    %v31 = vld [vmem:[%s1 + $0x10] sm:$0xf]
    %v32 = vld [vmem:[%s1 + $0x14] sm:$0xf]
    %v33 = vld [vmem:[%s1 + $0x18] sm:$0xf]
    %v34 = vld [vmem:[%s1 + $0x1c] sm:$0xf]
    %v35 = vld [vmem:[%s1 + $0x20] sm:$0xf]
    %v36 = vld [vmem:[%s1 + $0x24] sm:$0xf]
    %v37 = vld [vmem:[%s1 + $0x28] sm:$0xf]
    %v38 = vld [vmem:[%s1 + $0x2c] sm:$0xf]
    %v39 = vld [vmem:[%s1 + $0x30] sm:$0xf]
    %v40 = vld [vmem:[%s1 + $0x34] sm:$0xf]
    %v41 = vld [vmem:[%s1 + $0x38] sm:$0xf]
    %v42 = vld [vmem:[%s1 + $0x3c] sm:$0xf]
    %v45 = vunpack.c.l.b16 %v25
    %v46 = vunpack.c.l.b16 %v26
    %v47 = vpack.c.b16 %v46, %v45
    %v65 = vunpack.c.l.b16 %v27
    %v66 = vunpack.c.l.b16 %v28
    %v67 = vunpack.c.l.b16 %v29
    %v68 = vunpack.c.l.b16 %v30
    %v69 = vunpack.c.l.b16 %v31
    %v70 = vunpack.c.l.b16 %v32
    %v71 = vunpack.c.l.b16 %v33
    %v72 = vunpack.c.l.b16 %v34
    %v73 = vunpack.c.l.b16 %v35
    %v74 = vunpack.c.l.b16 %v36
    %v75 = vunpack.c.l.b16 %v37
    %v76 = vunpack.c.l.b16 %v38
    %v77 = vunpack.c.l.b16 %v39
    %v78 = vunpack.c.l.b16 %v40
    %v79 = vunpack.c.l.b16 %v41
    %v80 = vunpack.c.l.b16 %v42
    %v81 = vpack.c.b16 %v66, %v65
    %v82 = vpack.c.b16 %v68, %v67
    %v83 = vpack.c.b16 %v70, %v69
    %v84 = vpack.c.b16 %v72, %v71
    %v85 = vpack.c.b16 %v74, %v73
    %v86 = vpack.c.b16 %v76, %v75
    %v87 = vpack.c.b16 %v78, %v77
    %v88 = vpack.c.b16 %v80, %v79
    %97 = vmatprep.subr.bf16.mxu0 0
    %98 = vmatpush1.bf16.msra.mxu0 %v81
    %99 = vmatprep.subr.bf16.mxu0 0
    %100 = vmatpush1.bf16.msra.mxu0 %v82
    %101 = vmatprep.subr.bf16.mxu0 0
    %102 = vmatpush1.bf16.msra.mxu0 %v83
    %103 = vmatprep.subr.bf16.mxu0 0
    %104 = vmatpush1.bf16.msra.mxu0 %v84
    %105 = vmatprep.subr.bf16.mxu0 0
    %106 = vmatpush1.bf16.msra.mxu0 %v85
    %107 = vmatprep.subr.bf16.mxu0 0
    %108 = vmatpush1.bf16.msra.mxu0 %v86
    %109 = vmatprep.subr.bf16.mxu0 0
    %110 = vmatpush1.bf16.msra.mxu0 %v87
    %111 = vmatprep.subr.bf16.mxu0 0
    %112 = vmatpush1.bf16.msra.mxu0 %v88
    %113 = vmatprep.subr.bf16.mxu0 0
    %114 = vmatpush1.bf16.msra.mxu0 0
    %115 = vmatprep.subr.bf16.mxu0 0
    %116 = vmatpush1.bf16.msra.mxu0 0
    %117 = vmatprep.subr.bf16.mxu0 0
    %118 = vmatpush1.bf16.msra.mxu0 0
    %119 = vmatprep.subr.bf16.mxu0 0
    %120 = vmatpush1.bf16.msra.mxu0 0
    %121 = vmatprep.subr.bf16.mxu0 0
    %122 = vmatpush1.bf16.msra.mxu0 0
    %123 = vmatprep.subr.bf16.mxu0 0
    %124 = vmatpush1.bf16.msra.mxu0 0
    %125 = vmatprep.subr.bf16.mxu0 0
    %126 = vmatpush1.bf16.msra.mxu0 0
    %127 = vmatprep.subr.bf16.mxu0 0
    %128 = vmatpush1.bf16.msra.mxu0 0
    %129 = vmatprep.mubr.bf16.mxu0 0
    %130 = vmatmul.mubr.bf16.gmra.mrb[0].mxu0 %v47
    %v131 = vpop.f32.mrb[0].mxu0
    %v132 = vadd.f32 0.0, %v131
    %v133 = vpop.f32.mrb[0].mxu0
    %v134 = vpop.f32.mrb[0].mxu0
    %v135 = vadd.f32 0.0, %v134
    %v136 = vpop.f32.mrb[0].mxu0
    %137 = vdwg.mxu0
    %v138 = vadd.f32 %v23, %v132
    %v139 = vadd.f32 %v24, %v135
    %vm140 = vcmask 261120
    %141 = vst.msk [vmem:[#allocation2] sm:$0xff] %vm140, %v138
    %142 = vst.msk [vmem:[#allocation2 + $0x8] sm:$0xff] %vm140, %v139
    // Predicated region
    $region18: #{decoder_forward.37} parent=1 // pred_check
      %p143 = pneg %p16
    $region19: #{decoder_forward.37} parent=1 // pred_check_branch
      %145 = sbr.rel (%p143) target = $region21
    $region20: #{decoder_forward.37} parent=1 // pred_region
      %v146 = vld [vmem:[#allocation2] sm:$0xff]
      %v147 = vld [vmem:[#allocation2 + $0x8] sm:$0xff]
      %v148 = vld [vmem:[%s2] sm:$0x1]
      %v150 = vlaneseq
      %v151 = vshrl.u32 %v150, 7
      %v152 = vsub.s32 0, %v151
      %v153 = vrot.slane %v148, %v152
      %v155 = vadd.f32 %v146, %v153
      %v156 = vadd.f32 %v147, %v153
      %157 = vst.msk [vmem:[#allocation3] sm:$0xff] %vm140, %v155
      %158 = vst.msk [vmem:[#allocation3 + $0x8] sm:$0xff] %vm140, %v156
    $region21: #{decoder_forward.37} parent=1 // pred_fallthru
      _
    // Predicated region
    $region22: #{decoder_forward.37} parent=1 // pred_check
      _
    $region23: #{decoder_forward.37} parent=1 // pred_check_branch
      %160 = sbr.rel (0) target = $region25
    $region24: #{decoder_forward.37} parent=1 // pred_region
      %s162 = ssub.s32 256, 256
      %163 = vsyncadd [#allocation4], %s162
      %s164 = sshll.u32 [#allocation3], 4
      %s165 = int_to_ptr.vmem [resolvable:$true] %s164
      %170 = dma.vmem_to_hbm [thread:$0]  %s165, 256, %s3, [#allocation4], 128, 128, 8
    $region25: #{decoder_forward.37} parent=1 // pred_fallthru
      _
    // Predicated region
    $region26: #{decoder_forward.37} parent=1 // pred_check
      _
    $region27: #{decoder_forward.37} parent=1 // pred_check_branch
      %172 = sbr.rel (0) target = $region29
    $region28: #{decoder_forward.37} parent=1 // pred_region
      %173 = dma.done [#allocation4], 256
    $region29: #{decoder_forward.37} parent=1 // pred_fallthru
      _
    %174 = vsyncpa [#allocation4], 1

</llo_original>
